<compile_context>
chip_gen: v5e
topology: v5e:2x2
jax: 0.10.0
libtpu: 0.0.40
codegen_flags: <defaults>
</compile_context>

<pallas_src>
import functools

import jax
import jax.numpy as jnp
from jax import lax
from jax.experimental import pallas as pl
from jax.experimental.pallas import tpu as pltpu

EPS = 1e-5
VMEM_LIMIT = 32 * 1024 * 1024  # explicit budget; safe on v5e / v6e / v7x


# --------------------------------------------------------------------------
# Fused ResNet-block kernel (one grid step == one batch element)
# --------------------------------------------------------------------------


def _resnet_block_kernel(x_ref, sel_ref, w1_ref, b1_ref, sc1_ref, sh1_ref,
                         w2_ref, b2_ref, ws_ref, bs_ref, sew1_ref, sew2_ref,
                         o_ref, xpad_ref, y1pad_ref, im1_ref, im2_ref,
                         *, stride):
    f32 = jnp.float32
    _, H, W, Cin = x_ref.shape
    Cout = b1_ref.shape[-1]
    Ho = (H - 1) // stride + 1
    Wo = (W - 1) // stride + 1
    P = Ho * Wo

    # ---- BN1 + ReLU prologue, exact zero-pad into VMEM scratch (no HBM pad) -
    x = x_ref[0].astype(f32)                                    # (H, W, Cin)
    a = jnp.maximum(x * sc1_ref[0] + sh1_ref[0], 0.0)
    xpad_ref[...] = jnp.zeros_like(xpad_ref)
    xpad_ref[1:H + 1, 1:W + 1, :] = a

    # ---- conv1: assemble 3x3 im2col operand once, single MXU dot ------------
    for t in range(9):
        ky, kx = divmod(t, 3)
        tap = xpad_ref[ky:ky + H, kx:kx + W, :]                 # (H, W, Cin)
        im1_ref[:, t * Cin:(t + 1) * Cin] = tap.reshape(H * W, Cin)
    a1 = im1_ref[...]                                           # (H*W, 9*Cin)
    if stride > 1:
        # keep only the rows the strided conv needs (one-hot selection matmul
        # instead of strided slicing -> robust lowering, MXU does the gather)
        a1 = jnp.dot(sel_ref[...], a1, preferred_element_type=f32)   # (P, 9*Cin)
    h1 = jnp.dot(a1, w1_ref[...], preferred_element_type=f32) + b1_ref[0]
    h1 = jnp.maximum(h1, 0.0)                                   # BN2 folded + ReLU

    # ---- conv2: zero-pad h1 in VMEM, im2col, single MXU dot -----------------
    y1pad_ref[...] = jnp.zeros_like(y1pad_ref)
    y1pad_ref[1:Ho + 1, 1:Wo + 1, :] = h1.reshape(Ho, Wo, Cout)
    for t in range(9):
        ky, kx = divmod(t, 3)
        tap = y1pad_ref[ky:ky + Ho, kx:kx + Wo, :]              # (Ho, Wo, Cout)
        im2_ref[:, t * Cout:(t + 1) * Cout] = tap.reshape(P, Cout)
    y2 = jnp.dot(im2_ref[...], w2_ref[...], preferred_element_type=f32) + b2_ref[0]

    # ---- shortcut: 1x1 conv (BN folded) on the raw, strided input -----------
    xs = x.reshape(H * W, Cin)
    if stride > 1:
        xs = jnp.dot(sel_ref[...], xs, preferred_element_type=f32)   # (P, Cin)
    s = jnp.dot(xs, ws_ref[...], preferred_element_type=f32) + bs_ref[0]

    # ---- residual add + Squeeze-Excitation ----------------------------------
    z = y2 + s                                                  # (P, Cout)
    pooled = jnp.mean(z, axis=0, keepdims=True)                 # (1, Cout)
    u = jnp.maximum(
        jnp.dot(pooled, sew1_ref[...], preferred_element_type=f32), 0.0)
    logits = jnp.dot(u, sew2_ref[...], preferred_element_type=f32)
    gate = 1.0 / (1.0 + jnp.exp(-logits))                       # exact sigmoid

    # ---- emit NCHW directly as a lane-dense (Cout, P) tile: one small
    #      diag(gate) matmul both transposes z and applies the SE gate. -------
    eye = (lax.broadcasted_iota(jnp.int32, (Cout, Cout), 0) ==
           lax.broadcasted_iota(jnp.int32, (Cout, Cout), 1)).astype(f32)
    out_chw = lax.dot_general(eye * gate, z, (((1,), (1,)), ((), ())),
                              preferred_element_type=f32)       # (Cout, P)
    o_ref[0] = out_chw.astype(o_ref.dtype)


# --------------------------------------------------------------------------
# ResNet_Block forward (NCHW in / NCHW out)
# --------------------------------------------------------------------------


def resnet_block(x_nchw, p, *, stride=1):
    B, Cin, H, W = x_nchw.shape
    Cout = p["w1"].shape[0]
    Cr = p["se_w1"].shape[0]
    Ho = (H - 1) // stride + 1
    Wo = (W - 1) // stride + 1
    P = Ho * Wo
    f32 = jnp.float32

    x = jnp.transpose(x_nchw, (0, 2, 3, 1))                     # NCHW -> NHWC (tiny)

    # BN1 folded into an in-kernel scale/shift prologue
    sc1 = p["bn1"]["gamma"] * lax.rsqrt(p["bn1"]["var"] + EPS)
    sh1 = p["bn1"]["beta"] - p["bn1"]["mean"] * sc1

    # BN2 folded into conv1's weights / bias
    sc2 = p["bn2"]["gamma"] * lax.rsqrt(p["bn2"]["var"] + EPS)
    w1f = p["w1"] * sc2[:, None, None, None]
    b1f = (p["b1"] - p["bn2"]["mean"]) * sc2 + p["bn2"]["beta"]

    # BNs folded into the 1x1 shortcut conv
    scs = p["bns"]["gamma"] * lax.rsqrt(p["bns"]["var"] + EPS)
    wsf = (p["ws"][:, :, 0, 0] * scs[:, None]).T                # (Cin, Cout)
    bsf = (p["bs"] - p["bns"]["mean"]) * scs + p["bns"]["beta"]

    # im2col weight layout: row index = (ky*3 + kx)*Cin + cin
    w1k = jnp.transpose(w1f, (2, 3, 1, 0)).reshape(9 * Cin, Cout)
    w2k = jnp.transpose(p["w2"], (2, 3, 1, 0)).reshape(9 * Cout, Cout)

    # one-hot selection matrix for the strided conv / shortcut (constant)
    if stride > 1:
        rows = jnp.arange(P, dtype=jnp.int32)
        src = (rows // Wo) * (stride * W) + (rows % Wo) * stride
        sel = jax.nn.one_hot(src, H * W, dtype=f32)             # (P, H*W)
    else:
        sel = jnp.zeros((1, 128), f32)                          # dummy, never read

    kern = functools.partial(_resnet_block_kernel, stride=stride)

    # TODO(synk): for B == 1 on v7x (2 TensorCores) split the grid spatially so
    # both cores get a parallel step; with B >= 2 the batch grid already does.
    out = pl.pallas_call(
        kern,
        out_shape=jax.ShapeDtypeStruct((B, Cout, P), x.dtype),
        grid=(B,),
        in_specs=[
            pl.BlockSpec((1, H, W, Cin), lambda b: (b, 0, 0, 0)),
            pl.BlockSpec(sel.shape, lambda b: (0, 0)),
            pl.BlockSpec((9 * Cin, Cout), lambda b: (0, 0)),
            pl.BlockSpec((1, Cout), lambda b: (0, 0)),
            pl.BlockSpec((1, Cin), lambda b: (0, 0)),
            pl.BlockSpec((1, Cin), lambda b: (0, 0)),
            pl.BlockSpec((9 * Cout, Cout), lambda b: (0, 0)),
            pl.BlockSpec((1, Cout), lambda b: (0, 0)),
            pl.BlockSpec((Cin, Cout), lambda b: (0, 0)),
            pl.BlockSpec((1, Cout), lambda b: (0, 0)),
            pl.BlockSpec((Cout, Cr), lambda b: (0, 0)),
            pl.BlockSpec((Cr, Cout), lambda b: (0, 0)),
        ],
        out_specs=pl.BlockSpec((1, Cout, P), lambda b: (b, 0, 0)),
        scratch_shapes=[
            pltpu.VMEM((H + 2, W + 2, Cin), f32),    # padded BN1+ReLU(x)
            pltpu.VMEM((Ho + 2, Wo + 2, Cout), f32),  # padded conv1 output
            pltpu.VMEM((H * W, 9 * Cin), f32),        # conv1 im2col operand
            pltpu.VMEM((P, 9 * Cout), f32),           # conv2 im2col operand
        ],
        compiler_params=pltpu.CompilerParams(
            dimension_semantics=("parallel",),
            vmem_limit_bytes=VMEM_LIMIT),
    )(x, sel, w1k, b1f.reshape(1, Cout), sc1.reshape(1, Cin), sh1.reshape(1, Cin),
      w2k, p["b2"].reshape(1, Cout), wsf, bsf.reshape(1, Cout),
      p["se_w1"].T, p["se_w2"].T)

    return out.reshape(B, Cout, Ho, Wo)                         # metadata reshape only


# --------------------------------------------------------------------------
# Pure-JAX reference (for self-check)
# --------------------------------------------------------------------------


def resnet_block_ref(x_nchw, p, *, stride=1):
    x = jnp.transpose(x_nchw, (0, 2, 3, 1))

    def bn(v, b):
        sc = b["gamma"] / jnp.sqrt(b["var"] + EPS)
        return v * sc + (b["beta"] - b["mean"] * sc)

    def conv(v, w, bias, pad, s):
        o = lax.conv_general_dilated(
            v, jnp.transpose(w, (2, 3, 1, 0)), (s, s), [(pad, pad), (pad, pad)],
            dimension_numbers=("NHWC", "HWIO", "NHWC"),
            precision=lax.Precision.HIGHEST)
        return o + bias.reshape(1, 1, 1, -1)

    y = conv(jnp.maximum(bn(x, p["bn1"]), 0.0), p["w1"], p["b1"], 1, stride)
    y = conv(jnp.maximum(bn(y, p["bn2"]), 0.0), p["w2"], p["b2"], 1, 1)
    s = bn(conv(x, p["ws"], p["bs"], 0, stride), p["bns"])
    z = y + s
    pooled = jnp.mean(z, axis=(1, 2))
    u = jnp.maximum(pooled @ p["se_w1"].T, 0.0)
    g = jax.nn.sigmoid(u @ p["se_w2"].T)
    out = z * g[:, None, None, :]
    return jnp.transpose(out, (0, 3, 1, 2))


# --------------------------------------------------------------------------
# Deterministic synthetic parameters (matching the PyTorch module layout)
# --------------------------------------------------------------------------


def init_params(key, in_c, out_c, r=8):
    keys = iter(jax.random.split(key, 32))

    def nrm(shape, s=0.1):
        return s * jax.random.normal(next(keys), shape, jnp.float32)

    def pos(shape):
        return jax.random.uniform(next(keys), shape, jnp.float32, 0.5, 1.5)

    def bn(c):
        return dict(gamma=pos((c,)), beta=nrm((c,)), mean=nrm((c,)), var=pos((c,)))

    cr = max(out_c // r, 1)
    return dict(
        bn1=bn(in_c), w1=nrm((out_c, in_c, 3, 3)), b1=nrm((out_c,)),
        bn2=bn(out_c), w2=nrm((out_c, out_c, 3, 3)), b2=nrm((out_c,)),
        ws=nrm((out_c, in_c, 1, 1)), bs=nrm((out_c,)), bns=bn(out_c),
        se_w1=nrm((cr, out_c)), se_w2=nrm((out_c, cr)),
    )


# --------------------------------------------------------------------------


if __name__ == "__main__":
    B, in_c, out_c, H, W = 2, 4, 32, 16, 16

    root = jax.random.PRNGKey(0)
    k_x, k_p = jax.random.split(root)
    x = jax.random.normal(k_x, (B, in_c, H, W), jnp.float32)     # NCHW
    params = init_params(k_p, in_c, out_c)

    for stride in (1, 2):
        fwd = jax.jit(functools.partial(resnet_block, stride=stride))
        out = jax.block_until_ready(fwd(x, params))
        Ho = (H - 1) // stride + 1
        assert out.shape == (B, out_c, Ho, Ho), out.shape
        ref = resnet_block_ref(x, params, stride=stride)
        err = float(jnp.max(jnp.abs(out - ref)))
        if err > 5e-2:
            raise AssertionError(f"stride={stride} mismatch vs JAX reference: {err}")

    print("KERNEL_OK")
</pallas_src>

<mosaic_0001>
module attributes {stable_mosaic.version = 11 : i64} {
  func.func @_resnet_block_kernel(%arg0: i32, %arg1: memref<1x16x16x4xf32, #tpu.memory_space<vmem>>, %arg2: memref<1x128xf32, #tpu.memory_space<vmem>>, %arg3: memref<36x32xf32, #tpu.memory_space<vmem>>, %arg4: memref<1x32xf32, #tpu.memory_space<vmem>>, %arg5: memref<1x4xf32, #tpu.memory_space<vmem>>, %arg6: memref<1x4xf32, #tpu.memory_space<vmem>>, %arg7: memref<288x32xf32, #tpu.memory_space<vmem>>, %arg8: memref<1x32xf32, #tpu.memory_space<vmem>>, %arg9: memref<4x32xf32, #tpu.memory_space<vmem>>, %arg10: memref<1x32xf32, #tpu.memory_space<vmem>>, %arg11: memref<32x4xf32, #tpu.memory_space<vmem>>, %arg12: memref<4x32xf32, #tpu.memory_space<vmem>>, %arg13: memref<1x32x256xf32, #tpu.memory_space<vmem>>, %arg14: memref<18x18x4xf32, #tpu.memory_space<vmem>>, %arg15: memref<18x18x32xf32, #tpu.memory_space<vmem>>, %arg16: memref<256x36xf32, #tpu.memory_space<vmem>>, %arg17: memref<256x288xf32, #tpu.memory_space<vmem>>) attributes {dimension_semantics = [#tpu.dimension_semantics<parallel>], iteration_bounds = array<i64: 2>, scalar_prefetch = 0 : i64, scratch_operands = 4 : i64, tpu.core_type = #tpu.core_type<tc>, window_params = [{transform_indices = @transform_0, window_bounds = array<i64: 1, 16, 16, 4>}, {pipeline_mode = #tpu.pipeline_mode<synchronous>, transform_indices = @transform_1, window_bounds = array<i64: 1, 128>}, {pipeline_mode = #tpu.pipeline_mode<synchronous>, transform_indices = @transform_2, window_bounds = array<i64: 36, 32>}, {pipeline_mode = #tpu.pipeline_mode<synchronous>, transform_indices = @transform_3, window_bounds = array<i64: 1, 32>}, {pipeline_mode = #tpu.pipeline_mode<synchronous>, transform_indices = @transform_4, window_bounds = array<i64: 1, 4>}, {pipeline_mode = #tpu.pipeline_mode<synchronous>, transform_indices = @transform_5, window_bounds = array<i64: 1, 4>}, {pipeline_mode = #tpu.pipeline_mode<synchronous>, transform_indices = @transform_6, window_bounds = array<i64: 288, 32>}, {pipeline_mode = #tpu.pipeline_mode<synchronous>, transform_indices = @transform_7, window_bounds = array<i64: 1, 32>}, {pipeline_mode = #tpu.pipeline_mode<synchronous>, transform_indices = @transform_8, window_bounds = array<i64: 4, 32>}, {pipeline_mode = #tpu.pipeline_mode<synchronous>, transform_indices = @transform_9, window_bounds = array<i64: 1, 32>}, {pipeline_mode = #tpu.pipeline_mode<synchronous>, transform_indices = @transform_10, window_bounds = array<i64: 32, 4>}, {pipeline_mode = #tpu.pipeline_mode<synchronous>, transform_indices = @transform_11, window_bounds = array<i64: 4, 32>}, {transform_indices = @transform_12, window_bounds = array<i64: 1, 32, 256>}]} {
    %c0 = arith.constant 0 : index
    %c0_0 = arith.constant 0 : index
    %c0_1 = arith.constant 0 : index
    %c0_2 = arith.constant 0 : index
    %0 = vector.load %arg1[%c0, %c0_0, %c0_1, %c0_2] : memref<1x16x16x4xf32, #tpu.memory_space<vmem>>, vector<1x16x16x4xf32>
    %1 = vector.shape_cast %0 : vector<1x16x16x4xf32> to vector<16x16x4xf32>
    %c0_3 = arith.constant 0 : index
    %c0_4 = arith.constant 0 : index
    %2 = vector.load %arg5[%c0_3, %c0_4] : memref<1x4xf32, #tpu.memory_space<vmem>>, vector<1x4xf32>
    %3 = vector.shape_cast %2 : vector<1x4xf32> to vector<4xf32>
    %4 = vector.shape_cast %3 : vector<4xf32> to vector<1x1x4xf32>
    %5 = vector.broadcast %4 : vector<1x1x4xf32> to vector<16x16x4xf32>
    %6 = arith.mulf %1, %5 : vector<16x16x4xf32>
    %c0_5 = arith.constant 0 : index
    %c0_6 = arith.constant 0 : index
    %7 = vector.load %arg6[%c0_5, %c0_6] : memref<1x4xf32, #tpu.memory_space<vmem>>, vector<1x4xf32>
    %8 = vector.shape_cast %7 : vector<1x4xf32> to vector<4xf32>
    %9 = vector.shape_cast %8 : vector<4xf32> to vector<1x1x4xf32>
    %10 = vector.broadcast %9 : vector<1x1x4xf32> to vector<16x16x4xf32>
    %11 = arith.addf %6, %10 : vector<16x16x4xf32>
    %cst = arith.constant 0.000000e+00 : f32
    %12 = vector.broadcast %cst : f32 to vector<16x16x4xf32>
    %13 = arith.maximumf %11, %12 : vector<16x16x4xf32>
    %cst_7 = arith.constant 0.000000e+00 : f32
    %14 = vector.broadcast %cst_7 : f32 to vector<18x18x4xf32>
    %c0_8 = arith.constant 0 : index
    %c0_9 = arith.constant 0 : index
    %c0_10 = arith.constant 0 : index
    %15 = vector.load %arg14[%c0_8, %c0_9, %c0_10] : memref<18x18x4xf32, #tpu.memory_space<vmem>>, vector<18x18x4xf32>
    tpu.vector_store %arg14[%c0_8, %c0_9, %c0_10], %14 {strides = array<i32>} : memref<18x18x4xf32, #tpu.memory_space<vmem>>, vector<18x18x4xf32>,
    %c1 = arith.constant 1 : index
    %c1_11 = arith.constant 1 : index
    %c0_12 = arith.constant 0 : index
    %16 = vector.load %arg14[%c1, %c1_11, %c0_12] : memref<18x18x4xf32, #tpu.memory_space<vmem>>, vector<16x16x4xf32>
    tpu.vector_store %arg14[%c1, %c1_11, %c0_12], %13 {strides = array<i32>} : memref<18x18x4xf32, #tpu.memory_space<vmem>>, vector<16x16x4xf32>,
    %c0_13 = arith.constant 0 : index
    %c0_14 = arith.constant 0 : index
    %c0_15 = arith.constant 0 : index
    %17 = vector.load %arg14[%c0_13, %c0_14, %c0_15] : memref<18x18x4xf32, #tpu.memory_space<vmem>>, vector<16x16x4xf32>
    %18 = vector.shape_cast %17 : vector<16x16x4xf32> to vector<256x4xf32>
    %c0_16 = arith.constant 0 : index
    %c0_17 = arith.constant 0 : index
    %19 = vector.load %arg16[%c0_16, %c0_17] : memref<256x36xf32, #tpu.memory_space<vmem>>, vector<256x4xf32>
    tpu.vector_store %arg16[%c0_16, %c0_17], %18 {strides = array<i32>} : memref<256x36xf32, #tpu.memory_space<vmem>>, vector<256x4xf32>,
    %c0_18 = arith.constant 0 : index
    %c1_19 = arith.constant 1 : index
    %c0_20 = arith.constant 0 : index
    %20 = vector.load %arg14[%c0_18, %c1_19, %c0_20] : memref<18x18x4xf32, #tpu.memory_space<vmem>>, vector<16x16x4xf32>
    %21 = vector.shape_cast %20 : vector<16x16x4xf32> to vector<256x4xf32>
    %c0_21 = arith.constant 0 : index
    %c4 = arith.constant 4 : index
    %22 = vector.load %arg16[%c0_21, %c4] : memref<256x36xf32, #tpu.memory_space<vmem>>, vector<256x4xf32>
    tpu.vector_store %arg16[%c0_21, %c4], %21 {strides = array<i32>} : memref<256x36xf32, #tpu.memory_space<vmem>>, vector<256x4xf32>,
    %c0_22 = arith.constant 0 : index
    %c2 = arith.constant 2 : index
    %c0_23 = arith.constant 0 : index
    %23 = vector.load %arg14[%c0_22, %c2, %c0_23] : memref<18x18x4xf32, #tpu.memory_space<vmem>>, vector<16x16x4xf32>
    %24 = vector.shape_cast %23 : vector<16x16x4xf32> to vector<256x4xf32>
    %c0_24 = arith.constant 0 : index
    %c8 = arith.constant 8 : index
    %25 = vector.load %arg16[%c0_24, %c8] : memref<256x36xf32, #tpu.memory_space<vmem>>, vector<256x4xf32>
    tpu.vector_store %arg16[%c0_24, %c8], %24 {strides = array<i32>} : memref<256x36xf32, #tpu.memory_space<vmem>>, vector<256x4xf32>,
    %c1_25 = arith.constant 1 : index
    %c0_26 = arith.constant 0 : index
    %c0_27 = arith.constant 0 : index
    %26 = vector.load %arg14[%c1_25, %c0_26, %c0_27] : memref<18x18x4xf32, #tpu.memory_space<vmem>>, vector<16x16x4xf32>
    %27 = vector.shape_cast %26 : vector<16x16x4xf32> to vector<256x4xf32>
    %c0_28 = arith.constant 0 : index
    %c12 = arith.constant 12 : index
    %28 = vector.load %arg16[%c0_28, %c12] : memref<256x36xf32, #tpu.memory_space<vmem>>, vector<256x4xf32>
    tpu.vector_store %arg16[%c0_28, %c12], %27 {strides = array<i32>} : memref<256x36xf32, #tpu.memory_space<vmem>>, vector<256x4xf32>,
    %c1_29 = arith.constant 1 : index
    %c1_30 = arith.constant 1 : index
    %c0_31 = arith.constant 0 : index
    %29 = vector.load %arg14[%c1_29, %c1_30, %c0_31] : memref<18x18x4xf32, #tpu.memory_space<vmem>>, vector<16x16x4xf32>
    %30 = vector.shape_cast %29 : vector<16x16x4xf32> to vector<256x4xf32>
    %c0_32 = arith.constant 0 : index
    %c16 = arith.constant 16 : index
    %31 = vector.load %arg16[%c0_32, %c16] : memref<256x36xf32, #tpu.memory_space<vmem>>, vector<256x4xf32>
    tpu.vector_store %arg16[%c0_32, %c16], %30 {strides = array<i32>} : memref<256x36xf32, #tpu.memory_space<vmem>>, vector<256x4xf32>,
    %c1_33 = arith.constant 1 : index
    %c2_34 = arith.constant 2 : index
    %c0_35 = arith.constant 0 : index
    %32 = vector.load %arg14[%c1_33, %c2_34, %c0_35] : memref<18x18x4xf32, #tpu.memory_space<vmem>>, vector<16x16x4xf32>
    %33 = vector.shape_cast %32 : vector<16x16x4xf32> to vector<256x4xf32>
    %c0_36 = arith.constant 0 : index
    %c20 = arith.constant 20 : index
    %34 = vector.load %arg16[%c0_36, %c20] : memref<256x36xf32, #tpu.memory_space<vmem>>, vector<256x4xf32>
    tpu.vector_store %arg16[%c0_36, %c20], %33 {strides = array<i32>} : memref<256x36xf32, #tpu.memory_space<vmem>>, vector<256x4xf32>,
    %c2_37 = arith.constant 2 : index
    %c0_38 = arith.constant 0 : index
    %c0_39 = arith.constant 0 : index
    %35 = vector.load %arg14[%c2_37, %c0_38, %c0_39] : memref<18x18x4xf32, #tpu.memory_space<vmem>>, vector<16x16x4xf32>
    %36 = vector.shape_cast %35 : vector<16x16x4xf32> to vector<256x4xf32>
    %c0_40 = arith.constant 0 : index
    %c24 = arith.constant 24 : index
    %37 = vector.load %arg16[%c0_40, %c24] : memref<256x36xf32, #tpu.memory_space<vmem>>, vector<256x4xf32>
    tpu.vector_store %arg16[%c0_40, %c24], %36 {strides = array<i32>} : memref<256x36xf32, #tpu.memory_space<vmem>>, vector<256x4xf32>,
    %c2_41 = arith.constant 2 : index
    %c1_42 = arith.constant 1 : index
    %c0_43 = arith.constant 0 : index
    %38 = vector.load %arg14[%c2_41, %c1_42, %c0_43] : memref<18x18x4xf32, #tpu.memory_space<vmem>>, vector<16x16x4xf32>
    %39 = vector.shape_cast %38 : vector<16x16x4xf32> to vector<256x4xf32>
    %c0_44 = arith.constant 0 : index
    %c28 = arith.constant 28 : index
    %40 = vector.load %arg16[%c0_44, %c28] : memref<256x36xf32, #tpu.memory_space<vmem>>, vector<256x4xf32>
    tpu.vector_store %arg16[%c0_44, %c28], %39 {strides = array<i32>} : memref<256x36xf32, #tpu.memory_space<vmem>>, vector<256x4xf32>,
    %c2_45 = arith.constant 2 : index
    %c2_46 = arith.constant 2 : index
    %c0_47 = arith.constant 0 : index
    %41 = vector.load %arg14[%c2_45, %c2_46, %c0_47] : memref<18x18x4xf32, #tpu.memory_space<vmem>>, vector<16x16x4xf32>
    %42 = vector.shape_cast %41 : vector<16x16x4xf32> to vector<256x4xf32>
    %c0_48 = arith.constant 0 : index
    %c32 = arith.constant 32 : index
    %43 = vector.load %arg16[%c0_48, %c32] : memref<256x36xf32, #tpu.memory_space<vmem>>, vector<256x4xf32>
    tpu.vector_store %arg16[%c0_48, %c32], %42 {strides = array<i32>} : memref<256x36xf32, #tpu.memory_space<vmem>>, vector<256x4xf32>,
    %c0_49 = arith.constant 0 : index
    %c0_50 = arith.constant 0 : index
    %44 = vector.load %arg16[%c0_49, %c0_50] : memref<256x36xf32, #tpu.memory_space<vmem>>, vector<256x36xf32>
    %c0_51 = arith.constant 0 : index
    %c0_52 = arith.constant 0 : index
    %45 = vector.load %arg3[%c0_51, %c0_52] : memref<36x32xf32, #tpu.memory_space<vmem>>, vector<36x32xf32>
    %cst_53 = arith.constant dense<0.000000e+00> : vector<256x32xf32>
    %46 = tpu.matmul %44, %45, %cst_53 {dimension_numbers = #tpu.dot_dimension_numbers<[1], [0], [0], [1], [0, 0, 1, 1], [], []>} : vector<256x36xf32>, vector<36x32xf32>, vector<256x32xf32> -> vector<256x32xf32>
    %c0_54 = arith.constant 0 : index
    %c0_55 = arith.constant 0 : index
    %47 = vector.load %arg4[%c0_54, %c0_55] : memref<1x32xf32, #tpu.memory_space<vmem>>, vector<1x32xf32>
    %48 = vector.shape_cast %47 : vector<1x32xf32> to vector<32xf32>
    %49 = vector.shape_cast %48 : vector<32xf32> to vector<1x32xf32>
    %50 = vector.broadcast %49 : vector<1x32xf32> to vector<256x32xf32>
    %51 = arith.addf %46, %50 : vector<256x32xf32>
    %cst_56 = arith.constant 0.000000e+00 : f32
    %52 = vector.broadcast %cst_56 : f32 to vector<256x32xf32>
    %53 = arith.maximumf %51, %52 : vector<256x32xf32>
    %cst_57 = arith.constant 0.000000e+00 : f32
    %54 = vector.broadcast %cst_57 : f32 to vector<18x18x32xf32>
    %c0_58 = arith.constant 0 : index
    %c0_59 = arith.constant 0 : index
    %c0_60 = arith.constant 0 : index
    %55 = vector.load %arg15[%c0_58, %c0_59, %c0_60] : memref<18x18x32xf32, #tpu.memory_space<vmem>>, vector<18x18x32xf32>
    tpu.vector_store %arg15[%c0_58, %c0_59, %c0_60], %54 {strides = array<i32>} : memref<18x18x32xf32, #tpu.memory_space<vmem>>, vector<18x18x32xf32>,
    %56 = vector.shape_cast %53 : vector<256x32xf32> to vector<16x16x32xf32>
    %c1_61 = arith.constant 1 : index
    %c1_62 = arith.constant 1 : index
    %c0_63 = arith.constant 0 : index
    %57 = vector.load %arg15[%c1_61, %c1_62, %c0_63] : memref<18x18x32xf32, #tpu.memory_space<vmem>>, vector<16x16x32xf32>
    tpu.vector_store %arg15[%c1_61, %c1_62, %c0_63], %56 {strides = array<i32>} : memref<18x18x32xf32, #tpu.memory_space<vmem>>, vector<16x16x32xf32>,
    %c0_64 = arith.constant 0 : index
    %c0_65 = arith.constant 0 : index
    %c0_66 = arith.constant 0 : index
    %58 = vector.load %arg15[%c0_64, %c0_65, %c0_66] : memref<18x18x32xf32, #tpu.memory_space<vmem>>, vector<16x16x32xf32>
    %59 = vector.shape_cast %58 : vector<16x16x32xf32> to vector<256x32xf32>
    %c0_67 = arith.constant 0 : index
    %c0_68 = arith.constant 0 : index
    %60 = vector.load %arg17[%c0_67, %c0_68] : memref<256x288xf32, #tpu.memory_space<vmem>>, vector<256x32xf32>
    tpu.vector_store %arg17[%c0_67, %c0_68], %59 {strides = array<i32>} : memref<256x288xf32, #tpu.memory_space<vmem>>, vector<256x32xf32>,
    %c0_69 = arith.constant 0 : index
    %c1_70 = arith.constant 1 : index
    %c0_71 = arith.constant 0 : index
    %61 = vector.load %arg15[%c0_69, %c1_70, %c0_71] : memref<18x18x32xf32, #tpu.memory_space<vmem>>, vector<16x16x32xf32>
    %62 = vector.shape_cast %61 : vector<16x16x32xf32> to vector<256x32xf32>
    %c0_72 = arith.constant 0 : index
    %c32_73 = arith.constant 32 : index
    %63 = vector.load %arg17[%c0_72, %c32_73] : memref<256x288xf32, #tpu.memory_space<vmem>>, vector<256x32xf32>
    tpu.vector_store %arg17[%c0_72, %c32_73], %62 {strides = array<i32>} : memref<256x288xf32, #tpu.memory_space<vmem>>, vector<256x32xf32>,
    %c0_74 = arith.constant 0 : index
    %c2_75 = arith.constant 2 : index
    %c0_76 = arith.constant 0 : index
    %64 = vector.load %arg15[%c0_74, %c2_75, %c0_76] : memref<18x18x32xf32, #tpu.memory_space<vmem>>, vector<16x16x32xf32>
    %65 = vector.shape_cast %64 : vector<16x16x32xf32> to vector<256x32xf32>
    %c0_77 = arith.constant 0 : index
    %c64 = arith.constant 64 : index
    %66 = vector.load %arg17[%c0_77, %c64] : memref<256x288xf32, #tpu.memory_space<vmem>>, vector<256x32xf32>
    tpu.vector_store %arg17[%c0_77, %c64], %65 {strides = array<i32>} : memref<256x288xf32, #tpu.memory_space<vmem>>, vector<256x32xf32>,
    %c1_78 = arith.constant 1 : index
    %c0_79 = arith.constant 0 : index
    %c0_80 = arith.constant 0 : index
    %67 = vector.load %arg15[%c1_78, %c0_79, %c0_80] : memref<18x18x32xf32, #tpu.memory_space<vmem>>, vector<16x16x32xf32>
    %68 = vector.shape_cast %67 : vector<16x16x32xf32> to vector<256x32xf32>
    %c0_81 = arith.constant 0 : index
    %c96 = arith.constant 96 : index
    %69 = vector.load %arg17[%c0_81, %c96] : memref<256x288xf32, #tpu.memory_space<vmem>>, vector<256x32xf32>
    tpu.vector_store %arg17[%c0_81, %c96], %68 {strides = array<i32>} : memref<256x288xf32, #tpu.memory_space<vmem>>, vector<256x32xf32>,
    %c1_82 = arith.constant 1 : index
    %c1_83 = arith.constant 1 : index
    %c0_84 = arith.constant 0 : index
    %70 = vector.load %arg15[%c1_82, %c1_83, %c0_84] : memref<18x18x32xf32, #tpu.memory_space<vmem>>, vector<16x16x32xf32>
    %71 = vector.shape_cast %70 : vector<16x16x32xf32> to vector<256x32xf32>
    %c0_85 = arith.constant 0 : index
    %c128 = arith.constant 128 : index
    %72 = vector.load %arg17[%c0_85, %c128] : memref<256x288xf32, #tpu.memory_space<vmem>>, vector<256x32xf32>
    tpu.vector_store %arg17[%c0_85, %c128], %71 {strides = array<i32>} : memref<256x288xf32, #tpu.memory_space<vmem>>, vector<256x32xf32>,
    %c1_86 = arith.constant 1 : index
    %c2_87 = arith.constant 2 : index
    %c0_88 = arith.constant 0 : index
    %73 = vector.load %arg15[%c1_86, %c2_87, %c0_88] : memref<18x18x32xf32, #tpu.memory_space<vmem>>, vector<16x16x32xf32>
    %74 = vector.shape_cast %73 : vector<16x16x32xf32> to vector<256x32xf32>
    %c0_89 = arith.constant 0 : index
    %c160 = arith.constant 160 : index
    %75 = vector.load %arg17[%c0_89, %c160] : memref<256x288xf32, #tpu.memory_space<vmem>>, vector<256x32xf32>
    tpu.vector_store %arg17[%c0_89, %c160], %74 {strides = array<i32>} : memref<256x288xf32, #tpu.memory_space<vmem>>, vector<256x32xf32>,
    %c2_90 = arith.constant 2 : index
    %c0_91 = arith.constant 0 : index
    %c0_92 = arith.constant 0 : index
    %76 = vector.load %arg15[%c2_90, %c0_91, %c0_92] : memref<18x18x32xf32, #tpu.memory_space<vmem>>, vector<16x16x32xf32>
    %77 = vector.shape_cast %76 : vector<16x16x32xf32> to vector<256x32xf32>
    %c0_93 = arith.constant 0 : index
    %c192 = arith.constant 192 : index
    %78 = vector.load %arg17[%c0_93, %c192] : memref<256x288xf32, #tpu.memory_space<vmem>>, vector<256x32xf32>
    tpu.vector_store %arg17[%c0_93, %c192], %77 {strides = array<i32>} : memref<256x288xf32, #tpu.memory_space<vmem>>, vector<256x32xf32>,
    %c2_94 = arith.constant 2 : index
    %c1_95 = arith.constant 1 : index
    %c0_96 = arith.constant 0 : index
    %79 = vector.load %arg15[%c2_94, %c1_95, %c0_96] : memref<18x18x32xf32, #tpu.memory_space<vmem>>, vector<16x16x32xf32>
    %80 = vector.shape_cast %79 : vector<16x16x32xf32> to vector<256x32xf32>
    %c0_97 = arith.constant 0 : index
    %c224 = arith.constant 224 : index
    %81 = vector.load %arg17[%c0_97, %c224] : memref<256x288xf32, #tpu.memory_space<vmem>>, vector<256x32xf32>
    tpu.vector_store %arg17[%c0_97, %c224], %80 {strides = array<i32>} : memref<256x288xf32, #tpu.memory_space<vmem>>, vector<256x32xf32>,
    %c2_98 = arith.constant 2 : index
    %c2_99 = arith.constant 2 : index
    %c0_100 = arith.constant 0 : index
    %82 = vector.load %arg15[%c2_98, %c2_99, %c0_100] : memref<18x18x32xf32, #tpu.memory_space<vmem>>, vector<16x16x32xf32>
    %83 = vector.shape_cast %82 : vector<16x16x32xf32> to vector<256x32xf32>
    %c0_101 = arith.constant 0 : index
    %c256 = arith.constant 256 : index
    %84 = vector.load %arg17[%c0_101, %c256] : memref<256x288xf32, #tpu.memory_space<vmem>>, vector<256x32xf32>
    tpu.vector_store %arg17[%c0_101, %c256], %83 {strides = array<i32>} : memref<256x288xf32, #tpu.memory_space<vmem>>, vector<256x32xf32>,
    %c0_102 = arith.constant 0 : index
    %c0_103 = arith.constant 0 : index
    %85 = vector.load %arg17[%c0_102, %c0_103] : memref<256x288xf32, #tpu.memory_space<vmem>>, vector<256x288xf32>
    %c0_104 = arith.constant 0 : index
    %c0_105 = arith.constant 0 : index
    %86 = vector.load %arg7[%c0_104, %c0_105] : memref<288x32xf32, #tpu.memory_space<vmem>>, vector<288x32xf32>
    %cst_106 = arith.constant dense<0.000000e+00> : vector<256x32xf32>
    %87 = tpu.matmul %85, %86, %cst_106 {dimension_numbers = #tpu.dot_dimension_numbers<[1], [0], [0], [1], [0, 0, 1, 1], [], []>} : vector<256x288xf32>, vector<288x32xf32>, vector<256x32xf32> -> vector<256x32xf32>
    %c0_107 = arith.constant 0 : index
    %c0_108 = arith.constant 0 : index
    %88 = vector.load %arg8[%c0_107, %c0_108] : memref<1x32xf32, #tpu.memory_space<vmem>>, vector<1x32xf32>
    %89 = vector.shape_cast %88 : vector<1x32xf32> to vector<32xf32>
    %90 = vector.shape_cast %89 : vector<32xf32> to vector<1x32xf32>
    %91 = vector.broadcast %90 : vector<1x32xf32> to vector<256x32xf32>
    %92 = arith.addf %87, %91 : vector<256x32xf32>
    %93 = vector.shape_cast %1 : vector<16x16x4xf32> to vector<256x4xf32>
    %c0_109 = arith.constant 0 : index
    %c0_110 = arith.constant 0 : index
    %94 = vector.load %arg9[%c0_109, %c0_110] : memref<4x32xf32, #tpu.memory_space<vmem>>, vector<4x32xf32>
    %cst_111 = arith.constant dense<0.000000e+00> : vector<256x32xf32>
    %95 = tpu.matmul %93, %94, %cst_111 {dimension_numbers = #tpu.dot_dimension_numbers<[1], [0], [0], [1], [0, 0, 1, 1], [], []>} : vector<256x4xf32>, vector<4x32xf32>, vector<256x32xf32> -> vector<256x32xf32>
    %c0_112 = arith.constant 0 : index
    %c0_113 = arith.constant 0 : index
    %96 = vector.load %arg10[%c0_112, %c0_113] : memref<1x32xf32, #tpu.memory_space<vmem>>, vector<1x32xf32>
    %97 = vector.shape_cast %96 : vector<1x32xf32> to vector<32xf32>
    %98 = vector.shape_cast %97 : vector<32xf32> to vector<1x32xf32>
    %99 = vector.broadcast %98 : vector<1x32xf32> to vector<256x32xf32>
    %100 = arith.addf %95, %99 : vector<256x32xf32>
    %101 = arith.addf %92, %100 : vector<256x32xf32>
    %cst_114 = arith.constant dense<0.000000e+00> : vector<32xf32>
    %102 = vector.multi_reduction <add>, %101, %cst_114 [0] : vector<256x32xf32> to vector<32xf32>
    %103 = vector.shape_cast %102 : vector<32xf32> to vector<1x32xf32>
    %cst_115 = arith.constant 2.560000e+02 : f32
    %104 = vector.broadcast %cst_115 : f32 to vector<1x32xf32>
    %105 = arith.divf %103, %104 : vector<1x32xf32>
    %c0_116 = arith.constant 0 : index
    %c0_117 = arith.constant 0 : index
    %106 = vector.load %arg11[%c0_116, %c0_117] : memref<32x4xf32, #tpu.memory_space<vmem>>, vector<32x4xf32>
    %cst_118 = arith.constant dense<0.000000e+00> : vector<1x4xf32>
    %107 = tpu.matmul %105, %106, %cst_118 {dimension_numbers = #tpu.dot_dimension_numbers<[1], [0], [0], [1], [0, 0, 1, 1], [], []>} : vector<1x32xf32>, vector<32x4xf32>, vector<1x4xf32> -> vector<1x4xf32>
    %cst_119 = arith.constant 0.000000e+00 : f32
    %108 = vector.broadcast %cst_119 : f32 to vector<1x4xf32>
    %109 = arith.maximumf %107, %108 : vector<1x4xf32>
    %c0_120 = arith.constant 0 : index
    %c0_121 = arith.constant 0 : index
    %110 = vector.load %arg12[%c0_120, %c0_121] : memref<4x32xf32, #tpu.memory_space<vmem>>, vector<4x32xf32>
    %cst_122 = arith.constant dense<0.000000e+00> : vector<1x32xf32>
    %111 = tpu.matmul %109, %110, %cst_122 {dimension_numbers = #tpu.dot_dimension_numbers<[1], [0], [0], [1], [0, 0, 1, 1], [], []>} : vector<1x4xf32>, vector<4x32xf32>, vector<1x32xf32> -> vector<1x32xf32>
    %cst_123 = arith.constant 0.000000e+00 : f32
    %112 = vector.broadcast %cst_123 : f32 to vector<1x32xf32>
    %113 = arith.subf %112, %111 : vector<1x32xf32>
    %114 = math.exp %113 : vector<1x32xf32>
    %cst_124 = arith.constant 1.000000e+00 : f32
    %115 = vector.broadcast %cst_124 : f32 to vector<1x32xf32>
    %116 = arith.addf %115, %114 : vector<1x32xf32>
    %cst_125 = arith.constant 1.000000e+00 : f32
    %117 = vector.broadcast %cst_125 : f32 to vector<1x32xf32>
    %118 = arith.divf %117, %116 : vector<1x32xf32>
    %119 = tpu.iota {dimensions = array<i32: 0>} : vector<32x32xi32>
    %120 = tpu.iota {dimensions = array<i32: 1>} : vector<32x32xi32>
    %121 = arith.cmpi eq, %119, %120 : vector<32x32xi32>
    %122 = arith.extui %121 : vector<32x32xi1> to vector<32x32xi32>
    %123 = arith.sitofp %122 : vector<32x32xi32> to vector<32x32xf32>
    %124 = vector.broadcast %118 : vector<1x32xf32> to vector<32x32xf32>
    %125 = arith.mulf %123, %124 : vector<32x32xf32>
    %cst_126 = arith.constant dense<0.000000e+00> : vector<32x256xf32>
    %126 = tpu.matmul %125, %101, %cst_126 {dimension_numbers = #tpu.dot_dimension_numbers<[1], [1], [0], [0], [0, 0, 1, 0], [], []>} : vector<32x32xf32>, vector<256x32xf32>, vector<32x256xf32> -> vector<32x256xf32>
    %c0_127 = arith.constant 0 : index
    %c0_128 = arith.constant 0 : index
    %c0_129 = arith.constant 0 : index
    %127 = vector.load %arg13[%c0_127, %c0_128, %c0_129] : memref<1x32x256xf32, #tpu.memory_space<vmem>>, vector<1x32x256xf32>
    %128 = vector.shape_cast %127 : vector<1x32x256xf32> to vector<32x256xf32>
    %129 = vector.shape_cast %126 : vector<32x256xf32> to vector<1x32x256xf32>
    tpu.vector_store %arg13[%c0_127, %c0_128, %c0_129], %129 {strides = array<i32>} : memref<1x32x256xf32, #tpu.memory_space<vmem>>, vector<1x32x256xf32>,
    return
  }
  func.func @transform_0(%arg0: i32) -> (i32, i32, i32, i32) {
    %c0_i32 = arith.constant 0 : i32
    %c0_i32_0 = arith.constant 0 : i32
    %c0_i32_1 = arith.constant 0 : i32
    %c0_i32_2 = arith.constant 0 : i32
    return %arg0, %c0_i32, %c0_i32_0, %c0_i32_1 : i32, i32, i32, i32
  }
  func.func @transform_1(%arg0: i32) -> (i32, i32) {
    %c0_i32 = arith.constant 0 : i32
    %c0_i32_0 = arith.constant 0 : i32
    %c0_i32_1 = arith.constant 0 : i32
    return %c0_i32, %c0_i32_0 : i32, i32
  }
  func.func @transform_2(%arg0: i32) -> (i32, i32) {
    %c0_i32 = arith.constant 0 : i32
    %c0_i32_0 = arith.constant 0 : i32
    %c0_i32_1 = arith.constant 0 : i32
    return %c0_i32, %c0_i32_0 : i32, i32
  }
  func.func @transform_3(%arg0: i32) -> (i32, i32) {
    %c0_i32 = arith.constant 0 : i32
    %c0_i32_0 = arith.constant 0 : i32
    %c0_i32_1 = arith.constant 0 : i32
    return %c0_i32, %c0_i32_0 : i32, i32
  }
  func.func @transform_4(%arg0: i32) -> (i32, i32) {
    %c0_i32 = arith.constant 0 : i32
    %c0_i32_0 = arith.constant 0 : i32
    %c0_i32_1 = arith.constant 0 : i32
    return %c0_i32, %c0_i32_0 : i32, i32
  }
  func.func @transform_5(%arg0: i32) -> (i32, i32) {
    %c0_i32 = arith.constant 0 : i32
    %c0_i32_0 = arith.constant 0 : i32
    %c0_i32_1 = arith.constant 0 : i32
    return %c0_i32, %c0_i32_0 : i32, i32
  }
  func.func @transform_6(%arg0: i32) -> (i32, i32) {
    %c0_i32 = arith.constant 0 : i32
    %c0_i32_0 = arith.constant 0 : i32
    %c0_i32_1 = arith.constant 0 : i32
    return %c0_i32, %c0_i32_0 : i32, i32
  }
  func.func @transform_7(%arg0: i32) -> (i32, i32) {
    %c0_i32 = arith.constant 0 : i32
    %c0_i32_0 = arith.constant 0 : i32
    %c0_i32_1 = arith.constant 0 : i32
    return %c0_i32, %c0_i32_0 : i32, i32
  }
  func.func @transform_8(%arg0: i32) -> (i32, i32) {
    %c0_i32 = arith.constant 0 : i32
    %c0_i32_0 = arith.constant 0 : i32
    %c0_i32_1 = arith.constant 0 : i32
    return %c0_i32, %c0_i32_0 : i32, i32
  }
  func.func @transform_9(%arg0: i32) -> (i32, i32) {
    %c0_i32 = arith.constant 0 : i32
    %c0_i32_0 = arith.constant 0 : i32
    %c0_i32_1 = arith.constant 0 : i32
    return %c0_i32, %c0_i32_0 : i32, i32
  }
  func.func @transform_10(%arg0: i32) -> (i32, i32) {
    %c0_i32 = arith.constant 0 : i32
    %c0_i32_0 = arith.constant 0 : i32
    %c0_i32_1 = arith.constant 0 : i32
    return %c0_i32, %c0_i32_0 : i32, i32
  }
  func.func @transform_11(%arg0: i32) -> (i32, i32) {
    %c0_i32 = arith.constant 0 : i32
    %c0_i32_0 = arith.constant 0 : i32
    %c0_i32_1 = arith.constant 0 : i32
    return %c0_i32, %c0_i32_0 : i32, i32
  }
  func.func @transform_12(%arg0: i32) -> (i32, i32, i32) {
    %c0_i32 = arith.constant 0 : i32
    %c0_i32_0 = arith.constant 0 : i32
    %c0_i32_1 = arith.constant 0 : i32
    return %arg0, %c0_i32, %c0_i32_0 : i32, i32, i32
  }
}

</mosaic_0001>

<llo_original>
// kernel: resnet_block.1
$region0: #{resnet_block.1}
  #allocation0 [shape = 'u32[]', space=smem, size = 0x4, offset = 0x4, fixed_abs, tag = 'smem constant byte address 0x4 - core index']
  #allocation1 [shape = 'u32[72,128]{1,0:T(1,128)}', space=vmem, size = 0x9000, scoped, tag = 'internal scratch']
  #allocation2 [shape = 'f32[18,18,4]{2,1,0:T(8,128)}', space=vmem, size = 0x36000, scoped, tag = 'scratch operand']
  #allocation3 [shape = 'f32[18,18,32]{2,1,0:T(8,128)}', space=vmem, size = 0x36000, scoped, tag = 'scratch operand']
  #allocation4 [shape = 'f32[256,36]{1,0:T(8,128)}', space=vmem, size = 0x20000, scoped, tag = 'scratch operand']
  #allocation5 [shape = 'f32[256,288]{1,0:T(8,128)}', space=vmem, size = 0x60000, scoped, tag = 'scratch operand']
  %s0 = inlined_call_operand.vmem [shape: f32[2,16,16,4], index: 0, kind: input, shape index: {}]
  %s1 = inlined_call_operand.vmem [shape: f32[1,128], index: 1, kind: input, shape index: {}]
  %s2 = inlined_call_operand.vmem [shape: f32[36,32], index: 2, kind: input, shape index: {}]
  %s3 = inlined_call_operand.vmem [shape: f32[1,32], index: 3, kind: input, shape index: {}]
  %s4 = inlined_call_operand.vmem [shape: f32[1,4], index: 4, kind: input, shape index: {}]
  %s5 = inlined_call_operand.vmem [shape: f32[1,4], index: 5, kind: input, shape index: {}]
  %s6 = inlined_call_operand.vmem [shape: f32[288,32], index: 6, kind: input, shape index: {}]
  %s7 = inlined_call_operand.vmem [shape: f32[1,32], index: 7, kind: input, shape index: {}]
  %s8 = inlined_call_operand.vmem [shape: f32[4,32], index: 8, kind: input, shape index: {}]
  %s9 = inlined_call_operand.vmem [shape: f32[1,32], index: 9, kind: input, shape index: {}]
  %s10 = inlined_call_operand.vmem [shape: f32[32,4], index: 10, kind: input, shape index: {}]
  %s11 = inlined_call_operand.vmem [shape: f32[4,32], index: 11, kind: input, shape index: {}]
  %s12 = inlined_call_operand.vmem [shape: f32[2,32,256], index: 12, kind: output, shape index: {}]
  %s13 = sld [smem:[#allocation0]]
  $region81: #{resnet_block.1} parent=0
    _
  %s15 = ssub.s32 1, %s13
  %s16 = scalar_select 0, %s15, %s13
  loop: start=0, step=1, limit=4
  $region2: #{resnet_block.1} parent=0 // loop_pre_header
    _
  $region3: #{resnet_block.1} parent=0 // loop_header
    %s18 = sphi 0, %s22
    %p19 = scmp.ge.s32.totalorder %s18, 4
    %s28 = sphi 0, %s30
    %s31 = sphi 0, %s28
    %s32 = sphi 0, %s31
    %s48 = sphi 0, %s32
    %s52 = sphi 0, %s52
    %s54 = sphi 0, %s52
    %s55 = sphi 0, %s54
    %s69 = sphi 0, %s55
    %s73 = sphi 0, %s73
    %s75 = sphi 0, %s73
    %s76 = sphi 0, %s75
    %s90 = sphi 0, %s76
    %s94 = sphi 0, %s94
    %s96 = sphi 0, %s94
    %s97 = sphi 0, %s96
    %s111 = sphi 0, %s97
    %s115 = sphi 0, %s115
    %s117 = sphi 0, %s115
    %s118 = sphi 0, %s117
    %s132 = sphi 0, %s118
    %s136 = sphi 0, %s136
    %s138 = sphi 0, %s136
    %s139 = sphi 0, %s138
    %s153 = sphi 0, %s139
    %s157 = sphi 0, %s157
    %s159 = sphi 0, %s157
    %s160 = sphi 0, %s159
    %s174 = sphi 0, %s160
    %s178 = sphi 0, %s178
    %s180 = sphi 0, %s178
    %s181 = sphi 0, %s180
    %s195 = sphi 0, %s181
    %s199 = sphi 0, %s199
    %s201 = sphi 0, %s199
    %s202 = sphi 0, %s201
    %s216 = sphi 0, %s202
    %s220 = sphi 0, %s220
    %s222 = sphi 0, %s220
    %s223 = sphi 0, %s222
    %s237 = sphi 0, %s223
    %s241 = sphi 0, %s241
    %s243 = sphi 0, %s241
    %s244 = sphi 0, %s243
    %s258 = sphi 0, %s244
    %s262 = sphi 0, %s262
    %s264 = sphi 0, %s262
    %s265 = sphi 0, %s264
    %s279 = sphi 0, %s265
    %s285 = sphi 0, %s287
    %s288 = sphi 0, %s285
    %s289 = sphi 0, %s288
    %s305 = sphi 0, %s289
  $region4: #{resnet_block.1} parent=0 // loop_header_branch
    %21 = sbr.rel (%p19) target = $region8
  $region5: #{resnet_block.1} parent=0 // loop_body
    %s23 = ssub.s32 %s18, 1
    %s24 = ssub.s32 %s18, 2
    %s25 = sadd.s32 %s18, 1
    %s26 = ssub.s32 %s18, %s25
    %p27 = scmp.eq.s32.totalorder %s26, 0
    %s29 = sadd.s32 %s28, 1
    %s30 = scalar_select %p27, %s28, %s29
    %p33 = pneg %p27
    %p34 = scmp.eq.s32.totalorder %s18, 1
    %p35 = por %p33, %p34
    %p36 = scmp.ne.s32.totalorder %s28, %s31
    %p37 = scmp.eq.s32.totalorder %s18, 0
    %p38 = por %p36, %p37
    %p39 = scmp.ne.s32.totalorder %s28, %s31
    %p40 = scmp.eq.s32.totalorder %s23, 1
    %p41 = por %p39, %p40
    %p42 = scmp.ne.s32.totalorder %s31, %s32
    %p43 = scmp.eq.s32.totalorder %s23, 0
    %p44 = por %p42, %p43
    %p45 = scmp.ne.s32.totalorder %s31, %s32
    %p46 = scmp.eq.s32.totalorder %s24, 1
    %p47 = por %p45, %p46
    %p49 = scmp.ne.s32.totalorder %s32, %s48
    %p50 = scmp.eq.s32.totalorder %s24, 0
    %p51 = por %p49, %p50
    %s53 = sadd.s32 %s52, 1
    %p56 = scmp.eq.s32.totalorder %s18, 1
    %p57 = scmp.ne.s32.totalorder %s52, %s54
    %p58 = scmp.eq.s32.totalorder %s18, 0
    %p59 = por %p57, %p58
    %p60 = scmp.ne.s32.totalorder %s52, %s54
    %p61 = scmp.eq.s32.totalorder %s23, 1
    %p62 = por %p60, %p61
    %p63 = scmp.ne.s32.totalorder %s54, %s55
    %p64 = scmp.eq.s32.totalorder %s23, 0
    %p65 = por %p63, %p64
    %p66 = scmp.ne.s32.totalorder %s54, %s55
    %p67 = scmp.eq.s32.totalorder %s24, 1
    %p68 = por %p66, %p67
    %p70 = scmp.ne.s32.totalorder %s55, %s69
    %p71 = scmp.eq.s32.totalorder %s24, 0
    %p72 = por %p70, %p71
    %s74 = sadd.s32 %s73, 1
    %p77 = scmp.eq.s32.totalorder %s18, 1
    %p78 = scmp.ne.s32.totalorder %s73, %s75
    %p79 = scmp.eq.s32.totalorder %s18, 0
    %p80 = por %p78, %p79
    %p81 = scmp.ne.s32.totalorder %s73, %s75
    %p82 = scmp.eq.s32.totalorder %s23, 1
    %p83 = por %p81, %p82
    %p84 = scmp.ne.s32.totalorder %s75, %s76
    %p85 = scmp.eq.s32.totalorder %s23, 0
    %p86 = por %p84, %p85
    %p87 = scmp.ne.s32.totalorder %s75, %s76
    %p88 = scmp.eq.s32.totalorder %s24, 1
    %p89 = por %p87, %p88
    %p91 = scmp.ne.s32.totalorder %s76, %s90
    %p92 = scmp.eq.s32.totalorder %s24, 0
    %p93 = por %p91, %p92
    %s95 = sadd.s32 %s94, 1
    %p98 = scmp.eq.s32.totalorder %s18, 1
    %p99 = scmp.ne.s32.totalorder %s94, %s96
    %p100 = scmp.eq.s32.totalorder %s18, 0
    %p101 = por %p99, %p100
    %p102 = scmp.ne.s32.totalorder %s94, %s96
    %p103 = scmp.eq.s32.totalorder %s23, 1
    %p104 = por %p102, %p103
    %p105 = scmp.ne.s32.totalorder %s96, %s97
    %p106 = scmp.eq.s32.totalorder %s23, 0
    %p107 = por %p105, %p106
    %p108 = scmp.ne.s32.totalorder %s96, %s97
    %p109 = scmp.eq.s32.totalorder %s24, 1
    %p110 = por %p108, %p109
    %p112 = scmp.ne.s32.totalorder %s97, %s111
    %p113 = scmp.eq.s32.totalorder %s24, 0
    %p114 = por %p112, %p113
    %s116 = sadd.s32 %s115, 1
    %p119 = scmp.eq.s32.totalorder %s18, 1
    %p120 = scmp.ne.s32.totalorder %s115, %s117
    %p121 = scmp.eq.s32.totalorder %s18, 0
    %p122 = por %p120, %p121
    %p123 = scmp.ne.s32.totalorder %s115, %s117
    %p124 = scmp.eq.s32.totalorder %s23, 1
    %p125 = por %p123, %p124
    %p126 = scmp.ne.s32.totalorder %s117, %s118
    %p127 = scmp.eq.s32.totalorder %s23, 0
    %p128 = por %p126, %p127
    %p129 = scmp.ne.s32.totalorder %s117, %s118
    %p130 = scmp.eq.s32.totalorder %s24, 1
    %p131 = por %p129, %p130
    %p133 = scmp.ne.s32.totalorder %s118, %s132
    %p134 = scmp.eq.s32.totalorder %s24, 0
    %p135 = por %p133, %p134
    %s137 = sadd.s32 %s136, 1
    %p140 = scmp.eq.s32.totalorder %s18, 1
    %p141 = scmp.ne.s32.totalorder %s136, %s138
    %p142 = scmp.eq.s32.totalorder %s18, 0
    %p143 = por %p141, %p142
    %p144 = scmp.ne.s32.totalorder %s136, %s138
    %p145 = scmp.eq.s32.totalorder %s23, 1
    %p146 = por %p144, %p145
    %p147 = scmp.ne.s32.totalorder %s138, %s139
    %p148 = scmp.eq.s32.totalorder %s23, 0
    %p149 = por %p147, %p148
    %p150 = scmp.ne.s32.totalorder %s138, %s139
    %p151 = scmp.eq.s32.totalorder %s24, 1
    %p152 = por %p150, %p151
    %p154 = scmp.ne.s32.totalorder %s139, %s153
    %p155 = scmp.eq.s32.totalorder %s24, 0
    %p156 = por %p154, %p155
    %s158 = sadd.s32 %s157, 1
    %p161 = scmp.eq.s32.totalorder %s18, 1
    %p162 = scmp.ne.s32.totalorder %s157, %s159
    %p163 = scmp.eq.s32.totalorder %s18, 0
    %p164 = por %p162, %p163
    %p165 = scmp.ne.s32.totalorder %s157, %s159
    %p166 = scmp.eq.s32.totalorder %s23, 1
    %p167 = por %p165, %p166
    %p168 = scmp.ne.s32.totalorder %s159, %s160
    %p169 = scmp.eq.s32.totalorder %s23, 0
    %p170 = por %p168, %p169
    %p171 = scmp.ne.s32.totalorder %s159, %s160
    %p172 = scmp.eq.s32.totalorder %s24, 1
    %p173 = por %p171, %p172
    %p175 = scmp.ne.s32.totalorder %s160, %s174
    %p176 = scmp.eq.s32.totalorder %s24, 0
    %p177 = por %p175, %p176
    %s179 = sadd.s32 %s178, 1
    %p182 = scmp.eq.s32.totalorder %s18, 1
    %p183 = scmp.ne.s32.totalorder %s178, %s180
    %p184 = scmp.eq.s32.totalorder %s18, 0
    %p185 = por %p183, %p184
    %p186 = scmp.ne.s32.totalorder %s178, %s180
    %p187 = scmp.eq.s32.totalorder %s23, 1
    %p188 = por %p186, %p187
    %p189 = scmp.ne.s32.totalorder %s180, %s181
    %p190 = scmp.eq.s32.totalorder %s23, 0
    %p191 = por %p189, %p190
    %p192 = scmp.ne.s32.totalorder %s180, %s181
    %p193 = scmp.eq.s32.totalorder %s24, 1
    %p194 = por %p192, %p193
    %p196 = scmp.ne.s32.totalorder %s181, %s195
    %p197 = scmp.eq.s32.totalorder %s24, 0
    %p198 = por %p196, %p197
    %s200 = sadd.s32 %s199, 1
    %p203 = scmp.eq.s32.totalorder %s18, 1
    %p204 = scmp.ne.s32.totalorder %s199, %s201
    %p205 = scmp.eq.s32.totalorder %s18, 0
    %p206 = por %p204, %p205
    %p207 = scmp.ne.s32.totalorder %s199, %s201
    %p208 = scmp.eq.s32.totalorder %s23, 1
    %p209 = por %p207, %p208
    %p210 = scmp.ne.s32.totalorder %s201, %s202
    %p211 = scmp.eq.s32.totalorder %s23, 0
    %p212 = por %p210, %p211
    %p213 = scmp.ne.s32.totalorder %s201, %s202
    %p214 = scmp.eq.s32.totalorder %s24, 1
    %p215 = por %p213, %p214
    %p217 = scmp.ne.s32.totalorder %s202, %s216
    %p218 = scmp.eq.s32.totalorder %s24, 0
    %p219 = por %p217, %p218
    %s221 = sadd.s32 %s220, 1
    %p224 = scmp.eq.s32.totalorder %s18, 1
    %p225 = scmp.ne.s32.totalorder %s220, %s222
    %p226 = scmp.eq.s32.totalorder %s18, 0
    %p227 = por %p225, %p226
    %p228 = scmp.ne.s32.totalorder %s220, %s222
    %p229 = scmp.eq.s32.totalorder %s23, 1
    %p230 = por %p228, %p229
    %p231 = scmp.ne.s32.totalorder %s222, %s223
    %p232 = scmp.eq.s32.totalorder %s23, 0
    %p233 = por %p231, %p232
    %p234 = scmp.ne.s32.totalorder %s222, %s223
    %p235 = scmp.eq.s32.totalorder %s24, 1
    %p236 = por %p234, %p235
    %p238 = scmp.ne.s32.totalorder %s223, %s237
    %p239 = scmp.eq.s32.totalorder %s24, 0
    %p240 = por %p238, %p239
    %s242 = sadd.s32 %s241, 1
    %p245 = scmp.eq.s32.totalorder %s18, 1
    %p246 = scmp.ne.s32.totalorder %s241, %s243
    %p247 = scmp.eq.s32.totalorder %s18, 0
    %p248 = por %p246, %p247
    %p249 = scmp.ne.s32.totalorder %s241, %s243
    %p250 = scmp.eq.s32.totalorder %s23, 1
    %p251 = por %p249, %p250
    %p252 = scmp.ne.s32.totalorder %s243, %s244
    %p253 = scmp.eq.s32.totalorder %s23, 0
    %p254 = por %p252, %p253
    %p255 = scmp.ne.s32.totalorder %s243, %s244
    %p256 = scmp.eq.s32.totalorder %s24, 1
    %p257 = por %p255, %p256
    %p259 = scmp.ne.s32.totalorder %s244, %s258
    %p260 = scmp.eq.s32.totalorder %s24, 0
    %p261 = por %p259, %p260
    %s263 = sadd.s32 %s262, 1
    %p266 = scmp.eq.s32.totalorder %s18, 1
    %p267 = scmp.ne.s32.totalorder %s262, %s264
    %p268 = scmp.eq.s32.totalorder %s18, 0
    %p269 = por %p267, %p268
    %p270 = scmp.ne.s32.totalorder %s262, %s264
    %p271 = scmp.eq.s32.totalorder %s23, 1
    %p272 = por %p270, %p271
    %p273 = scmp.ne.s32.totalorder %s264, %s265
    %p274 = scmp.eq.s32.totalorder %s23, 0
    %p275 = por %p273, %p274
    %p276 = scmp.ne.s32.totalorder %s264, %s265
    %p277 = scmp.eq.s32.totalorder %s24, 1
    %p278 = por %p276, %p277
    %p280 = scmp.ne.s32.totalorder %s265, %s279
    %p281 = scmp.eq.s32.totalorder %s24, 0
    %p282 = por %p280, %p281
    %s283 = ssub.s32 %s18, %s25
    %p284 = scmp.eq.s32.totalorder %s283, 0
    %s286 = sadd.s32 %s285, 1
    %s287 = scalar_select %p284, %s285, %s286
    %p290 = pneg %p284
    %p291 = scmp.eq.s32.totalorder %s18, 1
    %p292 = por %p290, %p291
    %p293 = scmp.ne.s32.totalorder %s285, %s288
    %p294 = scmp.eq.s32.totalorder %s18, 0
    %p295 = por %p293, %p294
    %p296 = scmp.ne.s32.totalorder %s285, %s288
    %p297 = scmp.eq.s32.totalorder %s23, 1
    %p298 = por %p296, %p297
    %p299 = scmp.ne.s32.totalorder %s288, %s289
    %p300 = scmp.eq.s32.totalorder %s23, 0
    %p301 = por %p299, %p300
    %p302 = scmp.ne.s32.totalorder %s288, %s289
    %p303 = scmp.eq.s32.totalorder %s24, 1
    %p304 = por %p302, %p303
    %p306 = scmp.ne.s32.totalorder %s289, %s305
    %p307 = scmp.eq.s32.totalorder %s24, 0
    %p308 = por %p306, %p307
    %p309 = scmp.le.s32.totalorder 1, %s18
    %p310 = scmp.lt.s32.totalorder %s18, 3
    %p311 = pnand %p309, %p310
    %p312 = pneg %p311
    // Predicated region
    $region9: #{resnet_block.1} parent=5 // pred_check
      _
    $region10: #{resnet_block.1} parent=5 // pred_check_branch
      %314 = sbr.rel (%p311) target = $region12
    $region11: #{resnet_block.1} parent=5 // pred_region
      %s315 = ssub.s32 %s18, 1
      // Predicated region
      $region13: #{resnet_block.1} parent=11 // pred_check
        %p316 = pneg %p65
      $region14: #{resnet_block.1} parent=11 // pred_check_branch
        %318 = sbr.rel (%p316) target = $region16
      $region15: #{resnet_block.1} parent=11 // pred_region
        _
      $region16: #{resnet_block.1} parent=11 // pred_fallthru
        _
      // Predicated region
      $region17: #{resnet_block.1} parent=11 // pred_check
        %p319 = pneg %p86
      $region18: #{resnet_block.1} parent=11 // pred_check_branch
        %321 = sbr.rel (%p319) target = $region20
      $region19: #{resnet_block.1} parent=11 // pred_region
        _
      $region20: #{resnet_block.1} parent=11 // pred_fallthru
        _
      // Predicated region
      $region21: #{resnet_block.1} parent=11 // pred_check
        %p322 = pneg %p107
      $region22: #{resnet_block.1} parent=11 // pred_check_branch
        %324 = sbr.rel (%p322) target = $region24
      $region23: #{resnet_block.1} parent=11 // pred_region
        _
      $region24: #{resnet_block.1} parent=11 // pred_fallthru
        _
      // Predicated region
      $region25: #{resnet_block.1} parent=11 // pred_check
        %p325 = pneg %p128
      $region26: #{resnet_block.1} parent=11 // pred_check_branch
        %327 = sbr.rel (%p325) target = $region28
      $region27: #{resnet_block.1} parent=11 // pred_region
        _
      $region28: #{resnet_block.1} parent=11 // pred_fallthru
        _
      // Predicated region
      $region29: #{resnet_block.1} parent=11 // pred_check
        %p328 = pneg %p149
      $region30: #{resnet_block.1} parent=11 // pred_check_branch
        %330 = sbr.rel (%p328) target = $region32
      $region31: #{resnet_block.1} parent=11 // pred_region
        _
      $region32: #{resnet_block.1} parent=11 // pred_fallthru
        _
      // Predicated region
      $region33: #{resnet_block.1} parent=11 // pred_check
        %p331 = pneg %p170
      $region34: #{resnet_block.1} parent=11 // pred_check_branch
        %333 = sbr.rel (%p331) target = $region36
      $region35: #{resnet_block.1} parent=11 // pred_region
        _
      $region36: #{resnet_block.1} parent=11 // pred_fallthru
        _
      // Predicated region
      $region37: #{resnet_block.1} parent=11 // pred_check
        %p334 = pneg %p191
      $region38: #{resnet_block.1} parent=11 // pred_check_branch
        %336 = sbr.rel (%p334) target = $region40
      $region39: #{resnet_block.1} parent=11 // pred_region
        _
      $region40: #{resnet_block.1} parent=11 // pred_fallthru
        _
      // Predicated region
      $region41: #{resnet_block.1} parent=11 // pred_check
        %p337 = pneg %p212
      $region42: #{resnet_block.1} parent=11 // pred_check_branch
        %339 = sbr.rel (%p337) target = $region44
      $region43: #{resnet_block.1} parent=11 // pred_region
        _
      $region44: #{resnet_block.1} parent=11 // pred_fallthru
        _
      // Predicated region
      $region45: #{resnet_block.1} parent=11 // pred_check
        %p340 = pneg %p233
      $region46: #{resnet_block.1} parent=11 // pred_check_branch
        %342 = sbr.rel (%p340) target = $region48
      $region47: #{resnet_block.1} parent=11 // pred_region
        _
      $region48: #{resnet_block.1} parent=11 // pred_fallthru
        _
      // Predicated region
      $region49: #{resnet_block.1} parent=11 // pred_check
        %p343 = pneg %p254
      $region50: #{resnet_block.1} parent=11 // pred_check_branch
        %345 = sbr.rel (%p343) target = $region52
      $region51: #{resnet_block.1} parent=11 // pred_region
        _
      $region52: #{resnet_block.1} parent=11 // pred_fallthru
        _
      // Predicated region
      $region53: #{resnet_block.1} parent=11 // pred_check
        %p346 = pneg %p275
      $region54: #{resnet_block.1} parent=11 // pred_check_branch
        %348 = sbr.rel (%p346) target = $region56
      $region55: #{resnet_block.1} parent=11 // pred_region
        _
      $region56: #{resnet_block.1} parent=11 // pred_fallthru
        _
    $region12: #{resnet_block.1} parent=5 // pred_fallthru
      _
    %p349 = scmp.lt.s32.totalorder %s18, 2
    // Predicated region
    $region57: #{resnet_block.1} parent=5 // pred_check
      %p350 = pneg %p349
    $region58: #{resnet_block.1} parent=5 // pred_check_branch
      %352 = sbr.rel (%p350) target = $region60
    $region59: #{resnet_block.1} parent=5 // pred_region
      // Predicated region
      $region61: #{resnet_block.1} parent=59 // pred_check
        %p353 = pneg %p38
      $region62: #{resnet_block.1} parent=59 // pred_check_branch
        %355 = sbr.rel (%p353) target = $region64
      $region63: #{resnet_block.1} parent=59 // pred_region
        %p356 = scmp.lt.s32.totalorder %s18, 1
        %s357 = scalar_select %p356, %s18, 1
        %s358 = smul.addr %s357, 32
        %s359 = smul.addr %s358, 8
        %s360 = scalar_lea.vmem %s0, %s359
      $region64: #{resnet_block.1} parent=59 // pred_fallthru
        _
    $region60: #{resnet_block.1} parent=5 // pred_fallthru
      _
    %p361 = scmp.le.s32.totalorder 1, %s18
    %p362 = scmp.lt.s32.totalorder %s18, 3
    %p363 = pnand %p361, %p362
    %p364 = pneg %p363
    // Predicated region
    $region65: #{resnet_block.1} parent=5 // pred_check
      _
    $region66: #{resnet_block.1} parent=5 // pred_check_branch
      %366 = sbr.rel (%p363) target = $region68
    $region67: #{resnet_block.1} parent=5 // pred_region
      %s367 = ssub.s32 %s18, 1
      %p368 = scmp.lt.s32.totalorder %s23, 1
      %s369 = scalar_select %p368, %s23, 1
      %s370 = smul.addr %s369, 32
      %s371 = smul.addr %s370, 8
      %s372 = scalar_lea.vmem %s0, %s371
      %p373 = pneg %p44
      %p374 = pneg %p41
      %p375 = pneg %p65
      %p376 = pneg %p62
      %p377 = pneg %p86
      %p378 = pneg %p83
      %p379 = pneg %p107
      %p380 = pneg %p104
      %p381 = pneg %p128
      %p382 = pneg %p125
      %p383 = pneg %p149
      %p384 = pneg %p146
      %p385 = pneg %p170
      %p386 = pneg %p167
      %p387 = pneg %p191
      %p388 = pneg %p188
      %p389 = pneg %p212
      %p390 = pneg %p209
      %p391 = pneg %p233
      %p392 = pneg %p230
      %p393 = pneg %p254
      %p394 = pneg %p251
      %p395 = pneg %p275
      %p396 = pneg %p272
      %p397 = pneg %p301
      %p398 = pneg %p298
      %p399 = scmp.lt.s32.totalorder %s23, 1
      %s400 = scalar_select %p399, %s23, 1
      %s401 = smul.addr %s400, 8
      %s402 = smul.addr %s401, 8
      %s403 = scalar_lea.vmem %s12, %s402
      %p404 = scmp.lt.s32.totalorder %s23, 1
      %s405 = scalar_select %p404, %s23, 1
      %s406 = smul.addr %s405, 32
      %s407 = smul.addr %s406, 8
      %s408 = scalar_lea.vmem %s0, %s407
      %p409 = scmp.lt.s32.totalorder %s23, 1
      %s410 = scalar_select %p409, %s23, 1
      %s411 = smul.addr %s410, 8
      %s412 = smul.addr %s411, 8
      %s413 = scalar_lea.vmem %s12, %s412
      %v414 = vld [vmem:[%s408] sm:$0xff]
      %v415 = vld [vmem:[%s408 + $0x8] sm:$0xff]
      %v416 = vld [vmem:[%s408 + $0x10] sm:$0xff]
      %v417 = vld [vmem:[%s408 + $0x18] sm:$0xff]
      %v418 = vld [vmem:[%s408 + $0x20] sm:$0xff]
      %v419 = vld [vmem:[%s408 + $0x28] sm:$0xff]
      %v420 = vld [vmem:[%s408 + $0x30] sm:$0xff]
      %v421 = vld [vmem:[%s408 + $0x38] sm:$0xff]
      %v422 = vld [vmem:[%s408 + $0x40] sm:$0xff]
      %v423 = vld [vmem:[%s408 + $0x48] sm:$0xff]
      %v424 = vld [vmem:[%s408 + $0x50] sm:$0xff]
      %v425 = vld [vmem:[%s408 + $0x58] sm:$0xff]
      %v426 = vld [vmem:[%s408 + $0x60] sm:$0xff]
      %v427 = vld [vmem:[%s408 + $0x68] sm:$0xff]
      %v428 = vld [vmem:[%s408 + $0x70] sm:$0xff]
      %v429 = vld [vmem:[%s408 + $0x78] sm:$0xff]
      %v430 = vld [vmem:[%s408 + $0x80] sm:$0xff]
      %v431 = vld [vmem:[%s408 + $0x88] sm:$0xff]
      %v432 = vld [vmem:[%s408 + $0x90] sm:$0xff]
      %v433 = vld [vmem:[%s408 + $0x98] sm:$0xff]
      %v434 = vld [vmem:[%s408 + $0xa0] sm:$0xff]
      %v435 = vld [vmem:[%s408 + $0xa8] sm:$0xff]
      %v436 = vld [vmem:[%s408 + $0xb0] sm:$0xff]
      %v437 = vld [vmem:[%s408 + $0xb8] sm:$0xff]
      %v438 = vld [vmem:[%s408 + $0xc0] sm:$0xff]
      %v439 = vld [vmem:[%s408 + $0xc8] sm:$0xff]
      %v440 = vld [vmem:[%s408 + $0xd0] sm:$0xff]
      %v441 = vld [vmem:[%s408 + $0xd8] sm:$0xff]
      %v442 = vld [vmem:[%s408 + $0xe0] sm:$0xff]
      %v443 = vld [vmem:[%s408 + $0xe8] sm:$0xff]
      %v444 = vld [vmem:[%s408 + $0xf0] sm:$0xff]
      %v445 = vld [vmem:[%s408 + $0xf8] sm:$0xff]
      %v446 = vld [vmem:[%s4] sm:$0x1]
      %v448 = vperm.slane %v446, 0
      %v450 = vmul.f32 %v414, %v448
      %v451 = vmul.f32 %v415, %v448
      %v452 = vmul.f32 %v416, %v448
      %v453 = vmul.f32 %v417, %v448
      %v454 = vmul.f32 %v418, %v448
      %v455 = vmul.f32 %v419, %v448
      %v456 = vmul.f32 %v420, %v448
      %v457 = vmul.f32 %v421, %v448
      %v458 = vmul.f32 %v422, %v448
      %v459 = vmul.f32 %v423, %v448
      %v460 = vmul.f32 %v424, %v448
      %v461 = vmul.f32 %v425, %v448
      %v462 = vmul.f32 %v426, %v448
      %v463 = vmul.f32 %v427, %v448
      %v464 = vmul.f32 %v428, %v448
      %v465 = vmul.f32 %v429, %v448
      %v466 = vmul.f32 %v430, %v448
      %v467 = vmul.f32 %v431, %v448
      %v468 = vmul.f32 %v432, %v448
      %v469 = vmul.f32 %v433, %v448
      %v470 = vmul.f32 %v434, %v448
      %v471 = vmul.f32 %v435, %v448
      %v472 = vmul.f32 %v436, %v448
      %v473 = vmul.f32 %v437, %v448
      %v474 = vmul.f32 %v438, %v448
      %v475 = vmul.f32 %v439, %v448
      %v476 = vmul.f32 %v440, %v448
      %v477 = vmul.f32 %v441, %v448
      %v478 = vmul.f32 %v442, %v448
      %v479 = vmul.f32 %v443, %v448
      %v480 = vmul.f32 %v444, %v448
      %v481 = vmul.f32 %v445, %v448
      %v482 = vld [vmem:[%s5] sm:$0x1]
      %v484 = vperm.slane %v482, 0
      %v486 = vadd.f32 %v450, %v484
      %v487 = vadd.f32 %v451, %v484
      %v488 = vadd.f32 %v452, %v484
      %v489 = vadd.f32 %v453, %v484
      %v490 = vadd.f32 %v454, %v484
      %v491 = vadd.f32 %v455, %v484
      %v492 = vadd.f32 %v456, %v484
      %v493 = vadd.f32 %v457, %v484
      %v494 = vadd.f32 %v458, %v484
      %v495 = vadd.f32 %v459, %v484
      %v496 = vadd.f32 %v460, %v484
      %v497 = vadd.f32 %v461, %v484
      %v498 = vadd.f32 %v462, %v484
      %v499 = vadd.f32 %v463, %v484
      %v500 = vadd.f32 %v464, %v484
      %v501 = vadd.f32 %v465, %v484
      %v502 = vadd.f32 %v466, %v484
      %v503 = vadd.f32 %v467, %v484
      %v504 = vadd.f32 %v468, %v484
      %v505 = vadd.f32 %v469, %v484
      %v506 = vadd.f32 %v470, %v484
      %v507 = vadd.f32 %v471, %v484
      %v508 = vadd.f32 %v472, %v484
      %v509 = vadd.f32 %v473, %v484
      %v510 = vadd.f32 %v474, %v484
      %v511 = vadd.f32 %v475, %v484
      %v512 = vadd.f32 %v476, %v484
      %v513 = vadd.f32 %v477, %v484
      %v514 = vadd.f32 %v478, %v484
      %v515 = vadd.f32 %v479, %v484
      %v516 = vadd.f32 %v480, %v484
      %v517 = vadd.f32 %v481, %v484
      %v518 = vmax.f32 %v486, 0.0
      %v519 = vmax.f32 %v487, 0.0
      %v520 = vmax.f32 %v488, 0.0
      %v521 = vmax.f32 %v489, 0.0
      %v522 = vmax.f32 %v490, 0.0
      %v523 = vmax.f32 %v491, 0.0
      %v524 = vmax.f32 %v492, 0.0
      %v525 = vmax.f32 %v493, 0.0
      %v526 = vmax.f32 %v494, 0.0
      %v527 = vmax.f32 %v495, 0.0
      %v528 = vmax.f32 %v496, 0.0
      %v529 = vmax.f32 %v497, 0.0
      %v530 = vmax.f32 %v498, 0.0
      %v531 = vmax.f32 %v499, 0.0
      %v532 = vmax.f32 %v500, 0.0
      %v533 = vmax.f32 %v501, 0.0
      %v534 = vmax.f32 %v502, 0.0
      %v535 = vmax.f32 %v503, 0.0
      %v536 = vmax.f32 %v504, 0.0
      %v537 = vmax.f32 %v505, 0.0
      %v538 = vmax.f32 %v506, 0.0
      %v539 = vmax.f32 %v507, 0.0
      %v540 = vmax.f32 %v508, 0.0
      %v541 = vmax.f32 %v509, 0.0
      %v542 = vmax.f32 %v510, 0.0
      %v543 = vmax.f32 %v511, 0.0
      %v544 = vmax.f32 %v512, 0.0
      %v545 = vmax.f32 %v513, 0.0
      %v546 = vmax.f32 %v514, 0.0
      %v547 = vmax.f32 %v515, 0.0
      %v548 = vmax.f32 %v516, 0.0
      %v549 = vmax.f32 %v517, 0.0
      %vm550 = vcmask 31744
      %551 = vst.msk [vmem:[#allocation2] sm:$0xff] %vm550, 0.0
      %552 = vst.msk [vmem:[#allocation2 + $0x8] sm:$0xff] %vm550, 0.0
      %vm553 = vcmask 25600
      %554 = vst.msk [vmem:[#allocation2 + $0x10] sm:$0x3] %vm553, 0.0
      %555 = vst.msk [vmem:[#allocation2 + $0x18] sm:$0xff] %vm550, 0.0
      %556 = vst.msk [vmem:[#allocation2 + $0x20] sm:$0xff] %vm550, 0.0
      %557 = vst.msk [vmem:[#allocation2 + $0x28] sm:$0x3] %vm553, 0.0
      %558 = vst.msk [vmem:[#allocation2 + $0x30] sm:$0xff] %vm550, 0.0
      %559 = vst.msk [vmem:[#allocation2 + $0x38] sm:$0xff] %vm550, 0.0
      %560 = vst.msk [vmem:[#allocation2 + $0x40] sm:$0x3] %vm553, 0.0
      %561 = vst.msk [vmem:[#allocation2 + $0x48] sm:$0xff] %vm550, 0.0
      %562 = vst.msk [vmem:[#allocation2 + $0x50] sm:$0xff] %vm550, 0.0
      %563 = vst.msk [vmem:[#allocation2 + $0x58] sm:$0x3] %vm553, 0.0
      %564 = vst.msk [vmem:[#allocation2 + $0x60] sm:$0xff] %vm550, 0.0
      %565 = vst.msk [vmem:[#allocation2 + $0x68] sm:$0xff] %vm550, 0.0
      %566 = vst.msk [vmem:[#allocation2 + $0x70] sm:$0x3] %vm553, 0.0
      %567 = vst.msk [vmem:[#allocation2 + $0x78] sm:$0xff] %vm550, 0.0
      %568 = vst.msk [vmem:[#allocation2 + $0x80] sm:$0xff] %vm550, 0.0
      %569 = vst.msk [vmem:[#allocation2 + $0x88] sm:$0x3] %vm553, 0.0
      %570 = vst.msk [vmem:[#allocation2 + $0x90] sm:$0xff] %vm550, 0.0
      %571 = vst.msk [vmem:[#allocation2 + $0x98] sm:$0xff] %vm550, 0.0
      %572 = vst.msk [vmem:[#allocation2 + $0xa0] sm:$0x3] %vm553, 0.0
      %573 = vst.msk [vmem:[#allocation2 + $0xa8] sm:$0xff] %vm550, 0.0
      %574 = vst.msk [vmem:[#allocation2 + $0xb0] sm:$0xff] %vm550, 0.0
      %575 = vst.msk [vmem:[#allocation2 + $0xb8] sm:$0x3] %vm553, 0.0
      %576 = vst.msk [vmem:[#allocation2 + $0xc0] sm:$0xff] %vm550, 0.0
      %577 = vst.msk [vmem:[#allocation2 + $0xc8] sm:$0xff] %vm550, 0.0
      %578 = vst.msk [vmem:[#allocation2 + $0xd0] sm:$0x3] %vm553, 0.0
      %579 = vst.msk [vmem:[#allocation2 + $0xd8] sm:$0xff] %vm550, 0.0
      %580 = vst.msk [vmem:[#allocation2 + $0xe0] sm:$0xff] %vm550, 0.0
      %581 = vst.msk [vmem:[#allocation2 + $0xe8] sm:$0x3] %vm553, 0.0
      %582 = vst.msk [vmem:[#allocation2 + $0xf0] sm:$0xff] %vm550, 0.0
      %583 = vst.msk [vmem:[#allocation2 + $0xf8] sm:$0xff] %vm550, 0.0
      %584 = vst.msk [vmem:[#allocation2 + $0x100] sm:$0x3] %vm553, 0.0
      %585 = vst.msk [vmem:[#allocation2 + $0x108] sm:$0xff] %vm550, 0.0
      %586 = vst.msk [vmem:[#allocation2 + $0x110] sm:$0xff] %vm550, 0.0
      %587 = vst.msk [vmem:[#allocation2 + $0x118] sm:$0x3] %vm553, 0.0
      %588 = vst.msk [vmem:[#allocation2 + $0x120] sm:$0xff] %vm550, 0.0
      %589 = vst.msk [vmem:[#allocation2 + $0x128] sm:$0xff] %vm550, 0.0
      %590 = vst.msk [vmem:[#allocation2 + $0x130] sm:$0x3] %vm553, 0.0
      %591 = vst.msk [vmem:[#allocation2 + $0x138] sm:$0xff] %vm550, 0.0
      %592 = vst.msk [vmem:[#allocation2 + $0x140] sm:$0xff] %vm550, 0.0
      %593 = vst.msk [vmem:[#allocation2 + $0x148] sm:$0x3] %vm553, 0.0
      %594 = vst.msk [vmem:[#allocation2 + $0x150] sm:$0xff] %vm550, 0.0
      %595 = vst.msk [vmem:[#allocation2 + $0x158] sm:$0xff] %vm550, 0.0
      %596 = vst.msk [vmem:[#allocation2 + $0x160] sm:$0x3] %vm553, 0.0
      %597 = vst.msk [vmem:[#allocation2 + $0x168] sm:$0xff] %vm550, 0.0
      %598 = vst.msk [vmem:[#allocation2 + $0x170] sm:$0xff] %vm550, 0.0
      %599 = vst.msk [vmem:[#allocation2 + $0x178] sm:$0x3] %vm553, 0.0
      %600 = vst.msk [vmem:[#allocation2 + $0x180] sm:$0xff] %vm550, 0.0
      %601 = vst.msk [vmem:[#allocation2 + $0x188] sm:$0xff] %vm550, 0.0
      %602 = vst.msk [vmem:[#allocation2 + $0x190] sm:$0x3] %vm553, 0.0
      %603 = vst.msk [vmem:[#allocation2 + $0x198] sm:$0xff] %vm550, 0.0
      %604 = vst.msk [vmem:[#allocation2 + $0x1a0] sm:$0xff] %vm550, 0.0
      %605 = vst.msk [vmem:[#allocation2 + $0x1a8] sm:$0x3] %vm553, 0.0
      %s606 = scalar_lea.vmem [#allocation2], 24
      %607 = vst.msk [vmem:[%s606 + $0x1] sm:$0xff] %vm550, %v518
      %608 = vst.msk [vmem:[%s606 + $0x9] sm:$0xff] %vm550, %v519
      %609 = vst.msk [vmem:[%s606 + $0x19] sm:$0xff] %vm550, %v520
      %610 = vst.msk [vmem:[%s606 + $0x21] sm:$0xff] %vm550, %v521
      %611 = vst.msk [vmem:[%s606 + $0x31] sm:$0xff] %vm550, %v522
      %612 = vst.msk [vmem:[%s606 + $0x39] sm:$0xff] %vm550, %v523
      %613 = vst.msk [vmem:[%s606 + $0x49] sm:$0xff] %vm550, %v524
      %614 = vst.msk [vmem:[%s606 + $0x51] sm:$0xff] %vm550, %v525
      %615 = vst.msk [vmem:[%s606 + $0x61] sm:$0xff] %vm550, %v526
      %616 = vst.msk [vmem:[%s606 + $0x69] sm:$0xff] %vm550, %v527
      %617 = vst.msk [vmem:[%s606 + $0x79] sm:$0xff] %vm550, %v528
      %618 = vst.msk [vmem:[%s606 + $0x81] sm:$0xff] %vm550, %v529
      %619 = vst.msk [vmem:[%s606 + $0x91] sm:$0xff] %vm550, %v530
      %620 = vst.msk [vmem:[%s606 + $0x99] sm:$0xff] %vm550, %v531
      %621 = vst.msk [vmem:[%s606 + $0xa9] sm:$0xff] %vm550, %v532
      %622 = vst.msk [vmem:[%s606 + $0xb1] sm:$0xff] %vm550, %v533
      %623 = vst.msk [vmem:[%s606 + $0xc1] sm:$0xff] %vm550, %v534
      %624 = vst.msk [vmem:[%s606 + $0xc9] sm:$0xff] %vm550, %v535
      %625 = vst.msk [vmem:[%s606 + $0xd9] sm:$0xff] %vm550, %v536
      %626 = vst.msk [vmem:[%s606 + $0xe1] sm:$0xff] %vm550, %v537
      %627 = vst.msk [vmem:[%s606 + $0xf1] sm:$0xff] %vm550, %v538
      %628 = vst.msk [vmem:[%s606 + $0xf9] sm:$0xff] %vm550, %v539
      %629 = vst.msk [vmem:[%s606 + $0x109] sm:$0xff] %vm550, %v540
      %630 = vst.msk [vmem:[%s606 + $0x111] sm:$0xff] %vm550, %v541
      %631 = vst.msk [vmem:[%s606 + $0x121] sm:$0xff] %vm550, %v542
      %632 = vst.msk [vmem:[%s606 + $0x129] sm:$0xff] %vm550, %v543
      %633 = vst.msk [vmem:[%s606 + $0x139] sm:$0xff] %vm550, %v544
      %634 = vst.msk [vmem:[%s606 + $0x141] sm:$0xff] %vm550, %v545
      %635 = vst.msk [vmem:[%s606 + $0x151] sm:$0xff] %vm550, %v546
      %636 = vst.msk [vmem:[%s606 + $0x159] sm:$0xff] %vm550, %v547
      %637 = vst.msk [vmem:[%s606 + $0x169] sm:$0xff] %vm550, %v548
      %638 = vst.msk [vmem:[%s606 + $0x171] sm:$0xff] %vm550, %v549
      %v639 = vld [vmem:[#allocation2] sm:$0xff]
      %v640 = vld [vmem:[#allocation2 + $0x8] sm:$0xff]
      %v641 = vld [vmem:[#allocation2 + $0x18] sm:$0xff]
      %v642 = vld [vmem:[#allocation2 + $0x20] sm:$0xff]
      %v643 = vld [vmem:[#allocation2 + $0x30] sm:$0xff]
      %v644 = vld [vmem:[#allocation2 + $0x38] sm:$0xff]
      %v645 = vld [vmem:[#allocation2 + $0x48] sm:$0xff]
      %v646 = vld [vmem:[#allocation2 + $0x50] sm:$0xff]
      %v647 = vld [vmem:[#allocation2 + $0x60] sm:$0xff]
      %v648 = vld [vmem:[#allocation2 + $0x68] sm:$0xff]
      %v649 = vld [vmem:[#allocation2 + $0x78] sm:$0xff]
      %v650 = vld [vmem:[#allocation2 + $0x80] sm:$0xff]
      %v651 = vld [vmem:[#allocation2 + $0x90] sm:$0xff]
      %v652 = vld [vmem:[#allocation2 + $0x98] sm:$0xff]
      %v653 = vld [vmem:[#allocation2 + $0xa8] sm:$0xff]
      %v654 = vld [vmem:[#allocation2 + $0xb0] sm:$0xff]
      %v655 = vld [vmem:[#allocation2 + $0xc0] sm:$0xff]
      %v656 = vld [vmem:[#allocation2 + $0xc8] sm:$0xff]
      %v657 = vld [vmem:[#allocation2 + $0xd8] sm:$0xff]
      %v658 = vld [vmem:[#allocation2 + $0xe0] sm:$0xff]
      %v659 = vld [vmem:[#allocation2 + $0xf0] sm:$0xff]
      %v660 = vld [vmem:[#allocation2 + $0xf8] sm:$0xff]
      %v661 = vld [vmem:[#allocation2 + $0x108] sm:$0xff]
      %v662 = vld [vmem:[#allocation2 + $0x110] sm:$0xff]
      %v663 = vld [vmem:[#allocation2 + $0x120] sm:$0xff]
      %v664 = vld [vmem:[#allocation2 + $0x128] sm:$0xff]
      %v665 = vld [vmem:[#allocation2 + $0x138] sm:$0xff]
      %v666 = vld [vmem:[#allocation2 + $0x140] sm:$0xff]
      %v667 = vld [vmem:[#allocation2 + $0x150] sm:$0xff]
      %v668 = vld [vmem:[#allocation2 + $0x158] sm:$0xff]
      %v669 = vld [vmem:[#allocation2 + $0x168] sm:$0xff]
      %v670 = vld [vmem:[#allocation2 + $0x170] sm:$0xff]
      %671 = vst.msk [vmem:[#allocation4] sm:$0xff] %vm550, %v639
      %672 = vst.msk [vmem:[#allocation4 + $0x8] sm:$0xff] %vm550, %v640
      %673 = vst.msk [vmem:[#allocation4 + $0x10] sm:$0xff] %vm550, %v641
      %674 = vst.msk [vmem:[#allocation4 + $0x18] sm:$0xff] %vm550, %v642
      %675 = vst.msk [vmem:[#allocation4 + $0x20] sm:$0xff] %vm550, %v643
      %676 = vst.msk [vmem:[#allocation4 + $0x28] sm:$0xff] %vm550, %v644
      %677 = vst.msk [vmem:[#allocation4 + $0x30] sm:$0xff] %vm550, %v645
      %678 = vst.msk [vmem:[#allocation4 + $0x38] sm:$0xff] %vm550, %v646
      %679 = vst.msk [vmem:[#allocation4 + $0x40] sm:$0xff] %vm550, %v647
      %680 = vst.msk [vmem:[#allocation4 + $0x48] sm:$0xff] %vm550, %v648
      %681 = vst.msk [vmem:[#allocation4 + $0x50] sm:$0xff] %vm550, %v649
      %682 = vst.msk [vmem:[#allocation4 + $0x58] sm:$0xff] %vm550, %v650
      %683 = vst.msk [vmem:[#allocation4 + $0x60] sm:$0xff] %vm550, %v651
      %684 = vst.msk [vmem:[#allocation4 + $0x68] sm:$0xff] %vm550, %v652
      %685 = vst.msk [vmem:[#allocation4 + $0x70] sm:$0xff] %vm550, %v653
      %686 = vst.msk [vmem:[#allocation4 + $0x78] sm:$0xff] %vm550, %v654
      %687 = vst.msk [vmem:[#allocation4 + $0x80] sm:$0xff] %vm550, %v655
      %688 = vst.msk [vmem:[#allocation4 + $0x88] sm:$0xff] %vm550, %v656
      %689 = vst.msk [vmem:[#allocation4 + $0x90] sm:$0xff] %vm550, %v657
      %690 = vst.msk [vmem:[#allocation4 + $0x98] sm:$0xff] %vm550, %v658
      %691 = vst.msk [vmem:[#allocation4 + $0xa0] sm:$0xff] %vm550, %v659
      %692 = vst.msk [vmem:[#allocation4 + $0xa8] sm:$0xff] %vm550, %v660
      %693 = vst.msk [vmem:[#allocation4 + $0xb0] sm:$0xff] %vm550, %v661
      %694 = vst.msk [vmem:[#allocation4 + $0xb8] sm:$0xff] %vm550, %v662
      %695 = vst.msk [vmem:[#allocation4 + $0xc0] sm:$0xff] %vm550, %v663
      %696 = vst.msk [vmem:[#allocation4 + $0xc8] sm:$0xff] %vm550, %v664
      %697 = vst.msk [vmem:[#allocation4 + $0xd0] sm:$0xff] %vm550, %v665
      %698 = vst.msk [vmem:[#allocation4 + $0xd8] sm:$0xff] %vm550, %v666
      %699 = vst.msk [vmem:[#allocation4 + $0xe0] sm:$0xff] %vm550, %v667
      %700 = vst.msk [vmem:[#allocation4 + $0xe8] sm:$0xff] %vm550, %v668
      %701 = vst.msk [vmem:[#allocation4 + $0xf0] sm:$0xff] %vm550, %v669
      %702 = vst.msk [vmem:[#allocation4 + $0xf8] sm:$0xff] %vm550, %v670
      %v703 = vld [vmem:[#allocation2 + $0x1] sm:$0xff]
      %v704 = vld [vmem:[#allocation2 + $0x9] sm:$0xff]
      %v705 = vld [vmem:[#allocation2 + $0x19] sm:$0xff]
      %v706 = vld [vmem:[#allocation2 + $0x21] sm:$0xff]
      %v707 = vld [vmem:[#allocation2 + $0x31] sm:$0xff]
      %v708 = vld [vmem:[#allocation2 + $0x39] sm:$0xff]
      %v709 = vld [vmem:[#allocation2 + $0x49] sm:$0xff]
      %v710 = vld [vmem:[#allocation2 + $0x51] sm:$0xff]
      %v711 = vld [vmem:[#allocation2 + $0x61] sm:$0xff]
      %v712 = vld [vmem:[#allocation2 + $0x69] sm:$0xff]
      %v713 = vld [vmem:[#allocation2 + $0x79] sm:$0xff]
      %v714 = vld [vmem:[#allocation2 + $0x81] sm:$0xff]
      %v715 = vld [vmem:[#allocation2 + $0x91] sm:$0xff]
      %v716 = vld [vmem:[#allocation2 + $0x99] sm:$0xff]
      %v717 = vld [vmem:[#allocation2 + $0xa9] sm:$0xff]
      %v718 = vld [vmem:[#allocation2 + $0xb1] sm:$0xff]
      %v719 = vld [vmem:[#allocation2 + $0xc1] sm:$0xff]
      %v720 = vld [vmem:[#allocation2 + $0xc9] sm:$0xff]
      %v721 = vld [vmem:[#allocation2 + $0xd9] sm:$0xff]
      %v722 = vld [vmem:[#allocation2 + $0xe1] sm:$0xff]
      %v723 = vld [vmem:[#allocation2 + $0xf1] sm:$0xff]
      %v724 = vld [vmem:[#allocation2 + $0xf9] sm:$0xff]
      %v725 = vld [vmem:[#allocation2 + $0x109] sm:$0xff]
      %v726 = vld [vmem:[#allocation2 + $0x111] sm:$0xff]
      %v727 = vld [vmem:[#allocation2 + $0x121] sm:$0xff]
      %v728 = vld [vmem:[#allocation2 + $0x129] sm:$0xff]
      %v729 = vld [vmem:[#allocation2 + $0x139] sm:$0xff]
      %v730 = vld [vmem:[#allocation2 + $0x141] sm:$0xff]
      %v731 = vld [vmem:[#allocation2 + $0x151] sm:$0xff]
      %v732 = vld [vmem:[#allocation2 + $0x159] sm:$0xff]
      %v733 = vld [vmem:[#allocation2 + $0x169] sm:$0xff]
      %v734 = vld [vmem:[#allocation2 + $0x171] sm:$0xff]
      %767 = vrot.lane.b32.xlu0 %v703, 4
      %v768 = vpop.permute.xlu0 %767
      %769 = vrot.lane.b32.xlu0 %v704, 4
      %v770 = vpop.permute.xlu0 %769
      %771 = vrot.lane.b32.xlu0 %v705, 4
      %v772 = vpop.permute.xlu0 %771
      %773 = vrot.lane.b32.xlu0 %v706, 4
      %v774 = vpop.permute.xlu0 %773
      %775 = vrot.lane.b32.xlu0 %v707, 4
      %v776 = vpop.permute.xlu0 %775
      %777 = vrot.lane.b32.xlu0 %v708, 4
      %v778 = vpop.permute.xlu0 %777
      %779 = vrot.lane.b32.xlu0 %v709, 4
      %v780 = vpop.permute.xlu0 %779
      %781 = vrot.lane.b32.xlu0 %v710, 4
      %v782 = vpop.permute.xlu0 %781
      %783 = vrot.lane.b32.xlu0 %v711, 4
      %v784 = vpop.permute.xlu0 %783
      %785 = vrot.lane.b32.xlu0 %v712, 4
      %v786 = vpop.permute.xlu0 %785
      %787 = vrot.lane.b32.xlu0 %v713, 4
      %v788 = vpop.permute.xlu0 %787
      %789 = vrot.lane.b32.xlu0 %v714, 4
      %v790 = vpop.permute.xlu0 %789
      %791 = vrot.lane.b32.xlu0 %v715, 4
      %v792 = vpop.permute.xlu0 %791
      %793 = vrot.lane.b32.xlu0 %v716, 4
      %v794 = vpop.permute.xlu0 %793
      %795 = vrot.lane.b32.xlu0 %v717, 4
      %v796 = vpop.permute.xlu0 %795
      %797 = vrot.lane.b32.xlu0 %v718, 4
      %v798 = vpop.permute.xlu0 %797
      %799 = vrot.lane.b32.xlu0 %v719, 4
      %v800 = vpop.permute.xlu0 %799
      %801 = vrot.lane.b32.xlu0 %v720, 4
      %v802 = vpop.permute.xlu0 %801
      %803 = vrot.lane.b32.xlu0 %v721, 4
      %v804 = vpop.permute.xlu0 %803
      %805 = vrot.lane.b32.xlu0 %v722, 4
      %v806 = vpop.permute.xlu0 %805
      %807 = vrot.lane.b32.xlu0 %v723, 4
      %v808 = vpop.permute.xlu0 %807
      %809 = vrot.lane.b32.xlu0 %v724, 4
      %v810 = vpop.permute.xlu0 %809
      %811 = vrot.lane.b32.xlu0 %v725, 4
      %v812 = vpop.permute.xlu0 %811
      %813 = vrot.lane.b32.xlu0 %v726, 4
      %v814 = vpop.permute.xlu0 %813
      %815 = vrot.lane.b32.xlu0 %v727, 4
      %v816 = vpop.permute.xlu0 %815
      %817 = vrot.lane.b32.xlu0 %v728, 4
      %v818 = vpop.permute.xlu0 %817
      %819 = vrot.lane.b32.xlu0 %v729, 4
      %v820 = vpop.permute.xlu0 %819
      %821 = vrot.lane.b32.xlu0 %v730, 4
      %v822 = vpop.permute.xlu0 %821
      %823 = vrot.lane.b32.xlu0 %v731, 4
      %v824 = vpop.permute.xlu0 %823
      %825 = vrot.lane.b32.xlu0 %v732, 4
      %v826 = vpop.permute.xlu0 %825
      %827 = vrot.lane.b32.xlu0 %v733, 4
      %v828 = vpop.permute.xlu0 %827
      %829 = vrot.lane.b32.xlu0 %v734, 4
      %v830 = vpop.permute.xlu0 %829
      %vm863 = vcmask 64544
      %864 = vst.msk [vmem:[#allocation4] sm:$0xff] %vm863, %v768
      %865 = vst.msk [vmem:[#allocation4 + $0x8] sm:$0xff] %vm863, %v770
      %866 = vst.msk [vmem:[#allocation4 + $0x10] sm:$0xff] %vm863, %v772
      %867 = vst.msk [vmem:[#allocation4 + $0x18] sm:$0xff] %vm863, %v774
      %868 = vst.msk [vmem:[#allocation4 + $0x20] sm:$0xff] %vm863, %v776
      %869 = vst.msk [vmem:[#allocation4 + $0x28] sm:$0xff] %vm863, %v778
      %870 = vst.msk [vmem:[#allocation4 + $0x30] sm:$0xff] %vm863, %v780
      %871 = vst.msk [vmem:[#allocation4 + $0x38] sm:$0xff] %vm863, %v782
      %872 = vst.msk [vmem:[#allocation4 + $0x40] sm:$0xff] %vm863, %v784
      %873 = vst.msk [vmem:[#allocation4 + $0x48] sm:$0xff] %vm863, %v786
      %874 = vst.msk [vmem:[#allocation4 + $0x50] sm:$0xff] %vm863, %v788
      %875 = vst.msk [vmem:[#allocation4 + $0x58] sm:$0xff] %vm863, %v790
      %876 = vst.msk [vmem:[#allocation4 + $0x60] sm:$0xff] %vm863, %v792
      %877 = vst.msk [vmem:[#allocation4 + $0x68] sm:$0xff] %vm863, %v794
      %878 = vst.msk [vmem:[#allocation4 + $0x70] sm:$0xff] %vm863, %v796
      %879 = vst.msk [vmem:[#allocation4 + $0x78] sm:$0xff] %vm863, %v798
      %880 = vst.msk [vmem:[#allocation4 + $0x80] sm:$0xff] %vm863, %v800
      %881 = vst.msk [vmem:[#allocation4 + $0x88] sm:$0xff] %vm863, %v802
      %882 = vst.msk [vmem:[#allocation4 + $0x90] sm:$0xff] %vm863, %v804
      %883 = vst.msk [vmem:[#allocation4 + $0x98] sm:$0xff] %vm863, %v806
      %884 = vst.msk [vmem:[#allocation4 + $0xa0] sm:$0xff] %vm863, %v808
      %885 = vst.msk [vmem:[#allocation4 + $0xa8] sm:$0xff] %vm863, %v810
      %886 = vst.msk [vmem:[#allocation4 + $0xb0] sm:$0xff] %vm863, %v812
      %887 = vst.msk [vmem:[#allocation4 + $0xb8] sm:$0xff] %vm863, %v814
      %888 = vst.msk [vmem:[#allocation4 + $0xc0] sm:$0xff] %vm863, %v816
      %889 = vst.msk [vmem:[#allocation4 + $0xc8] sm:$0xff] %vm863, %v818
      %890 = vst.msk [vmem:[#allocation4 + $0xd0] sm:$0xff] %vm863, %v820
      %891 = vst.msk [vmem:[#allocation4 + $0xd8] sm:$0xff] %vm863, %v822
      %892 = vst.msk [vmem:[#allocation4 + $0xe0] sm:$0xff] %vm863, %v824
      %893 = vst.msk [vmem:[#allocation4 + $0xe8] sm:$0xff] %vm863, %v826
      %894 = vst.msk [vmem:[#allocation4 + $0xf0] sm:$0xff] %vm863, %v828
      %895 = vst.msk [vmem:[#allocation4 + $0xf8] sm:$0xff] %vm863, %v830
      %v896 = vld [vmem:[#allocation2 + $0x2] sm:$0xff]
      %v897 = vld [vmem:[#allocation2 + $0xa] sm:$0xff]
      %v898 = vld [vmem:[#allocation2 + $0x1a] sm:$0xff]
      %v899 = vld [vmem:[#allocation2 + $0x22] sm:$0xff]
      %v900 = vld [vmem:[#allocation2 + $0x32] sm:$0xff]
      %v901 = vld [vmem:[#allocation2 + $0x3a] sm:$0xff]
      %v902 = vld [vmem:[#allocation2 + $0x4a] sm:$0xff]
      %v903 = vld [vmem:[#allocation2 + $0x52] sm:$0xff]
      %v904 = vld [vmem:[#allocation2 + $0x62] sm:$0xff]
      %v905 = vld [vmem:[#allocation2 + $0x6a] sm:$0xff]
      %v906 = vld [vmem:[#allocation2 + $0x7a] sm:$0xff]
      %v907 = vld [vmem:[#allocation2 + $0x82] sm:$0xff]
      %v908 = vld [vmem:[#allocation2 + $0x92] sm:$0xff]
      %v909 = vld [vmem:[#allocation2 + $0x9a] sm:$0xff]
      %v910 = vld [vmem:[#allocation2 + $0xaa] sm:$0xff]
      %v911 = vld [vmem:[#allocation2 + $0xb2] sm:$0xff]
      %v912 = vld [vmem:[#allocation2 + $0xc2] sm:$0xff]
      %v913 = vld [vmem:[#allocation2 + $0xca] sm:$0xff]
      %v914 = vld [vmem:[#allocation2 + $0xda] sm:$0xff]
      %v915 = vld [vmem:[#allocation2 + $0xe2] sm:$0xff]
      %v916 = vld [vmem:[#allocation2 + $0xf2] sm:$0xff]
      %v917 = vld [vmem:[#allocation2 + $0xfa] sm:$0xff]
      %v918 = vld [vmem:[#allocation2 + $0x10a] sm:$0xff]
      %v919 = vld [vmem:[#allocation2 + $0x112] sm:$0xff]
      %v920 = vld [vmem:[#allocation2 + $0x122] sm:$0xff]
      %v921 = vld [vmem:[#allocation2 + $0x12a] sm:$0xff]
      %v922 = vld [vmem:[#allocation2 + $0x13a] sm:$0xff]
      %v923 = vld [vmem:[#allocation2 + $0x142] sm:$0xff]
      %v924 = vld [vmem:[#allocation2 + $0x152] sm:$0xff]
      %v925 = vld [vmem:[#allocation2 + $0x15a] sm:$0xff]
      %v926 = vld [vmem:[#allocation2 + $0x16a] sm:$0xff]
      %v927 = vld [vmem:[#allocation2 + $0x172] sm:$0xff]
      %960 = vrot.lane.b32.xlu0 %v896, 8
      %v961 = vpop.permute.xlu0 %960
      %962 = vrot.lane.b32.xlu0 %v897, 8
      %v963 = vpop.permute.xlu0 %962
      %964 = vrot.lane.b32.xlu0 %v898, 8
      %v965 = vpop.permute.xlu0 %964
      %966 = vrot.lane.b32.xlu0 %v899, 8
      %v967 = vpop.permute.xlu0 %966
      %968 = vrot.lane.b32.xlu0 %v900, 8
      %v969 = vpop.permute.xlu0 %968
      %970 = vrot.lane.b32.xlu0 %v901, 8
      %v971 = vpop.permute.xlu0 %970
      %972 = vrot.lane.b32.xlu0 %v902, 8
      %v973 = vpop.permute.xlu0 %972
      %974 = vrot.lane.b32.xlu0 %v903, 8
      %v975 = vpop.permute.xlu0 %974
      %976 = vrot.lane.b32.xlu0 %v904, 8
      %v977 = vpop.permute.xlu0 %976
      %978 = vrot.lane.b32.xlu0 %v905, 8
      %v979 = vpop.permute.xlu0 %978
      %980 = vrot.lane.b32.xlu0 %v906, 8
      %v981 = vpop.permute.xlu0 %980
      %982 = vrot.lane.b32.xlu0 %v907, 8
      %v983 = vpop.permute.xlu0 %982
      %984 = vrot.lane.b32.xlu0 %v908, 8
      %v985 = vpop.permute.xlu0 %984
      %986 = vrot.lane.b32.xlu0 %v909, 8
      %v987 = vpop.permute.xlu0 %986
      %988 = vrot.lane.b32.xlu0 %v910, 8
      %v989 = vpop.permute.xlu0 %988
      %990 = vrot.lane.b32.xlu0 %v911, 8
      %v991 = vpop.permute.xlu0 %990
      %992 = vrot.lane.b32.xlu0 %v912, 8
      %v993 = vpop.permute.xlu0 %992
      %994 = vrot.lane.b32.xlu0 %v913, 8
      %v995 = vpop.permute.xlu0 %994
      %996 = vrot.lane.b32.xlu0 %v914, 8
      %v997 = vpop.permute.xlu0 %996
      %998 = vrot.lane.b32.xlu0 %v915, 8
      %v999 = vpop.permute.xlu0 %998
      %1000 = vrot.lane.b32.xlu0 %v916, 8
      %v1001 = vpop.permute.xlu0 %1000
      %1002 = vrot.lane.b32.xlu0 %v917, 8
      %v1003 = vpop.permute.xlu0 %1002
      %1004 = vrot.lane.b32.xlu0 %v918, 8
      %v1005 = vpop.permute.xlu0 %1004
      %1006 = vrot.lane.b32.xlu0 %v919, 8
      %v1007 = vpop.permute.xlu0 %1006
      %1008 = vrot.lane.b32.xlu0 %v920, 8
      %v1009 = vpop.permute.xlu0 %1008
      %1010 = vrot.lane.b32.xlu0 %v921, 8
      %v1011 = vpop.permute.xlu0 %1010
      %1012 = vrot.lane.b32.xlu0 %v922, 8
      %v1013 = vpop.permute.xlu0 %1012
      %1014 = vrot.lane.b32.xlu0 %v923, 8
      %v1015 = vpop.permute.xlu0 %1014
      %1016 = vrot.lane.b32.xlu0 %v924, 8
      %v1017 = vpop.permute.xlu0 %1016
      %1018 = vrot.lane.b32.xlu0 %v925, 8
      %v1019 = vpop.permute.xlu0 %1018
      %1020 = vrot.lane.b32.xlu0 %v926, 8
      %v1021 = vpop.permute.xlu0 %1020
      %1022 = vrot.lane.b32.xlu0 %v927, 8
      %v1023 = vpop.permute.xlu0 %1022
      %vm1056 = vcmask 97344
      %1057 = vst.msk [vmem:[#allocation4] sm:$0xff] %vm1056, %v961
      %1058 = vst.msk [vmem:[#allocation4 + $0x8] sm:$0xff] %vm1056, %v963
      %1059 = vst.msk [vmem:[#allocation4 + $0x10] sm:$0xff] %vm1056, %v965
      %1060 = vst.msk [vmem:[#allocation4 + $0x18] sm:$0xff] %vm1056, %v967
      %1061 = vst.msk [vmem:[#allocation4 + $0x20] sm:$0xff] %vm1056, %v969
      %1062 = vst.msk [vmem:[#allocation4 + $0x28] sm:$0xff] %vm1056, %v971
      %1063 = vst.msk [vmem:[#allocation4 + $0x30] sm:$0xff] %vm1056, %v973
      %1064 = vst.msk [vmem:[#allocation4 + $0x38] sm:$0xff] %vm1056, %v975
      %1065 = vst.msk [vmem:[#allocation4 + $0x40] sm:$0xff] %vm1056, %v977
      %1066 = vst.msk [vmem:[#allocation4 + $0x48] sm:$0xff] %vm1056, %v979
      %1067 = vst.msk [vmem:[#allocation4 + $0x50] sm:$0xff] %vm1056, %v981
      %1068 = vst.msk [vmem:[#allocation4 + $0x58] sm:$0xff] %vm1056, %v983
      %1069 = vst.msk [vmem:[#allocation4 + $0x60] sm:$0xff] %vm1056, %v985
      %1070 = vst.msk [vmem:[#allocation4 + $0x68] sm:$0xff] %vm1056, %v987
      %1071 = vst.msk [vmem:[#allocation4 + $0x70] sm:$0xff] %vm1056, %v989
      %1072 = vst.msk [vmem:[#allocation4 + $0x78] sm:$0xff] %vm1056, %v991
      %1073 = vst.msk [vmem:[#allocation4 + $0x80] sm:$0xff] %vm1056, %v993
      %1074 = vst.msk [vmem:[#allocation4 + $0x88] sm:$0xff] %vm1056, %v995
      %1075 = vst.msk [vmem:[#allocation4 + $0x90] sm:$0xff] %vm1056, %v997
      %1076 = vst.msk [vmem:[#allocation4 + $0x98] sm:$0xff] %vm1056, %v999
      %1077 = vst.msk [vmem:[#allocation4 + $0xa0] sm:$0xff] %vm1056, %v1001
      %1078 = vst.msk [vmem:[#allocation4 + $0xa8] sm:$0xff] %vm1056, %v1003
      %1079 = vst.msk [vmem:[#allocation4 + $0xb0] sm:$0xff] %vm1056, %v1005
      %1080 = vst.msk [vmem:[#allocation4 + $0xb8] sm:$0xff] %vm1056, %v1007
      %1081 = vst.msk [vmem:[#allocation4 + $0xc0] sm:$0xff] %vm1056, %v1009
      %1082 = vst.msk [vmem:[#allocation4 + $0xc8] sm:$0xff] %vm1056, %v1011
      %1083 = vst.msk [vmem:[#allocation4 + $0xd0] sm:$0xff] %vm1056, %v1013
      %1084 = vst.msk [vmem:[#allocation4 + $0xd8] sm:$0xff] %vm1056, %v1015
      %1085 = vst.msk [vmem:[#allocation4 + $0xe0] sm:$0xff] %vm1056, %v1017
      %1086 = vst.msk [vmem:[#allocation4 + $0xe8] sm:$0xff] %vm1056, %v1019
      %1087 = vst.msk [vmem:[#allocation4 + $0xf0] sm:$0xff] %vm1056, %v1021
      %1088 = vst.msk [vmem:[#allocation4 + $0xf8] sm:$0xff] %vm1056, %v1023
      %v1089 = vld [vmem:[%s606] sm:$0xff]
      %v1090 = vld [vmem:[%s606 + $0x8] sm:$0xff]
      %v1091 = vld [vmem:[%s606 + $0x18] sm:$0xff]
      %v1092 = vld [vmem:[%s606 + $0x20] sm:$0xff]
      %v1093 = vld [vmem:[%s606 + $0x30] sm:$0xff]
      %v1094 = vld [vmem:[%s606 + $0x38] sm:$0xff]
      %v1095 = vld [vmem:[%s606 + $0x48] sm:$0xff]
      %v1096 = vld [vmem:[%s606 + $0x50] sm:$0xff]
      %v1097 = vld [vmem:[%s606 + $0x60] sm:$0xff]
      %v1098 = vld [vmem:[%s606 + $0x68] sm:$0xff]
      %v1099 = vld [vmem:[%s606 + $0x78] sm:$0xff]
      %v1100 = vld [vmem:[%s606 + $0x80] sm:$0xff]
      %v1101 = vld [vmem:[%s606 + $0x90] sm:$0xff]
      %v1102 = vld [vmem:[%s606 + $0x98] sm:$0xff]
      %v1103 = vld [vmem:[%s606 + $0xa8] sm:$0xff]
      %v1104 = vld [vmem:[%s606 + $0xb0] sm:$0xff]
      %v1105 = vld [vmem:[%s606 + $0xc0] sm:$0xff]
      %v1106 = vld [vmem:[%s606 + $0xc8] sm:$0xff]
      %v1107 = vld [vmem:[%s606 + $0xd8] sm:$0xff]
      %v1108 = vld [vmem:[%s606 + $0xe0] sm:$0xff]
      %v1109 = vld [vmem:[%s606 + $0xf0] sm:$0xff]
      %v1110 = vld [vmem:[%s606 + $0xf8] sm:$0xff]
      %v1111 = vld [vmem:[%s606 + $0x108] sm:$0xff]
      %v1112 = vld [vmem:[%s606 + $0x110] sm:$0xff]
      %v1113 = vld [vmem:[%s606 + $0x120] sm:$0xff]
      %v1114 = vld [vmem:[%s606 + $0x128] sm:$0xff]
      %v1115 = vld [vmem:[%s606 + $0x138] sm:$0xff]
      %v1116 = vld [vmem:[%s606 + $0x140] sm:$0xff]
      %v1117 = vld [vmem:[%s606 + $0x150] sm:$0xff]
      %v1118 = vld [vmem:[%s606 + $0x158] sm:$0xff]
      %v1119 = vld [vmem:[%s606 + $0x168] sm:$0xff]
      %v1120 = vld [vmem:[%s606 + $0x170] sm:$0xff]
      %1153 = vrot.lane.b32.xlu0 %v1089, 12
      %v1154 = vpop.permute.xlu0 %1153
      %1155 = vrot.lane.b32.xlu0 %v1090, 12
      %v1156 = vpop.permute.xlu0 %1155
      %1157 = vrot.lane.b32.xlu0 %v1091, 12
      %v1158 = vpop.permute.xlu0 %1157
      %1159 = vrot.lane.b32.xlu0 %v1092, 12
      %v1160 = vpop.permute.xlu0 %1159
      %1161 = vrot.lane.b32.xlu0 %v1093, 12
      %v1162 = vpop.permute.xlu0 %1161
      %1163 = vrot.lane.b32.xlu0 %v1094, 12
      %v1164 = vpop.permute.xlu0 %1163
      %1165 = vrot.lane.b32.xlu0 %v1095, 12
      %v1166 = vpop.permute.xlu0 %1165
      %1167 = vrot.lane.b32.xlu0 %v1096, 12
      %v1168 = vpop.permute.xlu0 %1167
      %1169 = vrot.lane.b32.xlu0 %v1097, 12
      %v1170 = vpop.permute.xlu0 %1169
      %1171 = vrot.lane.b32.xlu0 %v1098, 12
      %v1172 = vpop.permute.xlu0 %1171
      %1173 = vrot.lane.b32.xlu0 %v1099, 12
      %v1174 = vpop.permute.xlu0 %1173
      %1175 = vrot.lane.b32.xlu0 %v1100, 12
      %v1176 = vpop.permute.xlu0 %1175
      %1177 = vrot.lane.b32.xlu0 %v1101, 12
      %v1178 = vpop.permute.xlu0 %1177
      %1179 = vrot.lane.b32.xlu0 %v1102, 12
      %v1180 = vpop.permute.xlu0 %1179
      %1181 = vrot.lane.b32.xlu0 %v1103, 12
      %v1182 = vpop.permute.xlu0 %1181
      %1183 = vrot.lane.b32.xlu0 %v1104, 12
      %v1184 = vpop.permute.xlu0 %1183
      %1185 = vrot.lane.b32.xlu0 %v1105, 12
      %v1186 = vpop.permute.xlu0 %1185
      %1187 = vrot.lane.b32.xlu0 %v1106, 12
      %v1188 = vpop.permute.xlu0 %1187
      %1189 = vrot.lane.b32.xlu0 %v1107, 12
      %v1190 = vpop.permute.xlu0 %1189
      %1191 = vrot.lane.b32.xlu0 %v1108, 12
      %v1192 = vpop.permute.xlu0 %1191
      %1193 = vrot.lane.b32.xlu0 %v1109, 12
      %v1194 = vpop.permute.xlu0 %1193
      %1195 = vrot.lane.b32.xlu0 %v1110, 12
      %v1196 = vpop.permute.xlu0 %1195
      %1197 = vrot.lane.b32.xlu0 %v1111, 12
      %v1198 = vpop.permute.xlu0 %1197
      %1199 = vrot.lane.b32.xlu0 %v1112, 12
      %v1200 = vpop.permute.xlu0 %1199
      %1201 = vrot.lane.b32.xlu0 %v1113, 12
      %v1202 = vpop.permute.xlu0 %1201
      %1203 = vrot.lane.b32.xlu0 %v1114, 12
      %v1204 = vpop.permute.xlu0 %1203
      %1205 = vrot.lane.b32.xlu0 %v1115, 12
      %v1206 = vpop.permute.xlu0 %1205
      %1207 = vrot.lane.b32.xlu0 %v1116, 12
      %v1208 = vpop.permute.xlu0 %1207
      %1209 = vrot.lane.b32.xlu0 %v1117, 12
      %v1210 = vpop.permute.xlu0 %1209
      %1211 = vrot.lane.b32.xlu0 %v1118, 12
      %v1212 = vpop.permute.xlu0 %1211
      %1213 = vrot.lane.b32.xlu0 %v1119, 12
      %v1214 = vpop.permute.xlu0 %1213
      %1215 = vrot.lane.b32.xlu0 %v1120, 12
      %v1216 = vpop.permute.xlu0 %1215
      %vm1249 = vcmask 130144
      %1250 = vst.msk [vmem:[#allocation4] sm:$0xff] %vm1249, %v1154
      %1251 = vst.msk [vmem:[#allocation4 + $0x8] sm:$0xff] %vm1249, %v1156
      %1252 = vst.msk [vmem:[#allocation4 + $0x10] sm:$0xff] %vm1249, %v1158
      %1253 = vst.msk [vmem:[#allocation4 + $0x18] sm:$0xff] %vm1249, %v1160
      %1254 = vst.msk [vmem:[#allocation4 + $0x20] sm:$0xff] %vm1249, %v1162
      %1255 = vst.msk [vmem:[#allocation4 + $0x28] sm:$0xff] %vm1249, %v1164
      %1256 = vst.msk [vmem:[#allocation4 + $0x30] sm:$0xff] %vm1249, %v1166
      %1257 = vst.msk [vmem:[#allocation4 + $0x38] sm:$0xff] %vm1249, %v1168
      %1258 = vst.msk [vmem:[#allocation4 + $0x40] sm:$0xff] %vm1249, %v1170
      %1259 = vst.msk [vmem:[#allocation4 + $0x48] sm:$0xff] %vm1249, %v1172
      %1260 = vst.msk [vmem:[#allocation4 + $0x50] sm:$0xff] %vm1249, %v1174
      %1261 = vst.msk [vmem:[#allocation4 + $0x58] sm:$0xff] %vm1249, %v1176
      %1262 = vst.msk [vmem:[#allocation4 + $0x60] sm:$0xff] %vm1249, %v1178
      %1263 = vst.msk [vmem:[#allocation4 + $0x68] sm:$0xff] %vm1249, %v1180
      %1264 = vst.msk [vmem:[#allocation4 + $0x70] sm:$0xff] %vm1249, %v1182
      %1265 = vst.msk [vmem:[#allocation4 + $0x78] sm:$0xff] %vm1249, %v1184
      %1266 = vst.msk [vmem:[#allocation4 + $0x80] sm:$0xff] %vm1249, %v1186
      %1267 = vst.msk [vmem:[#allocation4 + $0x88] sm:$0xff] %vm1249, %v1188
      %1268 = vst.msk [vmem:[#allocation4 + $0x90] sm:$0xff] %vm1249, %v1190
      %1269 = vst.msk [vmem:[#allocation4 + $0x98] sm:$0xff] %vm1249, %v1192
      %1270 = vst.msk [vmem:[#allocation4 + $0xa0] sm:$0xff] %vm1249, %v1194
      %1271 = vst.msk [vmem:[#allocation4 + $0xa8] sm:$0xff] %vm1249, %v1196
      %1272 = vst.msk [vmem:[#allocation4 + $0xb0] sm:$0xff] %vm1249, %v1198
      %1273 = vst.msk [vmem:[#allocation4 + $0xb8] sm:$0xff] %vm1249, %v1200
      %1274 = vst.msk [vmem:[#allocation4 + $0xc0] sm:$0xff] %vm1249, %v1202
      %1275 = vst.msk [vmem:[#allocation4 + $0xc8] sm:$0xff] %vm1249, %v1204
      %1276 = vst.msk [vmem:[#allocation4 + $0xd0] sm:$0xff] %vm1249, %v1206
      %1277 = vst.msk [vmem:[#allocation4 + $0xd8] sm:$0xff] %vm1249, %v1208
      %1278 = vst.msk [vmem:[#allocation4 + $0xe0] sm:$0xff] %vm1249, %v1210
      %1279 = vst.msk [vmem:[#allocation4 + $0xe8] sm:$0xff] %vm1249, %v1212
      %1280 = vst.msk [vmem:[#allocation4 + $0xf0] sm:$0xff] %vm1249, %v1214
      %1281 = vst.msk [vmem:[#allocation4 + $0xf8] sm:$0xff] %vm1249, %v1216
      %v1282 = vld [vmem:[%s606 + $0x1] sm:$0xff]
      %v1283 = vld [vmem:[%s606 + $0x9] sm:$0xff]
      %v1284 = vld [vmem:[%s606 + $0x19] sm:$0xff]
      %v1285 = vld [vmem:[%s606 + $0x21] sm:$0xff]
      %v1286 = vld [vmem:[%s606 + $0x31] sm:$0xff]
      %v1287 = vld [vmem:[%s606 + $0x39] sm:$0xff]
      %v1288 = vld [vmem:[%s606 + $0x49] sm:$0xff]
      %v1289 = vld [vmem:[%s606 + $0x51] sm:$0xff]
      %v1290 = vld [vmem:[%s606 + $0x61] sm:$0xff]
      %v1291 = vld [vmem:[%s606 + $0x69] sm:$0xff]
      %v1292 = vld [vmem:[%s606 + $0x79] sm:$0xff]
      %v1293 = vld [vmem:[%s606 + $0x81] sm:$0xff]
      %v1294 = vld [vmem:[%s606 + $0x91] sm:$0xff]
      %v1295 = vld [vmem:[%s606 + $0x99] sm:$0xff]
      %v1296 = vld [vmem:[%s606 + $0xa9] sm:$0xff]
      %v1297 = vld [vmem:[%s606 + $0xb1] sm:$0xff]
      %v1298 = vld [vmem:[%s606 + $0xc1] sm:$0xff]
      %v1299 = vld [vmem:[%s606 + $0xc9] sm:$0xff]
      %v1300 = vld [vmem:[%s606 + $0xd9] sm:$0xff]
      %v1301 = vld [vmem:[%s606 + $0xe1] sm:$0xff]
      %v1302 = vld [vmem:[%s606 + $0xf1] sm:$0xff]
      %v1303 = vld [vmem:[%s606 + $0xf9] sm:$0xff]
      %v1304 = vld [vmem:[%s606 + $0x109] sm:$0xff]
      %v1305 = vld [vmem:[%s606 + $0x111] sm:$0xff]
      %v1306 = vld [vmem:[%s606 + $0x121] sm:$0xff]
      %v1307 = vld [vmem:[%s606 + $0x129] sm:$0xff]
      %v1308 = vld [vmem:[%s606 + $0x139] sm:$0xff]
      %v1309 = vld [vmem:[%s606 + $0x141] sm:$0xff]
      %v1310 = vld [vmem:[%s606 + $0x151] sm:$0xff]
      %v1311 = vld [vmem:[%s606 + $0x159] sm:$0xff]
      %v1312 = vld [vmem:[%s606 + $0x169] sm:$0xff]
      %v1313 = vld [vmem:[%s606 + $0x171] sm:$0xff]
      %1346 = vrot.lane.b32.xlu0 %v1282, 16
      %v1347 = vpop.permute.xlu0 %1346
      %1348 = vrot.lane.b32.xlu0 %v1283, 16
      %v1349 = vpop.permute.xlu0 %1348
      %1350 = vrot.lane.b32.xlu0 %v1284, 16
      %v1351 = vpop.permute.xlu0 %1350
      %1352 = vrot.lane.b32.xlu0 %v1285, 16
      %v1353 = vpop.permute.xlu0 %1352
      %1354 = vrot.lane.b32.xlu0 %v1286, 16
      %v1355 = vpop.permute.xlu0 %1354
      %1356 = vrot.lane.b32.xlu0 %v1287, 16
      %v1357 = vpop.permute.xlu0 %1356
      %1358 = vrot.lane.b32.xlu0 %v1288, 16
      %v1359 = vpop.permute.xlu0 %1358
      %1360 = vrot.lane.b32.xlu0 %v1289, 16
      %v1361 = vpop.permute.xlu0 %1360
      %1362 = vrot.lane.b32.xlu0 %v1290, 16
      %v1363 = vpop.permute.xlu0 %1362
      %1364 = vrot.lane.b32.xlu0 %v1291, 16
      %v1365 = vpop.permute.xlu0 %1364
      %1366 = vrot.lane.b32.xlu0 %v1292, 16
      %v1367 = vpop.permute.xlu0 %1366
      %1368 = vrot.lane.b32.xlu0 %v1293, 16
      %v1369 = vpop.permute.xlu0 %1368
      %1370 = vrot.lane.b32.xlu0 %v1294, 16
      %v1371 = vpop.permute.xlu0 %1370
      %1372 = vrot.lane.b32.xlu0 %v1295, 16
      %v1373 = vpop.permute.xlu0 %1372
      %1374 = vrot.lane.b32.xlu0 %v1296, 16
      %v1375 = vpop.permute.xlu0 %1374
      %1376 = vrot.lane.b32.xlu0 %v1297, 16
      %v1377 = vpop.permute.xlu0 %1376
      %1378 = vrot.lane.b32.xlu0 %v1298, 16
      %v1379 = vpop.permute.xlu0 %1378
      %1380 = vrot.lane.b32.xlu0 %v1299, 16
      %v1381 = vpop.permute.xlu0 %1380
      %1382 = vrot.lane.b32.xlu0 %v1300, 16
      %v1383 = vpop.permute.xlu0 %1382
      %1384 = vrot.lane.b32.xlu0 %v1301, 16
      %v1385 = vpop.permute.xlu0 %1384
      %1386 = vrot.lane.b32.xlu0 %v1302, 16
      %v1387 = vpop.permute.xlu0 %1386
      %1388 = vrot.lane.b32.xlu0 %v1303, 16
      %v1389 = vpop.permute.xlu0 %1388
      %1390 = vrot.lane.b32.xlu0 %v1304, 16
      %v1391 = vpop.permute.xlu0 %1390
      %1392 = vrot.lane.b32.xlu0 %v1305, 16
      %v1393 = vpop.permute.xlu0 %1392
      %1394 = vrot.lane.b32.xlu0 %v1306, 16
      %v1395 = vpop.permute.xlu0 %1394
      %1396 = vrot.lane.b32.xlu0 %v1307, 16
      %v1397 = vpop.permute.xlu0 %1396
      %1398 = vrot.lane.b32.xlu0 %v1308, 16
      %v1399 = vpop.permute.xlu0 %1398
      %1400 = vrot.lane.b32.xlu0 %v1309, 16
      %v1401 = vpop.permute.xlu0 %1400
      %1402 = vrot.lane.b32.xlu0 %v1310, 16
      %v1403 = vpop.permute.xlu0 %1402
      %1404 = vrot.lane.b32.xlu0 %v1311, 16
      %v1405 = vpop.permute.xlu0 %1404
      %1406 = vrot.lane.b32.xlu0 %v1312, 16
      %v1407 = vpop.permute.xlu0 %1406
      %1408 = vrot.lane.b32.xlu0 %v1313, 16
      %v1409 = vpop.permute.xlu0 %1408
      %vm1442 = vcmask 162944
      %1443 = vst.msk [vmem:[#allocation4] sm:$0xff] %vm1442, %v1347
      %1444 = vst.msk [vmem:[#allocation4 + $0x8] sm:$0xff] %vm1442, %v1349
      %1445 = vst.msk [vmem:[#allocation4 + $0x10] sm:$0xff] %vm1442, %v1351
      %1446 = vst.msk [vmem:[#allocation4 + $0x18] sm:$0xff] %vm1442, %v1353
      %1447 = vst.msk [vmem:[#allocation4 + $0x20] sm:$0xff] %vm1442, %v1355
      %1448 = vst.msk [vmem:[#allocation4 + $0x28] sm:$0xff] %vm1442, %v1357
      %1449 = vst.msk [vmem:[#allocation4 + $0x30] sm:$0xff] %vm1442, %v1359
      %1450 = vst.msk [vmem:[#allocation4 + $0x38] sm:$0xff] %vm1442, %v1361
      %1451 = vst.msk [vmem:[#allocation4 + $0x40] sm:$0xff] %vm1442, %v1363
      %1452 = vst.msk [vmem:[#allocation4 + $0x48] sm:$0xff] %vm1442, %v1365
      %1453 = vst.msk [vmem:[#allocation4 + $0x50] sm:$0xff] %vm1442, %v1367
      %1454 = vst.msk [vmem:[#allocation4 + $0x58] sm:$0xff] %vm1442, %v1369
      %1455 = vst.msk [vmem:[#allocation4 + $0x60] sm:$0xff] %vm1442, %v1371
      %1456 = vst.msk [vmem:[#allocation4 + $0x68] sm:$0xff] %vm1442, %v1373
      %1457 = vst.msk [vmem:[#allocation4 + $0x70] sm:$0xff] %vm1442, %v1375
      %1458 = vst.msk [vmem:[#allocation4 + $0x78] sm:$0xff] %vm1442, %v1377
      %1459 = vst.msk [vmem:[#allocation4 + $0x80] sm:$0xff] %vm1442, %v1379
      %1460 = vst.msk [vmem:[#allocation4 + $0x88] sm:$0xff] %vm1442, %v1381
      %1461 = vst.msk [vmem:[#allocation4 + $0x90] sm:$0xff] %vm1442, %v1383
      %1462 = vst.msk [vmem:[#allocation4 + $0x98] sm:$0xff] %vm1442, %v1385
      %1463 = vst.msk [vmem:[#allocation4 + $0xa0] sm:$0xff] %vm1442, %v1387
      %1464 = vst.msk [vmem:[#allocation4 + $0xa8] sm:$0xff] %vm1442, %v1389
      %1465 = vst.msk [vmem:[#allocation4 + $0xb0] sm:$0xff] %vm1442, %v1391
      %1466 = vst.msk [vmem:[#allocation4 + $0xb8] sm:$0xff] %vm1442, %v1393
      %1467 = vst.msk [vmem:[#allocation4 + $0xc0] sm:$0xff] %vm1442, %v1395
      %1468 = vst.msk [vmem:[#allocation4 + $0xc8] sm:$0xff] %vm1442, %v1397
      %1469 = vst.msk [vmem:[#allocation4 + $0xd0] sm:$0xff] %vm1442, %v1399
      %1470 = vst.msk [vmem:[#allocation4 + $0xd8] sm:$0xff] %vm1442, %v1401
      %1471 = vst.msk [vmem:[#allocation4 + $0xe0] sm:$0xff] %vm1442, %v1403
      %1472 = vst.msk [vmem:[#allocation4 + $0xe8] sm:$0xff] %vm1442, %v1405
      %1473 = vst.msk [vmem:[#allocation4 + $0xf0] sm:$0xff] %vm1442, %v1407
      %1474 = vst.msk [vmem:[#allocation4 + $0xf8] sm:$0xff] %vm1442, %v1409
      %v1475 = vld [vmem:[%s606 + $0x2] sm:$0xff]
      %v1476 = vld [vmem:[%s606 + $0xa] sm:$0xff]
      %v1477 = vld [vmem:[%s606 + $0x1a] sm:$0xff]
      %v1478 = vld [vmem:[%s606 + $0x22] sm:$0xff]
      %v1479 = vld [vmem:[%s606 + $0x32] sm:$0xff]
      %v1480 = vld [vmem:[%s606 + $0x3a] sm:$0xff]
      %v1481 = vld [vmem:[%s606 + $0x4a] sm:$0xff]
      %v1482 = vld [vmem:[%s606 + $0x52] sm:$0xff]
      %v1483 = vld [vmem:[%s606 + $0x62] sm:$0xff]
      %v1484 = vld [vmem:[%s606 + $0x6a] sm:$0xff]
      %v1485 = vld [vmem:[%s606 + $0x7a] sm:$0xff]
      %v1486 = vld [vmem:[%s606 + $0x82] sm:$0xff]
      %v1487 = vld [vmem:[%s606 + $0x92] sm:$0xff]
      %v1488 = vld [vmem:[%s606 + $0x9a] sm:$0xff]
      %v1489 = vld [vmem:[%s606 + $0xaa] sm:$0xff]
      %v1490 = vld [vmem:[%s606 + $0xb2] sm:$0xff]
      %v1491 = vld [vmem:[%s606 + $0xc2] sm:$0xff]
      %v1492 = vld [vmem:[%s606 + $0xca] sm:$0xff]
      %v1493 = vld [vmem:[%s606 + $0xda] sm:$0xff]
      %v1494 = vld [vmem:[%s606 + $0xe2] sm:$0xff]
      %v1495 = vld [vmem:[%s606 + $0xf2] sm:$0xff]
      %v1496 = vld [vmem:[%s606 + $0xfa] sm:$0xff]
      %v1497 = vld [vmem:[%s606 + $0x10a] sm:$0xff]
      %v1498 = vld [vmem:[%s606 + $0x112] sm:$0xff]
      %v1499 = vld [vmem:[%s606 + $0x122] sm:$0xff]
      %v1500 = vld [vmem:[%s606 + $0x12a] sm:$0xff]
      %v1501 = vld [vmem:[%s606 + $0x13a] sm:$0xff]
      %v1502 = vld [vmem:[%s606 + $0x142] sm:$0xff]
      %v1503 = vld [vmem:[%s606 + $0x152] sm:$0xff]
      %v1504 = vld [vmem:[%s606 + $0x15a] sm:$0xff]
      %v1505 = vld [vmem:[%s606 + $0x16a] sm:$0xff]
      %v1506 = vld [vmem:[%s606 + $0x172] sm:$0xff]
      %1539 = vrot.lane.b32.xlu0 %v1475, 20
      %v1540 = vpop.permute.xlu0 %1539
      %1541 = vrot.lane.b32.xlu0 %v1476, 20
      %v1542 = vpop.permute.xlu0 %1541
      %1543 = vrot.lane.b32.xlu0 %v1477, 20
      %v1544 = vpop.permute.xlu0 %1543
      %1545 = vrot.lane.b32.xlu0 %v1478, 20
      %v1546 = vpop.permute.xlu0 %1545
      %1547 = vrot.lane.b32.xlu0 %v1479, 20
      %v1548 = vpop.permute.xlu0 %1547
      %1549 = vrot.lane.b32.xlu0 %v1480, 20
      %v1550 = vpop.permute.xlu0 %1549
      %1551 = vrot.lane.b32.xlu0 %v1481, 20
      %v1552 = vpop.permute.xlu0 %1551
      %1553 = vrot.lane.b32.xlu0 %v1482, 20
      %v1554 = vpop.permute.xlu0 %1553
      %1555 = vrot.lane.b32.xlu0 %v1483, 20
      %v1556 = vpop.permute.xlu0 %1555
      %1557 = vrot.lane.b32.xlu0 %v1484, 20
      %v1558 = vpop.permute.xlu0 %1557
      %1559 = vrot.lane.b32.xlu0 %v1485, 20
      %v1560 = vpop.permute.xlu0 %1559
      %1561 = vrot.lane.b32.xlu0 %v1486, 20
      %v1562 = vpop.permute.xlu0 %1561
      %1563 = vrot.lane.b32.xlu0 %v1487, 20
      %v1564 = vpop.permute.xlu0 %1563
      %1565 = vrot.lane.b32.xlu0 %v1488, 20
      %v1566 = vpop.permute.xlu0 %1565
      %1567 = vrot.lane.b32.xlu0 %v1489, 20
      %v1568 = vpop.permute.xlu0 %1567
      %1569 = vrot.lane.b32.xlu0 %v1490, 20
      %v1570 = vpop.permute.xlu0 %1569
      %1571 = vrot.lane.b32.xlu0 %v1491, 20
      %v1572 = vpop.permute.xlu0 %1571
      %1573 = vrot.lane.b32.xlu0 %v1492, 20
      %v1574 = vpop.permute.xlu0 %1573
      %1575 = vrot.lane.b32.xlu0 %v1493, 20
      %v1576 = vpop.permute.xlu0 %1575
      %1577 = vrot.lane.b32.xlu0 %v1494, 20
      %v1578 = vpop.permute.xlu0 %1577
      %1579 = vrot.lane.b32.xlu0 %v1495, 20
      %v1580 = vpop.permute.xlu0 %1579
      %1581 = vrot.lane.b32.xlu0 %v1496, 20
      %v1582 = vpop.permute.xlu0 %1581
      %1583 = vrot.lane.b32.xlu0 %v1497, 20
      %v1584 = vpop.permute.xlu0 %1583
      %1585 = vrot.lane.b32.xlu0 %v1498, 20
      %v1586 = vpop.permute.xlu0 %1585
      %1587 = vrot.lane.b32.xlu0 %v1499, 20
      %v1588 = vpop.permute.xlu0 %1587
      %1589 = vrot.lane.b32.xlu0 %v1500, 20
      %v1590 = vpop.permute.xlu0 %1589
      %1591 = vrot.lane.b32.xlu0 %v1501, 20
      %v1592 = vpop.permute.xlu0 %1591
      %1593 = vrot.lane.b32.xlu0 %v1502, 20
      %v1594 = vpop.permute.xlu0 %1593
      %1595 = vrot.lane.b32.xlu0 %v1503, 20
      %v1596 = vpop.permute.xlu0 %1595
      %1597 = vrot.lane.b32.xlu0 %v1504, 20
      %v1598 = vpop.permute.xlu0 %1597
      %1599 = vrot.lane.b32.xlu0 %v1505, 20
      %v1600 = vpop.permute.xlu0 %1599
      %1601 = vrot.lane.b32.xlu0 %v1506, 20
      %v1602 = vpop.permute.xlu0 %1601
      %vm1635 = vcmask 195744
      %1636 = vst.msk [vmem:[#allocation4] sm:$0xff] %vm1635, %v1540
      %1637 = vst.msk [vmem:[#allocation4 + $0x8] sm:$0xff] %vm1635, %v1542
      %1638 = vst.msk [vmem:[#allocation4 + $0x10] sm:$0xff] %vm1635, %v1544
      %1639 = vst.msk [vmem:[#allocation4 + $0x18] sm:$0xff] %vm1635, %v1546
      %1640 = vst.msk [vmem:[#allocation4 + $0x20] sm:$0xff] %vm1635, %v1548
      %1641 = vst.msk [vmem:[#allocation4 + $0x28] sm:$0xff] %vm1635, %v1550
      %1642 = vst.msk [vmem:[#allocation4 + $0x30] sm:$0xff] %vm1635, %v1552
      %1643 = vst.msk [vmem:[#allocation4 + $0x38] sm:$0xff] %vm1635, %v1554
      %1644 = vst.msk [vmem:[#allocation4 + $0x40] sm:$0xff] %vm1635, %v1556
      %1645 = vst.msk [vmem:[#allocation4 + $0x48] sm:$0xff] %vm1635, %v1558
      %1646 = vst.msk [vmem:[#allocation4 + $0x50] sm:$0xff] %vm1635, %v1560
      %1647 = vst.msk [vmem:[#allocation4 + $0x58] sm:$0xff] %vm1635, %v1562
      %1648 = vst.msk [vmem:[#allocation4 + $0x60] sm:$0xff] %vm1635, %v1564
      %1649 = vst.msk [vmem:[#allocation4 + $0x68] sm:$0xff] %vm1635, %v1566
      %1650 = vst.msk [vmem:[#allocation4 + $0x70] sm:$0xff] %vm1635, %v1568
      %1651 = vst.msk [vmem:[#allocation4 + $0x78] sm:$0xff] %vm1635, %v1570
      %1652 = vst.msk [vmem:[#allocation4 + $0x80] sm:$0xff] %vm1635, %v1572
      %1653 = vst.msk [vmem:[#allocation4 + $0x88] sm:$0xff] %vm1635, %v1574
      %1654 = vst.msk [vmem:[#allocation4 + $0x90] sm:$0xff] %vm1635, %v1576
      %1655 = vst.msk [vmem:[#allocation4 + $0x98] sm:$0xff] %vm1635, %v1578
      %1656 = vst.msk [vmem:[#allocation4 + $0xa0] sm:$0xff] %vm1635, %v1580
      %1657 = vst.msk [vmem:[#allocation4 + $0xa8] sm:$0xff] %vm1635, %v1582
      %1658 = vst.msk [vmem:[#allocation4 + $0xb0] sm:$0xff] %vm1635, %v1584
      %1659 = vst.msk [vmem:[#allocation4 + $0xb8] sm:$0xff] %vm1635, %v1586
      %1660 = vst.msk [vmem:[#allocation4 + $0xc0] sm:$0xff] %vm1635, %v1588
      %1661 = vst.msk [vmem:[#allocation4 + $0xc8] sm:$0xff] %vm1635, %v1590
      %1662 = vst.msk [vmem:[#allocation4 + $0xd0] sm:$0xff] %vm1635, %v1592
      %1663 = vst.msk [vmem:[#allocation4 + $0xd8] sm:$0xff] %vm1635, %v1594
      %1664 = vst.msk [vmem:[#allocation4 + $0xe0] sm:$0xff] %vm1635, %v1596
      %1665 = vst.msk [vmem:[#allocation4 + $0xe8] sm:$0xff] %vm1635, %v1598
      %1666 = vst.msk [vmem:[#allocation4 + $0xf0] sm:$0xff] %vm1635, %v1600
      %1667 = vst.msk [vmem:[#allocation4 + $0xf8] sm:$0xff] %vm1635, %v1602
      %s1668 = scalar_lea.vmem [#allocation2], 48
      %v1669 = vld [vmem:[%s1668] sm:$0xff]
      %v1670 = vld [vmem:[%s1668 + $0x8] sm:$0xff]
      %v1671 = vld [vmem:[%s1668 + $0x18] sm:$0xff]
      %v1672 = vld [vmem:[%s1668 + $0x20] sm:$0xff]
      %v1673 = vld [vmem:[%s1668 + $0x30] sm:$0xff]
      %v1674 = vld [vmem:[%s1668 + $0x38] sm:$0xff]
      %v1675 = vld [vmem:[%s1668 + $0x48] sm:$0xff]
      %v1676 = vld [vmem:[%s1668 + $0x50] sm:$0xff]
      %v1677 = vld [vmem:[%s1668 + $0x60] sm:$0xff]
      %v1678 = vld [vmem:[%s1668 + $0x68] sm:$0xff]
      %v1679 = vld [vmem:[%s1668 + $0x78] sm:$0xff]
      %v1680 = vld [vmem:[%s1668 + $0x80] sm:$0xff]
      %v1681 = vld [vmem:[%s1668 + $0x90] sm:$0xff]
      %v1682 = vld [vmem:[%s1668 + $0x98] sm:$0xff]
      %v1683 = vld [vmem:[%s1668 + $0xa8] sm:$0xff]
      %v1684 = vld [vmem:[%s1668 + $0xb0] sm:$0xff]
      %v1685 = vld [vmem:[%s1668 + $0xc0] sm:$0xff]
      %v1686 = vld [vmem:[%s1668 + $0xc8] sm:$0xff]
      %v1687 = vld [vmem:[%s1668 + $0xd8] sm:$0xff]
      %v1688 = vld [vmem:[%s1668 + $0xe0] sm:$0xff]
      %v1689 = vld [vmem:[%s1668 + $0xf0] sm:$0xff]
      %v1690 = vld [vmem:[%s1668 + $0xf8] sm:$0xff]
      %v1691 = vld [vmem:[%s1668 + $0x108] sm:$0xff]
      %v1692 = vld [vmem:[%s1668 + $0x110] sm:$0xff]
      %v1693 = vld [vmem:[%s1668 + $0x120] sm:$0xff]
      %v1694 = vld [vmem:[%s1668 + $0x128] sm:$0xff]
      %v1695 = vld [vmem:[%s1668 + $0x138] sm:$0xff]
      %v1696 = vld [vmem:[%s1668 + $0x140] sm:$0xff]
      %v1697 = vld [vmem:[%s1668 + $0x150] sm:$0xff]
      %v1698 = vld [vmem:[%s1668 + $0x158] sm:$0xff]
      %v1699 = vld [vmem:[%s1668 + $0x168] sm:$0xff]
      %v1700 = vld [vmem:[%s1668 + $0x170] sm:$0xff]
      %1733 = vrot.lane.b32.xlu0 %v1669, 24
      %v1734 = vpop.permute.xlu0 %1733
      %1735 = vrot.lane.b32.xlu0 %v1670, 24
      %v1736 = vpop.permute.xlu0 %1735
      %1737 = vrot.lane.b32.xlu0 %v1671, 24
      %v1738 = vpop.permute.xlu0 %1737
      %1739 = vrot.lane.b32.xlu0 %v1672, 24
      %v1740 = vpop.permute.xlu0 %1739
      %1741 = vrot.lane.b32.xlu0 %v1673, 24
      %v1742 = vpop.permute.xlu0 %1741
      %1743 = vrot.lane.b32.xlu0 %v1674, 24
      %v1744 = vpop.permute.xlu0 %1743
      %1745 = vrot.lane.b32.xlu0 %v1675, 24
      %v1746 = vpop.permute.xlu0 %1745
      %1747 = vrot.lane.b32.xlu0 %v1676, 24
      %v1748 = vpop.permute.xlu0 %1747
      %1749 = vrot.lane.b32.xlu0 %v1677, 24
      %v1750 = vpop.permute.xlu0 %1749
      %1751 = vrot.lane.b32.xlu0 %v1678, 24
      %v1752 = vpop.permute.xlu0 %1751
      %1753 = vrot.lane.b32.xlu0 %v1679, 24
      %v1754 = vpop.permute.xlu0 %1753
      %1755 = vrot.lane.b32.xlu0 %v1680, 24
      %v1756 = vpop.permute.xlu0 %1755
      %1757 = vrot.lane.b32.xlu0 %v1681, 24
      %v1758 = vpop.permute.xlu0 %1757
      %1759 = vrot.lane.b32.xlu0 %v1682, 24
      %v1760 = vpop.permute.xlu0 %1759
      %1761 = vrot.lane.b32.xlu0 %v1683, 24
      %v1762 = vpop.permute.xlu0 %1761
      %1763 = vrot.lane.b32.xlu0 %v1684, 24
      %v1764 = vpop.permute.xlu0 %1763
      %1765 = vrot.lane.b32.xlu0 %v1685, 24
      %v1766 = vpop.permute.xlu0 %1765
      %1767 = vrot.lane.b32.xlu0 %v1686, 24
      %v1768 = vpop.permute.xlu0 %1767
      %1769 = vrot.lane.b32.xlu0 %v1687, 24
      %v1770 = vpop.permute.xlu0 %1769
      %1771 = vrot.lane.b32.xlu0 %v1688, 24
      %v1772 = vpop.permute.xlu0 %1771
      %1773 = vrot.lane.b32.xlu0 %v1689, 24
      %v1774 = vpop.permute.xlu0 %1773
      %1775 = vrot.lane.b32.xlu0 %v1690, 24
      %v1776 = vpop.permute.xlu0 %1775
      %1777 = vrot.lane.b32.xlu0 %v1691, 24
      %v1778 = vpop.permute.xlu0 %1777
      %1779 = vrot.lane.b32.xlu0 %v1692, 24
      %v1780 = vpop.permute.xlu0 %1779
      %1781 = vrot.lane.b32.xlu0 %v1693, 24
      %v1782 = vpop.permute.xlu0 %1781
      %1783 = vrot.lane.b32.xlu0 %v1694, 24
      %v1784 = vpop.permute.xlu0 %1783
      %1785 = vrot.lane.b32.xlu0 %v1695, 24
      %v1786 = vpop.permute.xlu0 %1785
      %1787 = vrot.lane.b32.xlu0 %v1696, 24
      %v1788 = vpop.permute.xlu0 %1787
      %1789 = vrot.lane.b32.xlu0 %v1697, 24
      %v1790 = vpop.permute.xlu0 %1789
      %1791 = vrot.lane.b32.xlu0 %v1698, 24
      %v1792 = vpop.permute.xlu0 %1791
      %1793 = vrot.lane.b32.xlu0 %v1699, 24
      %v1794 = vpop.permute.xlu0 %1793
      %1795 = vrot.lane.b32.xlu0 %v1700, 24
      %v1796 = vpop.permute.xlu0 %1795
      %vm1829 = vcmask 228544
      %1830 = vst.msk [vmem:[#allocation4] sm:$0xff] %vm1829, %v1734
      %1831 = vst.msk [vmem:[#allocation4 + $0x8] sm:$0xff] %vm1829, %v1736
      %1832 = vst.msk [vmem:[#allocation4 + $0x10] sm:$0xff] %vm1829, %v1738
      %1833 = vst.msk [vmem:[#allocation4 + $0x18] sm:$0xff] %vm1829, %v1740
      %1834 = vst.msk [vmem:[#allocation4 + $0x20] sm:$0xff] %vm1829, %v1742
      %1835 = vst.msk [vmem:[#allocation4 + $0x28] sm:$0xff] %vm1829, %v1744
      %1836 = vst.msk [vmem:[#allocation4 + $0x30] sm:$0xff] %vm1829, %v1746
      %1837 = vst.msk [vmem:[#allocation4 + $0x38] sm:$0xff] %vm1829, %v1748
      %1838 = vst.msk [vmem:[#allocation4 + $0x40] sm:$0xff] %vm1829, %v1750
      %1839 = vst.msk [vmem:[#allocation4 + $0x48] sm:$0xff] %vm1829, %v1752
      %1840 = vst.msk [vmem:[#allocation4 + $0x50] sm:$0xff] %vm1829, %v1754
      %1841 = vst.msk [vmem:[#allocation4 + $0x58] sm:$0xff] %vm1829, %v1756
      %1842 = vst.msk [vmem:[#allocation4 + $0x60] sm:$0xff] %vm1829, %v1758
      %1843 = vst.msk [vmem:[#allocation4 + $0x68] sm:$0xff] %vm1829, %v1760
      %1844 = vst.msk [vmem:[#allocation4 + $0x70] sm:$0xff] %vm1829, %v1762
      %1845 = vst.msk [vmem:[#allocation4 + $0x78] sm:$0xff] %vm1829, %v1764
      %1846 = vst.msk [vmem:[#allocation4 + $0x80] sm:$0xff] %vm1829, %v1766
      %1847 = vst.msk [vmem:[#allocation4 + $0x88] sm:$0xff] %vm1829, %v1768
      %1848 = vst.msk [vmem:[#allocation4 + $0x90] sm:$0xff] %vm1829, %v1770
      %1849 = vst.msk [vmem:[#allocation4 + $0x98] sm:$0xff] %vm1829, %v1772
      %1850 = vst.msk [vmem:[#allocation4 + $0xa0] sm:$0xff] %vm1829, %v1774
      %1851 = vst.msk [vmem:[#allocation4 + $0xa8] sm:$0xff] %vm1829, %v1776
      %1852 = vst.msk [vmem:[#allocation4 + $0xb0] sm:$0xff] %vm1829, %v1778
      %1853 = vst.msk [vmem:[#allocation4 + $0xb8] sm:$0xff] %vm1829, %v1780
      %1854 = vst.msk [vmem:[#allocation4 + $0xc0] sm:$0xff] %vm1829, %v1782
      %1855 = vst.msk [vmem:[#allocation4 + $0xc8] sm:$0xff] %vm1829, %v1784
      %1856 = vst.msk [vmem:[#allocation4 + $0xd0] sm:$0xff] %vm1829, %v1786
      %1857 = vst.msk [vmem:[#allocation4 + $0xd8] sm:$0xff] %vm1829, %v1788
      %1858 = vst.msk [vmem:[#allocation4 + $0xe0] sm:$0xff] %vm1829, %v1790
      %1859 = vst.msk [vmem:[#allocation4 + $0xe8] sm:$0xff] %vm1829, %v1792
      %1860 = vst.msk [vmem:[#allocation4 + $0xf0] sm:$0xff] %vm1829, %v1794
      %1861 = vst.msk [vmem:[#allocation4 + $0xf8] sm:$0xff] %vm1829, %v1796
      %v1862 = vld [vmem:[%s1668 + $0x1] sm:$0xff]
      %v1863 = vld [vmem:[%s1668 + $0x9] sm:$0xff]
      %v1864 = vld [vmem:[%s1668 + $0x19] sm:$0xff]
      %v1865 = vld [vmem:[%s1668 + $0x21] sm:$0xff]
      %v1866 = vld [vmem:[%s1668 + $0x31] sm:$0xff]
      %v1867 = vld [vmem:[%s1668 + $0x39] sm:$0xff]
      %v1868 = vld [vmem:[%s1668 + $0x49] sm:$0xff]
      %v1869 = vld [vmem:[%s1668 + $0x51] sm:$0xff]
      %v1870 = vld [vmem:[%s1668 + $0x61] sm:$0xff]
      %v1871 = vld [vmem:[%s1668 + $0x69] sm:$0xff]
      %v1872 = vld [vmem:[%s1668 + $0x79] sm:$0xff]
      %v1873 = vld [vmem:[%s1668 + $0x81] sm:$0xff]
      %v1874 = vld [vmem:[%s1668 + $0x91] sm:$0xff]
      %v1875 = vld [vmem:[%s1668 + $0x99] sm:$0xff]
      %v1876 = vld [vmem:[%s1668 + $0xa9] sm:$0xff]
      %v1877 = vld [vmem:[%s1668 + $0xb1] sm:$0xff]
      %v1878 = vld [vmem:[%s1668 + $0xc1] sm:$0xff]
      %v1879 = vld [vmem:[%s1668 + $0xc9] sm:$0xff]
      %v1880 = vld [vmem:[%s1668 + $0xd9] sm:$0xff]
      %v1881 = vld [vmem:[%s1668 + $0xe1] sm:$0xff]
      %v1882 = vld [vmem:[%s1668 + $0xf1] sm:$0xff]
      %v1883 = vld [vmem:[%s1668 + $0xf9] sm:$0xff]
      %v1884 = vld [vmem:[%s1668 + $0x109] sm:$0xff]
      %v1885 = vld [vmem:[%s1668 + $0x111] sm:$0xff]
      %v1886 = vld [vmem:[%s1668 + $0x121] sm:$0xff]
      %v1887 = vld [vmem:[%s1668 + $0x129] sm:$0xff]
      %v1888 = vld [vmem:[%s1668 + $0x139] sm:$0xff]
      %v1889 = vld [vmem:[%s1668 + $0x141] sm:$0xff]
      %v1890 = vld [vmem:[%s1668 + $0x151] sm:$0xff]
      %v1891 = vld [vmem:[%s1668 + $0x159] sm:$0xff]
      %v1892 = vld [vmem:[%s1668 + $0x169] sm:$0xff]
      %v1893 = vld [vmem:[%s1668 + $0x171] sm:$0xff]
      %1926 = vrot.lane.b32.xlu0 %v1862, 28
      %v1927 = vpop.permute.xlu0 %1926
      %1928 = vrot.lane.b32.xlu0 %v1863, 28
      %v1929 = vpop.permute.xlu0 %1928
      %1930 = vrot.lane.b32.xlu0 %v1864, 28
      %v1931 = vpop.permute.xlu0 %1930
      %1932 = vrot.lane.b32.xlu0 %v1865, 28
      %v1933 = vpop.permute.xlu0 %1932
      %1934 = vrot.lane.b32.xlu0 %v1866, 28
      %v1935 = vpop.permute.xlu0 %1934
      %1936 = vrot.lane.b32.xlu0 %v1867, 28
      %v1937 = vpop.permute.xlu0 %1936
      %1938 = vrot.lane.b32.xlu0 %v1868, 28
      %v1939 = vpop.permute.xlu0 %1938
      %1940 = vrot.lane.b32.xlu0 %v1869, 28
      %v1941 = vpop.permute.xlu0 %1940
      %1942 = vrot.lane.b32.xlu0 %v1870, 28
      %v1943 = vpop.permute.xlu0 %1942
      %1944 = vrot.lane.b32.xlu0 %v1871, 28
      %v1945 = vpop.permute.xlu0 %1944
      %1946 = vrot.lane.b32.xlu0 %v1872, 28
      %v1947 = vpop.permute.xlu0 %1946
      %1948 = vrot.lane.b32.xlu0 %v1873, 28
      %v1949 = vpop.permute.xlu0 %1948
      %1950 = vrot.lane.b32.xlu0 %v1874, 28
      %v1951 = vpop.permute.xlu0 %1950
      %1952 = vrot.lane.b32.xlu0 %v1875, 28
      %v1953 = vpop.permute.xlu0 %1952
      %1954 = vrot.lane.b32.xlu0 %v1876, 28
      %v1955 = vpop.permute.xlu0 %1954
      %1956 = vrot.lane.b32.xlu0 %v1877, 28
      %v1957 = vpop.permute.xlu0 %1956
      %1958 = vrot.lane.b32.xlu0 %v1878, 28
      %v1959 = vpop.permute.xlu0 %1958
      %1960 = vrot.lane.b32.xlu0 %v1879, 28
      %v1961 = vpop.permute.xlu0 %1960
      %1962 = vrot.lane.b32.xlu0 %v1880, 28
      %v1963 = vpop.permute.xlu0 %1962
      %1964 = vrot.lane.b32.xlu0 %v1881, 28
      %v1965 = vpop.permute.xlu0 %1964
      %1966 = vrot.lane.b32.xlu0 %v1882, 28
      %v1967 = vpop.permute.xlu0 %1966
      %1968 = vrot.lane.b32.xlu0 %v1883, 28
      %v1969 = vpop.permute.xlu0 %1968
      %1970 = vrot.lane.b32.xlu0 %v1884, 28
      %v1971 = vpop.permute.xlu0 %1970
      %1972 = vrot.lane.b32.xlu0 %v1885, 28
      %v1973 = vpop.permute.xlu0 %1972
      %1974 = vrot.lane.b32.xlu0 %v1886, 28
      %v1975 = vpop.permute.xlu0 %1974
      %1976 = vrot.lane.b32.xlu0 %v1887, 28
      %v1977 = vpop.permute.xlu0 %1976
      %1978 = vrot.lane.b32.xlu0 %v1888, 28
      %v1979 = vpop.permute.xlu0 %1978
      %1980 = vrot.lane.b32.xlu0 %v1889, 28
      %v1981 = vpop.permute.xlu0 %1980
      %1982 = vrot.lane.b32.xlu0 %v1890, 28
      %v1983 = vpop.permute.xlu0 %1982
      %1984 = vrot.lane.b32.xlu0 %v1891, 28
      %v1985 = vpop.permute.xlu0 %1984
      %1986 = vrot.lane.b32.xlu0 %v1892, 28
      %v1987 = vpop.permute.xlu0 %1986
      %1988 = vrot.lane.b32.xlu0 %v1893, 28
      %v1989 = vpop.permute.xlu0 %1988
      %vm2022 = vcmask 261344
      %2023 = vst.msk [vmem:[#allocation4] sm:$0xff] %vm2022, %v1927
      %2024 = vst.msk [vmem:[#allocation4 + $0x8] sm:$0xff] %vm2022, %v1929
      %2025 = vst.msk [vmem:[#allocation4 + $0x10] sm:$0xff] %vm2022, %v1931
      %2026 = vst.msk [vmem:[#allocation4 + $0x18] sm:$0xff] %vm2022, %v1933
      %2027 = vst.msk [vmem:[#allocation4 + $0x20] sm:$0xff] %vm2022, %v1935
      %2028 = vst.msk [vmem:[#allocation4 + $0x28] sm:$0xff] %vm2022, %v1937
      %2029 = vst.msk [vmem:[#allocation4 + $0x30] sm:$0xff] %vm2022, %v1939
      %2030 = vst.msk [vmem:[#allocation4 + $0x38] sm:$0xff] %vm2022, %v1941
      %2031 = vst.msk [vmem:[#allocation4 + $0x40] sm:$0xff] %vm2022, %v1943
      %2032 = vst.msk [vmem:[#allocation4 + $0x48] sm:$0xff] %vm2022, %v1945
      %2033 = vst.msk [vmem:[#allocation4 + $0x50] sm:$0xff] %vm2022, %v1947
      %2034 = vst.msk [vmem:[#allocation4 + $0x58] sm:$0xff] %vm2022, %v1949
      %2035 = vst.msk [vmem:[#allocation4 + $0x60] sm:$0xff] %vm2022, %v1951
      %2036 = vst.msk [vmem:[#allocation4 + $0x68] sm:$0xff] %vm2022, %v1953
      %2037 = vst.msk [vmem:[#allocation4 + $0x70] sm:$0xff] %vm2022, %v1955
      %2038 = vst.msk [vmem:[#allocation4 + $0x78] sm:$0xff] %vm2022, %v1957
      %2039 = vst.msk [vmem:[#allocation4 + $0x80] sm:$0xff] %vm2022, %v1959
      %2040 = vst.msk [vmem:[#allocation4 + $0x88] sm:$0xff] %vm2022, %v1961
      %2041 = vst.msk [vmem:[#allocation4 + $0x90] sm:$0xff] %vm2022, %v1963
      %2042 = vst.msk [vmem:[#allocation4 + $0x98] sm:$0xff] %vm2022, %v1965
      %2043 = vst.msk [vmem:[#allocation4 + $0xa0] sm:$0xff] %vm2022, %v1967
      %2044 = vst.msk [vmem:[#allocation4 + $0xa8] sm:$0xff] %vm2022, %v1969
      %2045 = vst.msk [vmem:[#allocation4 + $0xb0] sm:$0xff] %vm2022, %v1971
      %2046 = vst.msk [vmem:[#allocation4 + $0xb8] sm:$0xff] %vm2022, %v1973
      %2047 = vst.msk [vmem:[#allocation4 + $0xc0] sm:$0xff] %vm2022, %v1975
      %2048 = vst.msk [vmem:[#allocation4 + $0xc8] sm:$0xff] %vm2022, %v1977
      %2049 = vst.msk [vmem:[#allocation4 + $0xd0] sm:$0xff] %vm2022, %v1979
      %2050 = vst.msk [vmem:[#allocation4 + $0xd8] sm:$0xff] %vm2022, %v1981
      %2051 = vst.msk [vmem:[#allocation4 + $0xe0] sm:$0xff] %vm2022, %v1983
      %2052 = vst.msk [vmem:[#allocation4 + $0xe8] sm:$0xff] %vm2022, %v1985
      %2053 = vst.msk [vmem:[#allocation4 + $0xf0] sm:$0xff] %vm2022, %v1987
      %2054 = vst.msk [vmem:[#allocation4 + $0xf8] sm:$0xff] %vm2022, %v1989
      %v2055 = vld [vmem:[%s1668 + $0x2] sm:$0xff]
      %v2056 = vld [vmem:[%s1668 + $0xa] sm:$0xff]
      %v2057 = vld [vmem:[%s1668 + $0x1a] sm:$0xff]
      %v2058 = vld [vmem:[%s1668 + $0x22] sm:$0xff]
      %v2059 = vld [vmem:[%s1668 + $0x32] sm:$0xff]
      %v2060 = vld [vmem:[%s1668 + $0x3a] sm:$0xff]
      %v2061 = vld [vmem:[%s1668 + $0x4a] sm:$0xff]
      %v2062 = vld [vmem:[%s1668 + $0x52] sm:$0xff]
      %v2063 = vld [vmem:[%s1668 + $0x62] sm:$0xff]
      %v2064 = vld [vmem:[%s1668 + $0x6a] sm:$0xff]
      %v2065 = vld [vmem:[%s1668 + $0x7a] sm:$0xff]
      %v2066 = vld [vmem:[%s1668 + $0x82] sm:$0xff]
      %v2067 = vld [vmem:[%s1668 + $0x92] sm:$0xff]
      %v2068 = vld [vmem:[%s1668 + $0x9a] sm:$0xff]
      %v2069 = vld [vmem:[%s1668 + $0xaa] sm:$0xff]
      %v2070 = vld [vmem:[%s1668 + $0xb2] sm:$0xff]
      %v2071 = vld [vmem:[%s1668 + $0xc2] sm:$0xff]
      %v2072 = vld [vmem:[%s1668 + $0xca] sm:$0xff]
      %v2073 = vld [vmem:[%s1668 + $0xda] sm:$0xff]
      %v2074 = vld [vmem:[%s1668 + $0xe2] sm:$0xff]
      %v2075 = vld [vmem:[%s1668 + $0xf2] sm:$0xff]
      %v2076 = vld [vmem:[%s1668 + $0xfa] sm:$0xff]
      %v2077 = vld [vmem:[%s1668 + $0x10a] sm:$0xff]
      %v2078 = vld [vmem:[%s1668 + $0x112] sm:$0xff]
      %v2079 = vld [vmem:[%s1668 + $0x122] sm:$0xff]
      %v2080 = vld [vmem:[%s1668 + $0x12a] sm:$0xff]
      %v2081 = vld [vmem:[%s1668 + $0x13a] sm:$0xff]
      %v2082 = vld [vmem:[%s1668 + $0x142] sm:$0xff]
      %v2083 = vld [vmem:[%s1668 + $0x152] sm:$0xff]
      %v2084 = vld [vmem:[%s1668 + $0x15a] sm:$0xff]
      %v2085 = vld [vmem:[%s1668 + $0x16a] sm:$0xff]
      %v2086 = vld [vmem:[%s1668 + $0x172] sm:$0xff]
      %2119 = vrot.lane.b32.xlu0 %v2055, 32
      %v2120 = vpop.permute.xlu0 %2119
      %2121 = vrot.lane.b32.xlu0 %v2056, 32
      %v2122 = vpop.permute.xlu0 %2121
      %2123 = vrot.lane.b32.xlu0 %v2057, 32
      %v2124 = vpop.permute.xlu0 %2123
      %2125 = vrot.lane.b32.xlu0 %v2058, 32
      %v2126 = vpop.permute.xlu0 %2125
      %2127 = vrot.lane.b32.xlu0 %v2059, 32
      %v2128 = vpop.permute.xlu0 %2127
      %2129 = vrot.lane.b32.xlu0 %v2060, 32
      %v2130 = vpop.permute.xlu0 %2129
      %2131 = vrot.lane.b32.xlu0 %v2061, 32
      %v2132 = vpop.permute.xlu0 %2131
      %2133 = vrot.lane.b32.xlu0 %v2062, 32
      %v2134 = vpop.permute.xlu0 %2133
      %2135 = vrot.lane.b32.xlu0 %v2063, 32
      %v2136 = vpop.permute.xlu0 %2135
      %2137 = vrot.lane.b32.xlu0 %v2064, 32
      %v2138 = vpop.permute.xlu0 %2137
      %2139 = vrot.lane.b32.xlu0 %v2065, 32
      %v2140 = vpop.permute.xlu0 %2139
      %2141 = vrot.lane.b32.xlu0 %v2066, 32
      %v2142 = vpop.permute.xlu0 %2141
      %2143 = vrot.lane.b32.xlu0 %v2067, 32
      %v2144 = vpop.permute.xlu0 %2143
      %2145 = vrot.lane.b32.xlu0 %v2068, 32
      %v2146 = vpop.permute.xlu0 %2145
      %2147 = vrot.lane.b32.xlu0 %v2069, 32
      %v2148 = vpop.permute.xlu0 %2147
      %2149 = vrot.lane.b32.xlu0 %v2070, 32
      %v2150 = vpop.permute.xlu0 %2149
      %2151 = vrot.lane.b32.xlu0 %v2071, 32
      %v2152 = vpop.permute.xlu0 %2151
      %2153 = vrot.lane.b32.xlu0 %v2072, 32
      %v2154 = vpop.permute.xlu0 %2153
      %2155 = vrot.lane.b32.xlu0 %v2073, 32
      %v2156 = vpop.permute.xlu0 %2155
      %2157 = vrot.lane.b32.xlu0 %v2074, 32
      %v2158 = vpop.permute.xlu0 %2157
      %2159 = vrot.lane.b32.xlu0 %v2075, 32
      %v2160 = vpop.permute.xlu0 %2159
      %2161 = vrot.lane.b32.xlu0 %v2076, 32
      %v2162 = vpop.permute.xlu0 %2161
      %2163 = vrot.lane.b32.xlu0 %v2077, 32
      %v2164 = vpop.permute.xlu0 %2163
      %2165 = vrot.lane.b32.xlu0 %v2078, 32
      %v2166 = vpop.permute.xlu0 %2165
      %2167 = vrot.lane.b32.xlu0 %v2079, 32
      %v2168 = vpop.permute.xlu0 %2167
      %2169 = vrot.lane.b32.xlu0 %v2080, 32
      %v2170 = vpop.permute.xlu0 %2169
      %2171 = vrot.lane.b32.xlu0 %v2081, 32
      %v2172 = vpop.permute.xlu0 %2171
      %2173 = vrot.lane.b32.xlu0 %v2082, 32
      %v2174 = vpop.permute.xlu0 %2173
      %2175 = vrot.lane.b32.xlu0 %v2083, 32
      %v2176 = vpop.permute.xlu0 %2175
      %2177 = vrot.lane.b32.xlu0 %v2084, 32
      %v2178 = vpop.permute.xlu0 %2177
      %2179 = vrot.lane.b32.xlu0 %v2085, 32
      %v2180 = vpop.permute.xlu0 %2179
      %2181 = vrot.lane.b32.xlu0 %v2086, 32
      %v2182 = vpop.permute.xlu0 %2181
      %vm2215 = vcmask 294144
      %2216 = vst.msk [vmem:[#allocation4] sm:$0xff] %vm2215, %v2120
      %2217 = vst.msk [vmem:[#allocation4 + $0x8] sm:$0xff] %vm2215, %v2122
      %2218 = vst.msk [vmem:[#allocation4 + $0x10] sm:$0xff] %vm2215, %v2124
      %2219 = vst.msk [vmem:[#allocation4 + $0x18] sm:$0xff] %vm2215, %v2126
      %2220 = vst.msk [vmem:[#allocation4 + $0x20] sm:$0xff] %vm2215, %v2128
      %2221 = vst.msk [vmem:[#allocation4 + $0x28] sm:$0xff] %vm2215, %v2130
      %2222 = vst.msk [vmem:[#allocation4 + $0x30] sm:$0xff] %vm2215, %v2132
      %2223 = vst.msk [vmem:[#allocation4 + $0x38] sm:$0xff] %vm2215, %v2134
      %2224 = vst.msk [vmem:[#allocation4 + $0x40] sm:$0xff] %vm2215, %v2136
      %2225 = vst.msk [vmem:[#allocation4 + $0x48] sm:$0xff] %vm2215, %v2138
      %2226 = vst.msk [vmem:[#allocation4 + $0x50] sm:$0xff] %vm2215, %v2140
      %2227 = vst.msk [vmem:[#allocation4 + $0x58] sm:$0xff] %vm2215, %v2142
      %2228 = vst.msk [vmem:[#allocation4 + $0x60] sm:$0xff] %vm2215, %v2144
      %2229 = vst.msk [vmem:[#allocation4 + $0x68] sm:$0xff] %vm2215, %v2146
      %2230 = vst.msk [vmem:[#allocation4 + $0x70] sm:$0xff] %vm2215, %v2148
      %2231 = vst.msk [vmem:[#allocation4 + $0x78] sm:$0xff] %vm2215, %v2150
      %2232 = vst.msk [vmem:[#allocation4 + $0x80] sm:$0xff] %vm2215, %v2152
      %2233 = vst.msk [vmem:[#allocation4 + $0x88] sm:$0xff] %vm2215, %v2154
      %2234 = vst.msk [vmem:[#allocation4 + $0x90] sm:$0xff] %vm2215, %v2156
      %2235 = vst.msk [vmem:[#allocation4 + $0x98] sm:$0xff] %vm2215, %v2158
      %2236 = vst.msk [vmem:[#allocation4 + $0xa0] sm:$0xff] %vm2215, %v2160
      %2237 = vst.msk [vmem:[#allocation4 + $0xa8] sm:$0xff] %vm2215, %v2162
      %2238 = vst.msk [vmem:[#allocation4 + $0xb0] sm:$0xff] %vm2215, %v2164
      %2239 = vst.msk [vmem:[#allocation4 + $0xb8] sm:$0xff] %vm2215, %v2166
      %2240 = vst.msk [vmem:[#allocation4 + $0xc0] sm:$0xff] %vm2215, %v2168
      %2241 = vst.msk [vmem:[#allocation4 + $0xc8] sm:$0xff] %vm2215, %v2170
      %2242 = vst.msk [vmem:[#allocation4 + $0xd0] sm:$0xff] %vm2215, %v2172
      %2243 = vst.msk [vmem:[#allocation4 + $0xd8] sm:$0xff] %vm2215, %v2174
      %2244 = vst.msk [vmem:[#allocation4 + $0xe0] sm:$0xff] %vm2215, %v2176
      %2245 = vst.msk [vmem:[#allocation4 + $0xe8] sm:$0xff] %vm2215, %v2178
      %2246 = vst.msk [vmem:[#allocation4 + $0xf0] sm:$0xff] %vm2215, %v2180
      %2247 = vst.msk [vmem:[#allocation4 + $0xf8] sm:$0xff] %vm2215, %v2182
      %v2248 = vld [vmem:[#allocation4] sm:$0xff]
      %v2249 = vld [vmem:[#allocation4 + $0x8] sm:$0xff]
      %v2250 = vld [vmem:[#allocation4 + $0x10] sm:$0xff]
      %v2251 = vld [vmem:[#allocation4 + $0x18] sm:$0xff]
      %v2252 = vld [vmem:[#allocation4 + $0x20] sm:$0xff]
      %v2253 = vld [vmem:[#allocation4 + $0x28] sm:$0xff]
      %v2254 = vld [vmem:[#allocation4 + $0x30] sm:$0xff]
      %v2255 = vld [vmem:[#allocation4 + $0x38] sm:$0xff]
      %v2256 = vld [vmem:[#allocation4 + $0x40] sm:$0xff]
      %v2257 = vld [vmem:[#allocation4 + $0x48] sm:$0xff]
      %v2258 = vld [vmem:[#allocation4 + $0x50] sm:$0xff]
      %v2259 = vld [vmem:[#allocation4 + $0x58] sm:$0xff]
      %v2260 = vld [vmem:[#allocation4 + $0x60] sm:$0xff]
      %v2261 = vld [vmem:[#allocation4 + $0x68] sm:$0xff]
      %v2262 = vld [vmem:[#allocation4 + $0x70] sm:$0xff]
      %v2263 = vld [vmem:[#allocation4 + $0x78] sm:$0xff]
      %v2264 = vld [vmem:[#allocation4 + $0x80] sm:$0xff]
      %v2265 = vld [vmem:[#allocation4 + $0x88] sm:$0xff]
      %v2266 = vld [vmem:[#allocation4 + $0x90] sm:$0xff]
      %v2267 = vld [vmem:[#allocation4 + $0x98] sm:$0xff]
      %v2268 = vld [vmem:[#allocation4 + $0xa0] sm:$0xff]
      %v2269 = vld [vmem:[#allocation4 + $0xa8] sm:$0xff]
      %v2270 = vld [vmem:[#allocation4 + $0xb0] sm:$0xff]
      %v2271 = vld [vmem:[#allocation4 + $0xb8] sm:$0xff]
      %v2272 = vld [vmem:[#allocation4 + $0xc0] sm:$0xff]
      %v2273 = vld [vmem:[#allocation4 + $0xc8] sm:$0xff]
      %v2274 = vld [vmem:[#allocation4 + $0xd0] sm:$0xff]
      %v2275 = vld [vmem:[#allocation4 + $0xd8] sm:$0xff]
      %v2276 = vld [vmem:[#allocation4 + $0xe0] sm:$0xff]
      %v2277 = vld [vmem:[#allocation4 + $0xe8] sm:$0xff]
      %v2278 = vld [vmem:[#allocation4 + $0xf0] sm:$0xff]
      %v2279 = vld [vmem:[#allocation4 + $0xf8] sm:$0xff]
      %v2280 = vld [vmem:[%s2] sm:$0xff]
      %v2281 = vld [vmem:[%s2 + $0x8] sm:$0xff]
      %v2282 = vld [vmem:[%s2 + $0x10] sm:$0xff]
      %v2283 = vld [vmem:[%s2 + $0x18] sm:$0xff]
      %v2284 = vld [vmem:[%s2 + $0x20] sm:$0xf]
      %v2285 = vld [vmem:[%s3] sm:$0x1]
      %v2287 = vperm.slane %v2285, 0
      %vm2289 = vcmask 293888
      %v2291 = vsel %vm2289, %v2248, 0
      %v2294 = vsel %vm2289, %v2249, 0
      %v2297 = vsel %vm2289, %v2250, 0
      %v2300 = vsel %vm2289, %v2251, 0
      %v2303 = vsel %vm2289, %v2252, 0
      %v2306 = vsel %vm2289, %v2253, 0
      %v2309 = vsel %vm2289, %v2254, 0
      %v2312 = vsel %vm2289, %v2255, 0
      %v2315 = vsel %vm2289, %v2256, 0
      %v2318 = vsel %vm2289, %v2257, 0
      %v2321 = vsel %vm2289, %v2258, 0
      %v2324 = vsel %vm2289, %v2259, 0
      %v2327 = vsel %vm2289, %v2260, 0
      %v2330 = vsel %vm2289, %v2261, 0
      %v2333 = vsel %vm2289, %v2262, 0
      %v2336 = vsel %vm2289, %v2263, 0
      %v2339 = vsel %vm2289, %v2264, 0
      %v2342 = vsel %vm2289, %v2265, 0
      %v2345 = vsel %vm2289, %v2266, 0
      %v2348 = vsel %vm2289, %v2267, 0
      %v2351 = vsel %vm2289, %v2268, 0
      %v2354 = vsel %vm2289, %v2269, 0
      %v2357 = vsel %vm2289, %v2270, 0
      %v2360 = vsel %vm2289, %v2271, 0
      %v2363 = vsel %vm2289, %v2272, 0
      %v2366 = vsel %vm2289, %v2273, 0
      %v2369 = vsel %vm2289, %v2274, 0
      %v2372 = vsel %vm2289, %v2275, 0
      %v2375 = vsel %vm2289, %v2276, 0
      %v2378 = vsel %vm2289, %v2277, 0
      %v2381 = vsel %vm2289, %v2278, 0
      %v2384 = vsel %vm2289, %v2279, 0
      %vm2386 = vcmask 1043456
      %v2388 = vsel %vm2386, %v2284, 0
      %2390 = vmatpush.msra.mxu0 0.0
      %2391 = vmatpush.msra.mxu0 0.0
      %2392 = vmatpush.msra.mxu0 0.0
      %2393 = vmatpush.msra.mxu0 0.0
      %2394 = vmatpush.msra.mxu0 0.0
      %2395 = vmatpush.msra.mxu0 0.0
      %2396 = vmatpush.msra.mxu0 0.0
      %2397 = vmatpush.msra.mxu0 0.0
      %2398 = vmatpush.msra.mxu0 0.0
      %2399 = vmatpush.msra.mxu0 0.0
      %2400 = vmatpush.msra.mxu0 0.0
      %2401 = vmatpush.msra.mxu0 %v2388
      %2402 = vmatpush.msra.mxu0 %v2283
      %2403 = vmatpush.msra.mxu0 %v2282
      %2404 = vmatpush.msra.mxu0 %v2281
      %2405 = vmatpush.msra.mxu0 %v2280
      %2406 = vmatmul.f32.gmra.mxu0 %v2291
      %v2407 = vpop.f32.mrf.mxu0
      %v2408 = vadd.f32 %v2287, %v2407
      %2409 = vmatmul.f32.gmra.mxu0 %v2294
      %v2410 = vpop.f32.mrf.mxu0
      %v2411 = vadd.f32 %v2287, %v2410
      %2412 = vmatmul.f32.gmra.mxu0 %v2297
      %v2413 = vpop.f32.mrf.mxu0
      %v2414 = vadd.f32 %v2287, %v2413
      %2415 = vmatmul.f32.gmra.mxu0 %v2300
      %v2416 = vpop.f32.mrf.mxu0
      %v2417 = vadd.f32 %v2287, %v2416
      %2418 = vmatmul.f32.gmra.mxu0 %v2303
      %v2419 = vpop.f32.mrf.mxu0
      %v2420 = vadd.f32 %v2287, %v2419
      %2421 = vmatmul.f32.gmra.mxu0 %v2306
      %v2422 = vpop.f32.mrf.mxu0
      %v2423 = vadd.f32 %v2287, %v2422
      %2424 = vmatmul.f32.gmra.mxu0 %v2309
      %v2425 = vpop.f32.mrf.mxu0
      %v2426 = vadd.f32 %v2287, %v2425
      %2427 = vmatmul.f32.gmra.mxu0 %v2312
      %v2428 = vpop.f32.mrf.mxu0
      %v2429 = vadd.f32 %v2287, %v2428
      %2430 = vmatmul.f32.gmra.mxu0 %v2315
      %v2431 = vpop.f32.mrf.mxu0
      %v2432 = vadd.f32 %v2287, %v2431
      %2433 = vmatmul.f32.gmra.mxu0 %v2318
      %v2434 = vpop.f32.mrf.mxu0
      %v2435 = vadd.f32 %v2287, %v2434
      %2436 = vmatmul.f32.gmra.mxu0 %v2321
      %v2437 = vpop.f32.mrf.mxu0
      %v2438 = vadd.f32 %v2287, %v2437
      %2439 = vmatmul.f32.gmra.mxu0 %v2324
      %v2440 = vpop.f32.mrf.mxu0
      %v2441 = vadd.f32 %v2287, %v2440
      %2442 = vmatmul.f32.gmra.mxu0 %v2327
      %v2443 = vpop.f32.mrf.mxu0
      %v2444 = vadd.f32 %v2287, %v2443
      %2445 = vmatmul.f32.gmra.mxu0 %v2330
      %v2446 = vpop.f32.mrf.mxu0
      %v2447 = vadd.f32 %v2287, %v2446
      %2448 = vmatmul.f32.gmra.mxu0 %v2333
      %v2449 = vpop.f32.mrf.mxu0
      %v2450 = vadd.f32 %v2287, %v2449
      %2451 = vmatmul.f32.gmra.mxu0 %v2336
      %v2452 = vpop.f32.mrf.mxu0
      %v2453 = vadd.f32 %v2287, %v2452
      %2454 = vmatmul.f32.gmra.mxu0 %v2339
      %v2455 = vpop.f32.mrf.mxu0
      %v2456 = vadd.f32 %v2287, %v2455
      %2457 = vmatmul.f32.gmra.mxu0 %v2342
      %v2458 = vpop.f32.mrf.mxu0
      %v2459 = vadd.f32 %v2287, %v2458
      %2460 = vmatmul.f32.gmra.mxu0 %v2345
      %v2461 = vpop.f32.mrf.mxu0
      %v2462 = vadd.f32 %v2287, %v2461
      %2463 = vmatmul.f32.gmra.mxu0 %v2348
      %v2464 = vpop.f32.mrf.mxu0
      %v2465 = vadd.f32 %v2287, %v2464
      %2466 = vmatmul.f32.gmra.mxu0 %v2351
      %v2467 = vpop.f32.mrf.mxu0
      %v2468 = vadd.f32 %v2287, %v2467
      %2469 = vmatmul.f32.gmra.mxu0 %v2354
      %v2470 = vpop.f32.mrf.mxu0
      %v2471 = vadd.f32 %v2287, %v2470
      %2472 = vmatmul.f32.gmra.mxu0 %v2357
      %v2473 = vpop.f32.mrf.mxu0
      %v2474 = vadd.f32 %v2287, %v2473
      %2475 = vmatmul.f32.gmra.mxu0 %v2360
      %v2476 = vpop.f32.mrf.mxu0
      %v2477 = vadd.f32 %v2287, %v2476
      %2478 = vmatmul.f32.gmra.mxu0 %v2363
      %v2479 = vpop.f32.mrf.mxu0
      %v2480 = vadd.f32 %v2287, %v2479
      %2481 = vmatmul.f32.gmra.mxu0 %v2366
      %v2482 = vpop.f32.mrf.mxu0
      %v2483 = vadd.f32 %v2287, %v2482
      %2484 = vmatmul.f32.gmra.mxu0 %v2369
      %v2485 = vpop.f32.mrf.mxu0
      %v2486 = vadd.f32 %v2287, %v2485
      %2487 = vmatmul.f32.gmra.mxu0 %v2372
      %v2488 = vpop.f32.mrf.mxu0
      %v2489 = vadd.f32 %v2287, %v2488
      %2490 = vmatmul.f32.gmra.mxu0 %v2375
      %v2491 = vpop.f32.mrf.mxu0
      %v2492 = vadd.f32 %v2287, %v2491
      %2493 = vmatmul.f32.gmra.mxu0 %v2378
      %v2494 = vpop.f32.mrf.mxu0
      %v2495 = vadd.f32 %v2287, %v2494
      %2496 = vmatmul.f32.gmra.mxu0 %v2381
      %v2497 = vpop.f32.mrf.mxu0
      %v2498 = vadd.f32 %v2287, %v2497
      %2499 = vmatmul.f32.gmra.mxu0 %v2384
      %v2500 = vpop.f32.mrf.mxu0
      %v2501 = vadd.f32 %v2287, %v2500
      %2502 = vdwg.mxu0
      %v2503 = vmax.f32 %v2408, 0.0
      %v2504 = vmax.f32 %v2411, 0.0
      %v2505 = vmax.f32 %v2414, 0.0
      %v2506 = vmax.f32 %v2417, 0.0
      %v2507 = vmax.f32 %v2420, 0.0
      %v2508 = vmax.f32 %v2423, 0.0
      %v2509 = vmax.f32 %v2426, 0.0
      %v2510 = vmax.f32 %v2429, 0.0
      %v2511 = vmax.f32 %v2432, 0.0
      %v2512 = vmax.f32 %v2435, 0.0
      %v2513 = vmax.f32 %v2438, 0.0
      %v2514 = vmax.f32 %v2441, 0.0
      %v2515 = vmax.f32 %v2444, 0.0
      %v2516 = vmax.f32 %v2447, 0.0
      %v2517 = vmax.f32 %v2450, 0.0
      %v2518 = vmax.f32 %v2453, 0.0
      %v2519 = vmax.f32 %v2456, 0.0
      %v2520 = vmax.f32 %v2459, 0.0
      %v2521 = vmax.f32 %v2462, 0.0
      %v2522 = vmax.f32 %v2465, 0.0
      %v2523 = vmax.f32 %v2468, 0.0
      %v2524 = vmax.f32 %v2471, 0.0
      %v2525 = vmax.f32 %v2474, 0.0
      %v2526 = vmax.f32 %v2477, 0.0
      %v2527 = vmax.f32 %v2480, 0.0
      %v2528 = vmax.f32 %v2483, 0.0
      %v2529 = vmax.f32 %v2486, 0.0
      %v2530 = vmax.f32 %v2489, 0.0
      %v2531 = vmax.f32 %v2492, 0.0
      %v2532 = vmax.f32 %v2495, 0.0
      %v2533 = vmax.f32 %v2498, 0.0
      %v2534 = vmax.f32 %v2501, 0.0
      %vm2535 = vcmask 261120
      %2536 = vst.msk [vmem:[#allocation3] sm:$0xff] %vm2535, 0.0
      %2537 = vst.msk [vmem:[#allocation3 + $0x8] sm:$0xff] %vm2535, 0.0
      %vm2538 = vcmask 254976
      %2539 = vst.msk [vmem:[#allocation3 + $0x10] sm:$0x3] %vm2538, 0.0
      %2540 = vst.msk [vmem:[#allocation3 + $0x18] sm:$0xff] %vm2535, 0.0
      %2541 = vst.msk [vmem:[#allocation3 + $0x20] sm:$0xff] %vm2535, 0.0
      %2542 = vst.msk [vmem:[#allocation3 + $0x28] sm:$0x3] %vm2538, 0.0
      %2543 = vst.msk [vmem:[#allocation3 + $0x30] sm:$0xff] %vm2535, 0.0
      %2544 = vst.msk [vmem:[#allocation3 + $0x38] sm:$0xff] %vm2535, 0.0
      %2545 = vst.msk [vmem:[#allocation3 + $0x40] sm:$0x3] %vm2538, 0.0
      %2546 = vst.msk [vmem:[#allocation3 + $0x48] sm:$0xff] %vm2535, 0.0
      %2547 = vst.msk [vmem:[#allocation3 + $0x50] sm:$0xff] %vm2535, 0.0
      %2548 = vst.msk [vmem:[#allocation3 + $0x58] sm:$0x3] %vm2538, 0.0
      %2549 = vst.msk [vmem:[#allocation3 + $0x60] sm:$0xff] %vm2535, 0.0
      %2550 = vst.msk [vmem:[#allocation3 + $0x68] sm:$0xff] %vm2535, 0.0
      %2551 = vst.msk [vmem:[#allocation3 + $0x70] sm:$0x3] %vm2538, 0.0
      %2552 = vst.msk [vmem:[#allocation3 + $0x78] sm:$0xff] %vm2535, 0.0
      %2553 = vst.msk [vmem:[#allocation3 + $0x80] sm:$0xff] %vm2535, 0.0
      %2554 = vst.msk [vmem:[#allocation3 + $0x88] sm:$0x3] %vm2538, 0.0
      %2555 = vst.msk [vmem:[#allocation3 + $0x90] sm:$0xff] %vm2535, 0.0
      %2556 = vst.msk [vmem:[#allocation3 + $0x98] sm:$0xff] %vm2535, 0.0
      %2557 = vst.msk [vmem:[#allocation3 + $0xa0] sm:$0x3] %vm2538, 0.0
      %2558 = vst.msk [vmem:[#allocation3 + $0xa8] sm:$0xff] %vm2535, 0.0
      %2559 = vst.msk [vmem:[#allocation3 + $0xb0] sm:$0xff] %vm2535, 0.0
      %2560 = vst.msk [vmem:[#allocation3 + $0xb8] sm:$0x3] %vm2538, 0.0
      %2561 = vst.msk [vmem:[#allocation3 + $0xc0] sm:$0xff] %vm2535, 0.0
      %2562 = vst.msk [vmem:[#allocation3 + $0xc8] sm:$0xff] %vm2535, 0.0
      %2563 = vst.msk [vmem:[#allocation3 + $0xd0] sm:$0x3] %vm2538, 0.0
      %2564 = vst.msk [vmem:[#allocation3 + $0xd8] sm:$0xff] %vm2535, 0.0
      %2565 = vst.msk [vmem:[#allocation3 + $0xe0] sm:$0xff] %vm2535, 0.0
      %2566 = vst.msk [vmem:[#allocation3 + $0xe8] sm:$0x3] %vm2538, 0.0
      %2567 = vst.msk [vmem:[#allocation3 + $0xf0] sm:$0xff] %vm2535, 0.0
      %2568 = vst.msk [vmem:[#allocation3 + $0xf8] sm:$0xff] %vm2535, 0.0
      %2569 = vst.msk [vmem:[#allocation3 + $0x100] sm:$0x3] %vm2538, 0.0
      %2570 = vst.msk [vmem:[#allocation3 + $0x108] sm:$0xff] %vm2535, 0.0
      %2571 = vst.msk [vmem:[#allocation3 + $0x110] sm:$0xff] %vm2535, 0.0
      %2572 = vst.msk [vmem:[#allocation3 + $0x118] sm:$0x3] %vm2538, 0.0
      %2573 = vst.msk [vmem:[#allocation3 + $0x120] sm:$0xff] %vm2535, 0.0
      %2574 = vst.msk [vmem:[#allocation3 + $0x128] sm:$0xff] %vm2535, 0.0
      %2575 = vst.msk [vmem:[#allocation3 + $0x130] sm:$0x3] %vm2538, 0.0
      %2576 = vst.msk [vmem:[#allocation3 + $0x138] sm:$0xff] %vm2535, 0.0
      %2577 = vst.msk [vmem:[#allocation3 + $0x140] sm:$0xff] %vm2535, 0.0
      %2578 = vst.msk [vmem:[#allocation3 + $0x148] sm:$0x3] %vm2538, 0.0
      %2579 = vst.msk [vmem:[#allocation3 + $0x150] sm:$0xff] %vm2535, 0.0
      %2580 = vst.msk [vmem:[#allocation3 + $0x158] sm:$0xff] %vm2535, 0.0
      %2581 = vst.msk [vmem:[#allocation3 + $0x160] sm:$0x3] %vm2538, 0.0
      %2582 = vst.msk [vmem:[#allocation3 + $0x168] sm:$0xff] %vm2535, 0.0
      %2583 = vst.msk [vmem:[#allocation3 + $0x170] sm:$0xff] %vm2535, 0.0
      %2584 = vst.msk [vmem:[#allocation3 + $0x178] sm:$0x3] %vm2538, 0.0
      %2585 = vst.msk [vmem:[#allocation3 + $0x180] sm:$0xff] %vm2535, 0.0
      %2586 = vst.msk [vmem:[#allocation3 + $0x188] sm:$0xff] %vm2535, 0.0
      %2587 = vst.msk [vmem:[#allocation3 + $0x190] sm:$0x3] %vm2538, 0.0
      %2588 = vst.msk [vmem:[#allocation3 + $0x198] sm:$0xff] %vm2535, 0.0
      %2589 = vst.msk [vmem:[#allocation3 + $0x1a0] sm:$0xff] %vm2535, 0.0
      %2590 = vst.msk [vmem:[#allocation3 + $0x1a8] sm:$0x3] %vm2538, 0.0
      %s2591 = scalar_lea.vmem [#allocation3], 24
      %2592 = vst.msk [vmem:[%s2591 + $0x1] sm:$0xff] %vm2535, %v2503
      %2593 = vst.msk [vmem:[%s2591 + $0x9] sm:$0xff] %vm2535, %v2504
      %2594 = vst.msk [vmem:[%s2591 + $0x19] sm:$0xff] %vm2535, %v2505
      %2595 = vst.msk [vmem:[%s2591 + $0x21] sm:$0xff] %vm2535, %v2506
      %2596 = vst.msk [vmem:[%s2591 + $0x31] sm:$0xff] %vm2535, %v2507
      %2597 = vst.msk [vmem:[%s2591 + $0x39] sm:$0xff] %vm2535, %v2508
      %2598 = vst.msk [vmem:[%s2591 + $0x49] sm:$0xff] %vm2535, %v2509
      %2599 = vst.msk [vmem:[%s2591 + $0x51] sm:$0xff] %vm2535, %v2510
      %2600 = vst.msk [vmem:[%s2591 + $0x61] sm:$0xff] %vm2535, %v2511
      %2601 = vst.msk [vmem:[%s2591 + $0x69] sm:$0xff] %vm2535, %v2512
      %2602 = vst.msk [vmem:[%s2591 + $0x79] sm:$0xff] %vm2535, %v2513
      %2603 = vst.msk [vmem:[%s2591 + $0x81] sm:$0xff] %vm2535, %v2514
      %2604 = vst.msk [vmem:[%s2591 + $0x91] sm:$0xff] %vm2535, %v2515
      %2605 = vst.msk [vmem:[%s2591 + $0x99] sm:$0xff] %vm2535, %v2516
      %2606 = vst.msk [vmem:[%s2591 + $0xa9] sm:$0xff] %vm2535, %v2517
      %2607 = vst.msk [vmem:[%s2591 + $0xb1] sm:$0xff] %vm2535, %v2518
      %2608 = vst.msk [vmem:[%s2591 + $0xc1] sm:$0xff] %vm2535, %v2519
      %2609 = vst.msk [vmem:[%s2591 + $0xc9] sm:$0xff] %vm2535, %v2520
      %2610 = vst.msk [vmem:[%s2591 + $0xd9] sm:$0xff] %vm2535, %v2521
      %2611 = vst.msk [vmem:[%s2591 + $0xe1] sm:$0xff] %vm2535, %v2522
      %2612 = vst.msk [vmem:[%s2591 + $0xf1] sm:$0xff] %vm2535, %v2523
      %2613 = vst.msk [vmem:[%s2591 + $0xf9] sm:$0xff] %vm2535, %v2524
      %2614 = vst.msk [vmem:[%s2591 + $0x109] sm:$0xff] %vm2535, %v2525
      %2615 = vst.msk [vmem:[%s2591 + $0x111] sm:$0xff] %vm2535, %v2526
      %2616 = vst.msk [vmem:[%s2591 + $0x121] sm:$0xff] %vm2535, %v2527
      %2617 = vst.msk [vmem:[%s2591 + $0x129] sm:$0xff] %vm2535, %v2528
      %2618 = vst.msk [vmem:[%s2591 + $0x139] sm:$0xff] %vm2535, %v2529
      %2619 = vst.msk [vmem:[%s2591 + $0x141] sm:$0xff] %vm2535, %v2530
      %2620 = vst.msk [vmem:[%s2591 + $0x151] sm:$0xff] %vm2535, %v2531
      %2621 = vst.msk [vmem:[%s2591 + $0x159] sm:$0xff] %vm2535, %v2532
      %2622 = vst.msk [vmem:[%s2591 + $0x169] sm:$0xff] %vm2535, %v2533
      %2623 = vst.msk [vmem:[%s2591 + $0x171] sm:$0xff] %vm2535, %v2534
      %v2624 = vld [vmem:[#allocation3] sm:$0xff]
      %v2625 = vld [vmem:[#allocation3 + $0x8] sm:$0xff]
      %v2626 = vld [vmem:[#allocation3 + $0x18] sm:$0xff]
      %v2627 = vld [vmem:[#allocation3 + $0x20] sm:$0xff]
      %v2628 = vld [vmem:[#allocation3 + $0x30] sm:$0xff]
      %v2629 = vld [vmem:[#allocation3 + $0x38] sm:$0xff]
      %v2630 = vld [vmem:[#allocation3 + $0x48] sm:$0xff]
      %v2631 = vld [vmem:[#allocation3 + $0x50] sm:$0xff]
      %v2632 = vld [vmem:[#allocation3 + $0x60] sm:$0xff]
      %v2633 = vld [vmem:[#allocation3 + $0x68] sm:$0xff]
      %v2634 = vld [vmem:[#allocation3 + $0x78] sm:$0xff]
      %v2635 = vld [vmem:[#allocation3 + $0x80] sm:$0xff]
      %v2636 = vld [vmem:[#allocation3 + $0x90] sm:$0xff]
      %v2637 = vld [vmem:[#allocation3 + $0x98] sm:$0xff]
      %v2638 = vld [vmem:[#allocation3 + $0xa8] sm:$0xff]
      %v2639 = vld [vmem:[#allocation3 + $0xb0] sm:$0xff]
      %v2640 = vld [vmem:[#allocation3 + $0xc0] sm:$0xff]
      %v2641 = vld [vmem:[#allocation3 + $0xc8] sm:$0xff]
      %v2642 = vld [vmem:[#allocation3 + $0xd8] sm:$0xff]
      %v2643 = vld [vmem:[#allocation3 + $0xe0] sm:$0xff]
      %v2644 = vld [vmem:[#allocation3 + $0xf0] sm:$0xff]
      %v2645 = vld [vmem:[#allocation3 + $0xf8] sm:$0xff]
      %v2646 = vld [vmem:[#allocation3 + $0x108] sm:$0xff]
      %v2647 = vld [vmem:[#allocation3 + $0x110] sm:$0xff]
      %v2648 = vld [vmem:[#allocation3 + $0x120] sm:$0xff]
      %v2649 = vld [vmem:[#allocation3 + $0x128] sm:$0xff]
      %v2650 = vld [vmem:[#allocation3 + $0x138] sm:$0xff]
      %v2651 = vld [vmem:[#allocation3 + $0x140] sm:$0xff]
      %v2652 = vld [vmem:[#allocation3 + $0x150] sm:$0xff]
      %v2653 = vld [vmem:[#allocation3 + $0x158] sm:$0xff]
      %v2654 = vld [vmem:[#allocation3 + $0x168] sm:$0xff]
      %v2655 = vld [vmem:[#allocation3 + $0x170] sm:$0xff]
      %2656 = vst.msk [vmem:[#allocation5] sm:$0xff] %vm2535, %v2624
      %2657 = vst.msk [vmem:[#allocation5 + $0x18] sm:$0xff] %vm2535, %v2625
      %2658 = vst.msk [vmem:[#allocation5 + $0x30] sm:$0xff] %vm2535, %v2626
      %2659 = vst.msk [vmem:[#allocation5 + $0x48] sm:$0xff] %vm2535, %v2627
      %2660 = vst.msk [vmem:[#allocation5 + $0x60] sm:$0xff] %vm2535, %v2628
      %2661 = vst.msk [vmem:[#allocation5 + $0x78] sm:$0xff] %vm2535, %v2629
      %2662 = vst.msk [vmem:[#allocation5 + $0x90] sm:$0xff] %vm2535, %v2630
      %2663 = vst.msk [vmem:[#allocation5 + $0xa8] sm:$0xff] %vm2535, %v2631
      %2664 = vst.msk [vmem:[#allocation5 + $0xc0] sm:$0xff] %vm2535, %v2632
      %2665 = vst.msk [vmem:[#allocation5 + $0xd8] sm:$0xff] %vm2535, %v2633
      %2666 = vst.msk [vmem:[#allocation5 + $0xf0] sm:$0xff] %vm2535, %v2634
      %2667 = vst.msk [vmem:[#allocation5 + $0x108] sm:$0xff] %vm2535, %v2635
      %2668 = vst.msk [vmem:[#allocation5 + $0x120] sm:$0xff] %vm2535, %v2636
      %2669 = vst.msk [vmem:[#allocation5 + $0x138] sm:$0xff] %vm2535, %v2637
      %2670 = vst.msk [vmem:[#allocation5 + $0x150] sm:$0xff] %vm2535, %v2638
      %2671 = vst.msk [vmem:[#allocation5 + $0x168] sm:$0xff] %vm2535, %v2639
      %2672 = vst.msk [vmem:[#allocation5 + $0x180] sm:$0xff] %vm2535, %v2640
      %2673 = vst.msk [vmem:[#allocation5 + $0x198] sm:$0xff] %vm2535, %v2641
      %2674 = vst.msk [vmem:[#allocation5 + $0x1b0] sm:$0xff] %vm2535, %v2642
      %2675 = vst.msk [vmem:[#allocation5 + $0x1c8] sm:$0xff] %vm2535, %v2643
      %2676 = vst.msk [vmem:[#allocation5 + $0x1e0] sm:$0xff] %vm2535, %v2644
      %2677 = vst.msk [vmem:[#allocation5 + $0x1f8] sm:$0xff] %vm2535, %v2645
      %2678 = vst.msk [vmem:[#allocation5 + $0x210] sm:$0xff] %vm2535, %v2646
      %2679 = vst.msk [vmem:[#allocation5 + $0x228] sm:$0xff] %vm2535, %v2647
      %2680 = vst.msk [vmem:[#allocation5 + $0x240] sm:$0xff] %vm2535, %v2648
      %2681 = vst.msk [vmem:[#allocation5 + $0x258] sm:$0xff] %vm2535, %v2649
      %2682 = vst.msk [vmem:[#allocation5 + $0x270] sm:$0xff] %vm2535, %v2650
      %2683 = vst.msk [vmem:[#allocation5 + $0x288] sm:$0xff] %vm2535, %v2651
      %2684 = vst.msk [vmem:[#allocation5 + $0x2a0] sm:$0xff] %vm2535, %v2652
      %2685 = vst.msk [vmem:[#allocation5 + $0x2b8] sm:$0xff] %vm2535, %v2653
      %2686 = vst.msk [vmem:[#allocation5 + $0x2d0] sm:$0xff] %vm2535, %v2654
      %2687 = vst.msk [vmem:[#allocation5 + $0x2e8] sm:$0xff] %vm2535, %v2655
      %v2688 = vld [vmem:[#allocation3 + $0x1] sm:$0xff]
      %v2689 = vld [vmem:[#allocation3 + $0x9] sm:$0xff]
      %v2690 = vld [vmem:[#allocation3 + $0x19] sm:$0xff]
      %v2691 = vld [vmem:[#allocation3 + $0x21] sm:$0xff]
      %v2692 = vld [vmem:[#allocation3 + $0x31] sm:$0xff]
      %v2693 = vld [vmem:[#allocation3 + $0x39] sm:$0xff]
      %v2694 = vld [vmem:[#allocation3 + $0x49] sm:$0xff]
      %v2695 = vld [vmem:[#allocation3 + $0x51] sm:$0xff]
      %v2696 = vld [vmem:[#allocation3 + $0x61] sm:$0xff]
      %v2697 = vld [vmem:[#allocation3 + $0x69] sm:$0xff]
      %v2698 = vld [vmem:[#allocation3 + $0x79] sm:$0xff]
      %v2699 = vld [vmem:[#allocation3 + $0x81] sm:$0xff]
      %v2700 = vld [vmem:[#allocation3 + $0x91] sm:$0xff]
      %v2701 = vld [vmem:[#allocation3 + $0x99] sm:$0xff]
      %v2702 = vld [vmem:[#allocation3 + $0xa9] sm:$0xff]
      %v2703 = vld [vmem:[#allocation3 + $0xb1] sm:$0xff]
      %v2704 = vld [vmem:[#allocation3 + $0xc1] sm:$0xff]
      %v2705 = vld [vmem:[#allocation3 + $0xc9] sm:$0xff]
      %v2706 = vld [vmem:[#allocation3 + $0xd9] sm:$0xff]
      %v2707 = vld [vmem:[#allocation3 + $0xe1] sm:$0xff]
      %v2708 = vld [vmem:[#allocation3 + $0xf1] sm:$0xff]
      %v2709 = vld [vmem:[#allocation3 + $0xf9] sm:$0xff]
      %v2710 = vld [vmem:[#allocation3 + $0x109] sm:$0xff]
      %v2711 = vld [vmem:[#allocation3 + $0x111] sm:$0xff]
      %v2712 = vld [vmem:[#allocation3 + $0x121] sm:$0xff]
      %v2713 = vld [vmem:[#allocation3 + $0x129] sm:$0xff]
      %v2714 = vld [vmem:[#allocation3 + $0x139] sm:$0xff]
      %v2715 = vld [vmem:[#allocation3 + $0x141] sm:$0xff]
      %v2716 = vld [vmem:[#allocation3 + $0x151] sm:$0xff]
      %v2717 = vld [vmem:[#allocation3 + $0x159] sm:$0xff]
      %v2718 = vld [vmem:[#allocation3 + $0x169] sm:$0xff]
      %v2719 = vld [vmem:[#allocation3 + $0x171] sm:$0xff]
      %2752 = vrot.lane.b32.xlu0 %v2688, 32
      %v2753 = vpop.permute.xlu0 %2752
      %2754 = vrot.lane.b32.xlu0 %v2689, 32
      %v2755 = vpop.permute.xlu0 %2754
      %2756 = vrot.lane.b32.xlu0 %v2690, 32
      %v2757 = vpop.permute.xlu0 %2756
      %2758 = vrot.lane.b32.xlu0 %v2691, 32
      %v2759 = vpop.permute.xlu0 %2758
      %2760 = vrot.lane.b32.xlu0 %v2692, 32
      %v2761 = vpop.permute.xlu0 %2760
      %2762 = vrot.lane.b32.xlu0 %v2693, 32
      %v2763 = vpop.permute.xlu0 %2762
      %2764 = vrot.lane.b32.xlu0 %v2694, 32
      %v2765 = vpop.permute.xlu0 %2764
      %2766 = vrot.lane.b32.xlu0 %v2695, 32
      %v2767 = vpop.permute.xlu0 %2766
      %2768 = vrot.lane.b32.xlu0 %v2696, 32
      %v2769 = vpop.permute.xlu0 %2768
      %2770 = vrot.lane.b32.xlu0 %v2697, 32
      %v2771 = vpop.permute.xlu0 %2770
      %2772 = vrot.lane.b32.xlu0 %v2698, 32
      %v2773 = vpop.permute.xlu0 %2772
      %2774 = vrot.lane.b32.xlu0 %v2699, 32
      %v2775 = vpop.permute.xlu0 %2774
      %2776 = vrot.lane.b32.xlu0 %v2700, 32
      %v2777 = vpop.permute.xlu0 %2776
      %2778 = vrot.lane.b32.xlu0 %v2701, 32
      %v2779 = vpop.permute.xlu0 %2778
      %2780 = vrot.lane.b32.xlu0 %v2702, 32
      %v2781 = vpop.permute.xlu0 %2780
      %2782 = vrot.lane.b32.xlu0 %v2703, 32
      %v2783 = vpop.permute.xlu0 %2782
      %2784 = vrot.lane.b32.xlu0 %v2704, 32
      %v2785 = vpop.permute.xlu0 %2784
      %2786 = vrot.lane.b32.xlu0 %v2705, 32
      %v2787 = vpop.permute.xlu0 %2786
      %2788 = vrot.lane.b32.xlu0 %v2706, 32
      %v2789 = vpop.permute.xlu0 %2788
      %2790 = vrot.lane.b32.xlu0 %v2707, 32
      %v2791 = vpop.permute.xlu0 %2790
      %2792 = vrot.lane.b32.xlu0 %v2708, 32
      %v2793 = vpop.permute.xlu0 %2792
      %2794 = vrot.lane.b32.xlu0 %v2709, 32
      %v2795 = vpop.permute.xlu0 %2794
      %2796 = vrot.lane.b32.xlu0 %v2710, 32
      %v2797 = vpop.permute.xlu0 %2796
      %2798 = vrot.lane.b32.xlu0 %v2711, 32
      %v2799 = vpop.permute.xlu0 %2798
      %2800 = vrot.lane.b32.xlu0 %v2712, 32
      %v2801 = vpop.permute.xlu0 %2800
      %2802 = vrot.lane.b32.xlu0 %v2713, 32
      %v2803 = vpop.permute.xlu0 %2802
      %2804 = vrot.lane.b32.xlu0 %v2714, 32
      %v2805 = vpop.permute.xlu0 %2804
      %2806 = vrot.lane.b32.xlu0 %v2715, 32
      %v2807 = vpop.permute.xlu0 %2806
      %2808 = vrot.lane.b32.xlu0 %v2716, 32
      %v2809 = vpop.permute.xlu0 %2808
      %2810 = vrot.lane.b32.xlu0 %v2717, 32
      %v2811 = vpop.permute.xlu0 %2810
      %2812 = vrot.lane.b32.xlu0 %v2718, 32
      %v2813 = vpop.permute.xlu0 %2812
      %2814 = vrot.lane.b32.xlu0 %v2719, 32
      %v2815 = vpop.permute.xlu0 %2814
      %vm2848 = vcmask 523520
      %2849 = vst.msk [vmem:[#allocation5] sm:$0xff] %vm2848, %v2753
      %2850 = vst.msk [vmem:[#allocation5 + $0x18] sm:$0xff] %vm2848, %v2755
      %2851 = vst.msk [vmem:[#allocation5 + $0x30] sm:$0xff] %vm2848, %v2757
      %2852 = vst.msk [vmem:[#allocation5 + $0x48] sm:$0xff] %vm2848, %v2759
      %2853 = vst.msk [vmem:[#allocation5 + $0x60] sm:$0xff] %vm2848, %v2761
      %2854 = vst.msk [vmem:[#allocation5 + $0x78] sm:$0xff] %vm2848, %v2763
      %2855 = vst.msk [vmem:[#allocation5 + $0x90] sm:$0xff] %vm2848, %v2765
      %2856 = vst.msk [vmem:[#allocation5 + $0xa8] sm:$0xff] %vm2848, %v2767
      %2857 = vst.msk [vmem:[#allocation5 + $0xc0] sm:$0xff] %vm2848, %v2769
      %2858 = vst.msk [vmem:[#allocation5 + $0xd8] sm:$0xff] %vm2848, %v2771
      %2859 = vst.msk [vmem:[#allocation5 + $0xf0] sm:$0xff] %vm2848, %v2773
      %2860 = vst.msk [vmem:[#allocation5 + $0x108] sm:$0xff] %vm2848, %v2775
      %2861 = vst.msk [vmem:[#allocation5 + $0x120] sm:$0xff] %vm2848, %v2777
      %2862 = vst.msk [vmem:[#allocation5 + $0x138] sm:$0xff] %vm2848, %v2779
      %2863 = vst.msk [vmem:[#allocation5 + $0x150] sm:$0xff] %vm2848, %v2781
      %2864 = vst.msk [vmem:[#allocation5 + $0x168] sm:$0xff] %vm2848, %v2783
      %2865 = vst.msk [vmem:[#allocation5 + $0x180] sm:$0xff] %vm2848, %v2785
      %2866 = vst.msk [vmem:[#allocation5 + $0x198] sm:$0xff] %vm2848, %v2787
      %2867 = vst.msk [vmem:[#allocation5 + $0x1b0] sm:$0xff] %vm2848, %v2789
      %2868 = vst.msk [vmem:[#allocation5 + $0x1c8] sm:$0xff] %vm2848, %v2791
      %2869 = vst.msk [vmem:[#allocation5 + $0x1e0] sm:$0xff] %vm2848, %v2793
      %2870 = vst.msk [vmem:[#allocation5 + $0x1f8] sm:$0xff] %vm2848, %v2795
      %2871 = vst.msk [vmem:[#allocation5 + $0x210] sm:$0xff] %vm2848, %v2797
      %2872 = vst.msk [vmem:[#allocation5 + $0x228] sm:$0xff] %vm2848, %v2799
      %2873 = vst.msk [vmem:[#allocation5 + $0x240] sm:$0xff] %vm2848, %v2801
      %2874 = vst.msk [vmem:[#allocation5 + $0x258] sm:$0xff] %vm2848, %v2803
      %2875 = vst.msk [vmem:[#allocation5 + $0x270] sm:$0xff] %vm2848, %v2805
      %2876 = vst.msk [vmem:[#allocation5 + $0x288] sm:$0xff] %vm2848, %v2807
      %2877 = vst.msk [vmem:[#allocation5 + $0x2a0] sm:$0xff] %vm2848, %v2809
      %2878 = vst.msk [vmem:[#allocation5 + $0x2b8] sm:$0xff] %vm2848, %v2811
      %2879 = vst.msk [vmem:[#allocation5 + $0x2d0] sm:$0xff] %vm2848, %v2813
      %2880 = vst.msk [vmem:[#allocation5 + $0x2e8] sm:$0xff] %vm2848, %v2815
      %v2881 = vld [vmem:[#allocation3 + $0x2] sm:$0xff]
      %v2882 = vld [vmem:[#allocation3 + $0xa] sm:$0xff]
      %v2883 = vld [vmem:[#allocation3 + $0x1a] sm:$0xff]
      %v2884 = vld [vmem:[#allocation3 + $0x22] sm:$0xff]
      %v2885 = vld [vmem:[#allocation3 + $0x32] sm:$0xff]
      %v2886 = vld [vmem:[#allocation3 + $0x3a] sm:$0xff]
      %v2887 = vld [vmem:[#allocation3 + $0x4a] sm:$0xff]
      %v2888 = vld [vmem:[#allocation3 + $0x52] sm:$0xff]
      %v2889 = vld [vmem:[#allocation3 + $0x62] sm:$0xff]
      %v2890 = vld [vmem:[#allocation3 + $0x6a] sm:$0xff]
      %v2891 = vld [vmem:[#allocation3 + $0x7a] sm:$0xff]
      %v2892 = vld [vmem:[#allocation3 + $0x82] sm:$0xff]
      %v2893 = vld [vmem:[#allocation3 + $0x92] sm:$0xff]
      %v2894 = vld [vmem:[#allocation3 + $0x9a] sm:$0xff]
      %v2895 = vld [vmem:[#allocation3 + $0xaa] sm:$0xff]
      %v2896 = vld [vmem:[#allocation3 + $0xb2] sm:$0xff]
      %v2897 = vld [vmem:[#allocation3 + $0xc2] sm:$0xff]
      %v2898 = vld [vmem:[#allocation3 + $0xca] sm:$0xff]
      %v2899 = vld [vmem:[#allocation3 + $0xda] sm:$0xff]
      %v2900 = vld [vmem:[#allocation3 + $0xe2] sm:$0xff]
      %v2901 = vld [vmem:[#allocation3 + $0xf2] sm:$0xff]
      %v2902 = vld [vmem:[#allocation3 + $0xfa] sm:$0xff]
      %v2903 = vld [vmem:[#allocation3 + $0x10a] sm:$0xff]
      %v2904 = vld [vmem:[#allocation3 + $0x112] sm:$0xff]
      %v2905 = vld [vmem:[#allocation3 + $0x122] sm:$0xff]
      %v2906 = vld [vmem:[#allocation3 + $0x12a] sm:$0xff]
      %v2907 = vld [vmem:[#allocation3 + $0x13a] sm:$0xff]
      %v2908 = vld [vmem:[#allocation3 + $0x142] sm:$0xff]
      %v2909 = vld [vmem:[#allocation3 + $0x152] sm:$0xff]
      %v2910 = vld [vmem:[#allocation3 + $0x15a] sm:$0xff]
      %v2911 = vld [vmem:[#allocation3 + $0x16a] sm:$0xff]
      %v2912 = vld [vmem:[#allocation3 + $0x172] sm:$0xff]
      %2945 = vrot.lane.b32.xlu0 %v2881, 64
      %v2946 = vpop.permute.xlu0 %2945
      %2947 = vrot.lane.b32.xlu0 %v2882, 64
      %v2948 = vpop.permute.xlu0 %2947
      %2949 = vrot.lane.b32.xlu0 %v2883, 64
      %v2950 = vpop.permute.xlu0 %2949
      %2951 = vrot.lane.b32.xlu0 %v2884, 64
      %v2952 = vpop.permute.xlu0 %2951
      %2953 = vrot.lane.b32.xlu0 %v2885, 64
      %v2954 = vpop.permute.xlu0 %2953
      %2955 = vrot.lane.b32.xlu0 %v2886, 64
      %v2956 = vpop.permute.xlu0 %2955
      %2957 = vrot.lane.b32.xlu0 %v2887, 64
      %v2958 = vpop.permute.xlu0 %2957
      %2959 = vrot.lane.b32.xlu0 %v2888, 64
      %v2960 = vpop.permute.xlu0 %2959
      %2961 = vrot.lane.b32.xlu0 %v2889, 64
      %v2962 = vpop.permute.xlu0 %2961
      %2963 = vrot.lane.b32.xlu0 %v2890, 64
      %v2964 = vpop.permute.xlu0 %2963
      %2965 = vrot.lane.b32.xlu0 %v2891, 64
      %v2966 = vpop.permute.xlu0 %2965
      %2967 = vrot.lane.b32.xlu0 %v2892, 64
      %v2968 = vpop.permute.xlu0 %2967
      %2969 = vrot.lane.b32.xlu0 %v2893, 64
      %v2970 = vpop.permute.xlu0 %2969
      %2971 = vrot.lane.b32.xlu0 %v2894, 64
      %v2972 = vpop.permute.xlu0 %2971
      %2973 = vrot.lane.b32.xlu0 %v2895, 64
      %v2974 = vpop.permute.xlu0 %2973
      %2975 = vrot.lane.b32.xlu0 %v2896, 64
      %v2976 = vpop.permute.xlu0 %2975
      %2977 = vrot.lane.b32.xlu0 %v2897, 64
      %v2978 = vpop.permute.xlu0 %2977
      %2979 = vrot.lane.b32.xlu0 %v2898, 64
      %v2980 = vpop.permute.xlu0 %2979
      %2981 = vrot.lane.b32.xlu0 %v2899, 64
      %v2982 = vpop.permute.xlu0 %2981
      %2983 = vrot.lane.b32.xlu0 %v2900, 64
      %v2984 = vpop.permute.xlu0 %2983
      %2985 = vrot.lane.b32.xlu0 %v2901, 64
      %v2986 = vpop.permute.xlu0 %2985
      %2987 = vrot.lane.b32.xlu0 %v2902, 64
      %v2988 = vpop.permute.xlu0 %2987
      %2989 = vrot.lane.b32.xlu0 %v2903, 64
      %v2990 = vpop.permute.xlu0 %2989
      %2991 = vrot.lane.b32.xlu0 %v2904, 64
      %v2992 = vpop.permute.xlu0 %2991
      %2993 = vrot.lane.b32.xlu0 %v2905, 64
      %v2994 = vpop.permute.xlu0 %2993
      %2995 = vrot.lane.b32.xlu0 %v2906, 64
      %v2996 = vpop.permute.xlu0 %2995
      %2997 = vrot.lane.b32.xlu0 %v2907, 64
      %v2998 = vpop.permute.xlu0 %2997
      %2999 = vrot.lane.b32.xlu0 %v2908, 64
      %v3000 = vpop.permute.xlu0 %2999
      %3001 = vrot.lane.b32.xlu0 %v2909, 64
      %v3002 = vpop.permute.xlu0 %3001
      %3003 = vrot.lane.b32.xlu0 %v2910, 64
      %v3004 = vpop.permute.xlu0 %3003
      %3005 = vrot.lane.b32.xlu0 %v2911, 64
      %v3006 = vpop.permute.xlu0 %3005
      %3007 = vrot.lane.b32.xlu0 %v2912, 64
      %v3008 = vpop.permute.xlu0 %3007
      %vm3041 = vcmask 785920
      %3042 = vst.msk [vmem:[#allocation5] sm:$0xff] %vm3041, %v2946
      %3043 = vst.msk [vmem:[#allocation5 + $0x18] sm:$0xff] %vm3041, %v2948
      %3044 = vst.msk [vmem:[#allocation5 + $0x30] sm:$0xff] %vm3041, %v2950
      %3045 = vst.msk [vmem:[#allocation5 + $0x48] sm:$0xff] %vm3041, %v2952
      %3046 = vst.msk [vmem:[#allocation5 + $0x60] sm:$0xff] %vm3041, %v2954
      %3047 = vst.msk [vmem:[#allocation5 + $0x78] sm:$0xff] %vm3041, %v2956
      %3048 = vst.msk [vmem:[#allocation5 + $0x90] sm:$0xff] %vm3041, %v2958
      %3049 = vst.msk [vmem:[#allocation5 + $0xa8] sm:$0xff] %vm3041, %v2960
      %3050 = vst.msk [vmem:[#allocation5 + $0xc0] sm:$0xff] %vm3041, %v2962
      %3051 = vst.msk [vmem:[#allocation5 + $0xd8] sm:$0xff] %vm3041, %v2964
      %3052 = vst.msk [vmem:[#allocation5 + $0xf0] sm:$0xff] %vm3041, %v2966
      %3053 = vst.msk [vmem:[#allocation5 + $0x108] sm:$0xff] %vm3041, %v2968
      %3054 = vst.msk [vmem:[#allocation5 + $0x120] sm:$0xff] %vm3041, %v2970
      %3055 = vst.msk [vmem:[#allocation5 + $0x138] sm:$0xff] %vm3041, %v2972
      %3056 = vst.msk [vmem:[#allocation5 + $0x150] sm:$0xff] %vm3041, %v2974
      %3057 = vst.msk [vmem:[#allocation5 + $0x168] sm:$0xff] %vm3041, %v2976
      %3058 = vst.msk [vmem:[#allocation5 + $0x180] sm:$0xff] %vm3041, %v2978
      %3059 = vst.msk [vmem:[#allocation5 + $0x198] sm:$0xff] %vm3041, %v2980
      %3060 = vst.msk [vmem:[#allocation5 + $0x1b0] sm:$0xff] %vm3041, %v2982
      %3061 = vst.msk [vmem:[#allocation5 + $0x1c8] sm:$0xff] %vm3041, %v2984
      %3062 = vst.msk [vmem:[#allocation5 + $0x1e0] sm:$0xff] %vm3041, %v2986
      %3063 = vst.msk [vmem:[#allocation5 + $0x1f8] sm:$0xff] %vm3041, %v2988
      %3064 = vst.msk [vmem:[#allocation5 + $0x210] sm:$0xff] %vm3041, %v2990
      %3065 = vst.msk [vmem:[#allocation5 + $0x228] sm:$0xff] %vm3041, %v2992
      %3066 = vst.msk [vmem:[#allocation5 + $0x240] sm:$0xff] %vm3041, %v2994
      %3067 = vst.msk [vmem:[#allocation5 + $0x258] sm:$0xff] %vm3041, %v2996
      %3068 = vst.msk [vmem:[#allocation5 + $0x270] sm:$0xff] %vm3041, %v2998
      %3069 = vst.msk [vmem:[#allocation5 + $0x288] sm:$0xff] %vm3041, %v3000
      %3070 = vst.msk [vmem:[#allocation5 + $0x2a0] sm:$0xff] %vm3041, %v3002
      %3071 = vst.msk [vmem:[#allocation5 + $0x2b8] sm:$0xff] %vm3041, %v3004
      %3072 = vst.msk [vmem:[#allocation5 + $0x2d0] sm:$0xff] %vm3041, %v3006
      %3073 = vst.msk [vmem:[#allocation5 + $0x2e8] sm:$0xff] %vm3041, %v3008
      %v3074 = vld [vmem:[%s2591] sm:$0xff]
      %v3075 = vld [vmem:[%s2591 + $0x8] sm:$0xff]
      %v3076 = vld [vmem:[%s2591 + $0x18] sm:$0xff]
      %v3077 = vld [vmem:[%s2591 + $0x20] sm:$0xff]
      %v3078 = vld [vmem:[%s2591 + $0x30] sm:$0xff]
      %v3079 = vld [vmem:[%s2591 + $0x38] sm:$0xff]
      %v3080 = vld [vmem:[%s2591 + $0x48] sm:$0xff]
      %v3081 = vld [vmem:[%s2591 + $0x50] sm:$0xff]
      %v3082 = vld [vmem:[%s2591 + $0x60] sm:$0xff]
      %v3083 = vld [vmem:[%s2591 + $0x68] sm:$0xff]
      %v3084 = vld [vmem:[%s2591 + $0x78] sm:$0xff]
      %v3085 = vld [vmem:[%s2591 + $0x80] sm:$0xff]
      %v3086 = vld [vmem:[%s2591 + $0x90] sm:$0xff]
      %v3087 = vld [vmem:[%s2591 + $0x98] sm:$0xff]
      %v3088 = vld [vmem:[%s2591 + $0xa8] sm:$0xff]
      %v3089 = vld [vmem:[%s2591 + $0xb0] sm:$0xff]
      %v3090 = vld [vmem:[%s2591 + $0xc0] sm:$0xff]
      %v3091 = vld [vmem:[%s2591 + $0xc8] sm:$0xff]
      %v3092 = vld [vmem:[%s2591 + $0xd8] sm:$0xff]
      %v3093 = vld [vmem:[%s2591 + $0xe0] sm:$0xff]
      %v3094 = vld [vmem:[%s2591 + $0xf0] sm:$0xff]
      %v3095 = vld [vmem:[%s2591 + $0xf8] sm:$0xff]
      %v3096 = vld [vmem:[%s2591 + $0x108] sm:$0xff]
      %v3097 = vld [vmem:[%s2591 + $0x110] sm:$0xff]
      %v3098 = vld [vmem:[%s2591 + $0x120] sm:$0xff]
      %v3099 = vld [vmem:[%s2591 + $0x128] sm:$0xff]
      %v3100 = vld [vmem:[%s2591 + $0x138] sm:$0xff]
      %v3101 = vld [vmem:[%s2591 + $0x140] sm:$0xff]
      %v3102 = vld [vmem:[%s2591 + $0x150] sm:$0xff]
      %v3103 = vld [vmem:[%s2591 + $0x158] sm:$0xff]
      %v3104 = vld [vmem:[%s2591 + $0x168] sm:$0xff]
      %v3105 = vld [vmem:[%s2591 + $0x170] sm:$0xff]
      %3138 = vrot.lane.b32.xlu0 %v3074, 96
      %v3139 = vpop.permute.xlu0 %3138
      %3140 = vrot.lane.b32.xlu0 %v3075, 96
      %v3141 = vpop.permute.xlu0 %3140
      %3142 = vrot.lane.b32.xlu0 %v3076, 96
      %v3143 = vpop.permute.xlu0 %3142
      %3144 = vrot.lane.b32.xlu0 %v3077, 96
      %v3145 = vpop.permute.xlu0 %3144
      %3146 = vrot.lane.b32.xlu0 %v3078, 96
      %v3147 = vpop.permute.xlu0 %3146
      %3148 = vrot.lane.b32.xlu0 %v3079, 96
      %v3149 = vpop.permute.xlu0 %3148
      %3150 = vrot.lane.b32.xlu0 %v3080, 96
      %v3151 = vpop.permute.xlu0 %3150
      %3152 = vrot.lane.b32.xlu0 %v3081, 96
      %v3153 = vpop.permute.xlu0 %3152
      %3154 = vrot.lane.b32.xlu0 %v3082, 96
      %v3155 = vpop.permute.xlu0 %3154
      %3156 = vrot.lane.b32.xlu0 %v3083, 96
      %v3157 = vpop.permute.xlu0 %3156
      %3158 = vrot.lane.b32.xlu0 %v3084, 96
      %v3159 = vpop.permute.xlu0 %3158
      %3160 = vrot.lane.b32.xlu0 %v3085, 96
      %v3161 = vpop.permute.xlu0 %3160
      %3162 = vrot.lane.b32.xlu0 %v3086, 96
      %v3163 = vpop.permute.xlu0 %3162
      %3164 = vrot.lane.b32.xlu0 %v3087, 96
      %v3165 = vpop.permute.xlu0 %3164
      %3166 = vrot.lane.b32.xlu0 %v3088, 96
      %v3167 = vpop.permute.xlu0 %3166
      %3168 = vrot.lane.b32.xlu0 %v3089, 96
      %v3169 = vpop.permute.xlu0 %3168
      %3170 = vrot.lane.b32.xlu0 %v3090, 96
      %v3171 = vpop.permute.xlu0 %3170
      %3172 = vrot.lane.b32.xlu0 %v3091, 96
      %v3173 = vpop.permute.xlu0 %3172
      %3174 = vrot.lane.b32.xlu0 %v3092, 96
      %v3175 = vpop.permute.xlu0 %3174
      %3176 = vrot.lane.b32.xlu0 %v3093, 96
      %v3177 = vpop.permute.xlu0 %3176
      %3178 = vrot.lane.b32.xlu0 %v3094, 96
      %v3179 = vpop.permute.xlu0 %3178
      %3180 = vrot.lane.b32.xlu0 %v3095, 96
      %v3181 = vpop.permute.xlu0 %3180
      %3182 = vrot.lane.b32.xlu0 %v3096, 96
      %v3183 = vpop.permute.xlu0 %3182
      %3184 = vrot.lane.b32.xlu0 %v3097, 96
      %v3185 = vpop.permute.xlu0 %3184
      %3186 = vrot.lane.b32.xlu0 %v3098, 96
      %v3187 = vpop.permute.xlu0 %3186
      %3188 = vrot.lane.b32.xlu0 %v3099, 96
      %v3189 = vpop.permute.xlu0 %3188
      %3190 = vrot.lane.b32.xlu0 %v3100, 96
      %v3191 = vpop.permute.xlu0 %3190
      %3192 = vrot.lane.b32.xlu0 %v3101, 96
      %v3193 = vpop.permute.xlu0 %3192
      %3194 = vrot.lane.b32.xlu0 %v3102, 96
      %v3195 = vpop.permute.xlu0 %3194
      %3196 = vrot.lane.b32.xlu0 %v3103, 96
      %v3197 = vpop.permute.xlu0 %3196
      %3198 = vrot.lane.b32.xlu0 %v3104, 96
      %v3199 = vpop.permute.xlu0 %3198
      %3200 = vrot.lane.b32.xlu0 %v3105, 96
      %v3201 = vpop.permute.xlu0 %3200
      %vm3234 = vcmask 1048320
      %3235 = vst.msk [vmem:[#allocation5] sm:$0xff] %vm3234, %v3139
      %3236 = vst.msk [vmem:[#allocation5 + $0x18] sm:$0xff] %vm3234, %v3141
      %3237 = vst.msk [vmem:[#allocation5 + $0x30] sm:$0xff] %vm3234, %v3143
      %3238 = vst.msk [vmem:[#allocation5 + $0x48] sm:$0xff] %vm3234, %v3145
      %3239 = vst.msk [vmem:[#allocation5 + $0x60] sm:$0xff] %vm3234, %v3147
      %3240 = vst.msk [vmem:[#allocation5 + $0x78] sm:$0xff] %vm3234, %v3149
      %3241 = vst.msk [vmem:[#allocation5 + $0x90] sm:$0xff] %vm3234, %v3151
      %3242 = vst.msk [vmem:[#allocation5 + $0xa8] sm:$0xff] %vm3234, %v3153
      %3243 = vst.msk [vmem:[#allocation5 + $0xc0] sm:$0xff] %vm3234, %v3155
      %3244 = vst.msk [vmem:[#allocation5 + $0xd8] sm:$0xff] %vm3234, %v3157
      %3245 = vst.msk [vmem:[#allocation5 + $0xf0] sm:$0xff] %vm3234, %v3159
      %3246 = vst.msk [vmem:[#allocation5 + $0x108] sm:$0xff] %vm3234, %v3161
      %3247 = vst.msk [vmem:[#allocation5 + $0x120] sm:$0xff] %vm3234, %v3163
      %3248 = vst.msk [vmem:[#allocation5 + $0x138] sm:$0xff] %vm3234, %v3165
      %3249 = vst.msk [vmem:[#allocation5 + $0x150] sm:$0xff] %vm3234, %v3167
      %3250 = vst.msk [vmem:[#allocation5 + $0x168] sm:$0xff] %vm3234, %v3169
      %3251 = vst.msk [vmem:[#allocation5 + $0x180] sm:$0xff] %vm3234, %v3171
      %3252 = vst.msk [vmem:[#allocation5 + $0x198] sm:$0xff] %vm3234, %v3173
      %3253 = vst.msk [vmem:[#allocation5 + $0x1b0] sm:$0xff] %vm3234, %v3175
      %3254 = vst.msk [vmem:[#allocation5 + $0x1c8] sm:$0xff] %vm3234, %v3177
      %3255 = vst.msk [vmem:[#allocation5 + $0x1e0] sm:$0xff] %vm3234, %v3179
      %3256 = vst.msk [vmem:[#allocation5 + $0x1f8] sm:$0xff] %vm3234, %v3181
      %3257 = vst.msk [vmem:[#allocation5 + $0x210] sm:$0xff] %vm3234, %v3183
      %3258 = vst.msk [vmem:[#allocation5 + $0x228] sm:$0xff] %vm3234, %v3185
      %3259 = vst.msk [vmem:[#allocation5 + $0x240] sm:$0xff] %vm3234, %v3187
      %3260 = vst.msk [vmem:[#allocation5 + $0x258] sm:$0xff] %vm3234, %v3189
      %3261 = vst.msk [vmem:[#allocation5 + $0x270] sm:$0xff] %vm3234, %v3191
      %3262 = vst.msk [vmem:[#allocation5 + $0x288] sm:$0xff] %vm3234, %v3193
      %3263 = vst.msk [vmem:[#allocation5 + $0x2a0] sm:$0xff] %vm3234, %v3195
      %3264 = vst.msk [vmem:[#allocation5 + $0x2b8] sm:$0xff] %vm3234, %v3197
      %3265 = vst.msk [vmem:[#allocation5 + $0x2d0] sm:$0xff] %vm3234, %v3199
      %3266 = vst.msk [vmem:[#allocation5 + $0x2e8] sm:$0xff] %vm3234, %v3201
      %v3267 = vld [vmem:[%s2591 + $0x1] sm:$0xff]
      %v3268 = vld [vmem:[%s2591 + $0x9] sm:$0xff]
      %v3269 = vld [vmem:[%s2591 + $0x19] sm:$0xff]
      %v3270 = vld [vmem:[%s2591 + $0x21] sm:$0xff]
      %v3271 = vld [vmem:[%s2591 + $0x31] sm:$0xff]
      %v3272 = vld [vmem:[%s2591 + $0x39] sm:$0xff]
      %v3273 = vld [vmem:[%s2591 + $0x49] sm:$0xff]
      %v3274 = vld [vmem:[%s2591 + $0x51] sm:$0xff]
      %v3275 = vld [vmem:[%s2591 + $0x61] sm:$0xff]
      %v3276 = vld [vmem:[%s2591 + $0x69] sm:$0xff]
      %v3277 = vld [vmem:[%s2591 + $0x79] sm:$0xff]
      %v3278 = vld [vmem:[%s2591 + $0x81] sm:$0xff]
      %v3279 = vld [vmem:[%s2591 + $0x91] sm:$0xff]
      %v3280 = vld [vmem:[%s2591 + $0x99] sm:$0xff]
      %v3281 = vld [vmem:[%s2591 + $0xa9] sm:$0xff]
      %v3282 = vld [vmem:[%s2591 + $0xb1] sm:$0xff]
      %v3283 = vld [vmem:[%s2591 + $0xc1] sm:$0xff]
      %v3284 = vld [vmem:[%s2591 + $0xc9] sm:$0xff]
      %v3285 = vld [vmem:[%s2591 + $0xd9] sm:$0xff]
      %v3286 = vld [vmem:[%s2591 + $0xe1] sm:$0xff]
      %v3287 = vld [vmem:[%s2591 + $0xf1] sm:$0xff]
      %v3288 = vld [vmem:[%s2591 + $0xf9] sm:$0xff]
      %v3289 = vld [vmem:[%s2591 + $0x109] sm:$0xff]
      %v3290 = vld [vmem:[%s2591 + $0x111] sm:$0xff]
      %v3291 = vld [vmem:[%s2591 + $0x121] sm:$0xff]
      %v3292 = vld [vmem:[%s2591 + $0x129] sm:$0xff]
      %v3293 = vld [vmem:[%s2591 + $0x139] sm:$0xff]
      %v3294 = vld [vmem:[%s2591 + $0x141] sm:$0xff]
      %v3295 = vld [vmem:[%s2591 + $0x151] sm:$0xff]
      %v3296 = vld [vmem:[%s2591 + $0x159] sm:$0xff]
      %v3297 = vld [vmem:[%s2591 + $0x169] sm:$0xff]
      %v3298 = vld [vmem:[%s2591 + $0x171] sm:$0xff]
      %3299 = vst.msk [vmem:[#allocation5 + $0x8] sm:$0xff] %vm2535, %v3267
      %3300 = vst.msk [vmem:[#allocation5 + $0x20] sm:$0xff] %vm2535, %v3268
      %3301 = vst.msk [vmem:[#allocation5 + $0x38] sm:$0xff] %vm2535, %v3269
      %3302 = vst.msk [vmem:[#allocation5 + $0x50] sm:$0xff] %vm2535, %v3270
      %3303 = vst.msk [vmem:[#allocation5 + $0x68] sm:$0xff] %vm2535, %v3271
      %3304 = vst.msk [vmem:[#allocation5 + $0x80] sm:$0xff] %vm2535, %v3272
      %3305 = vst.msk [vmem:[#allocation5 + $0x98] sm:$0xff] %vm2535, %v3273
      %3306 = vst.msk [vmem:[#allocation5 + $0xb0] sm:$0xff] %vm2535, %v3274
      %3307 = vst.msk [vmem:[#allocation5 + $0xc8] sm:$0xff] %vm2535, %v3275
      %3308 = vst.msk [vmem:[#allocation5 + $0xe0] sm:$0xff] %vm2535, %v3276
      %3309 = vst.msk [vmem:[#allocation5 + $0xf8] sm:$0xff] %vm2535, %v3277
      %3310 = vst.msk [vmem:[#allocation5 + $0x110] sm:$0xff] %vm2535, %v3278
      %3311 = vst.msk [vmem:[#allocation5 + $0x128] sm:$0xff] %vm2535, %v3279
      %3312 = vst.msk [vmem:[#allocation5 + $0x140] sm:$0xff] %vm2535, %v3280
      %3313 = vst.msk [vmem:[#allocation5 + $0x158] sm:$0xff] %vm2535, %v3281
      %3314 = vst.msk [vmem:[#allocation5 + $0x170] sm:$0xff] %vm2535, %v3282
      %3315 = vst.msk [vmem:[#allocation5 + $0x188] sm:$0xff] %vm2535, %v3283
      %3316 = vst.msk [vmem:[#allocation5 + $0x1a0] sm:$0xff] %vm2535, %v3284
      %3317 = vst.msk [vmem:[#allocation5 + $0x1b8] sm:$0xff] %vm2535, %v3285
      %3318 = vst.msk [vmem:[#allocation5 + $0x1d0] sm:$0xff] %vm2535, %v3286
      %3319 = vst.msk [vmem:[#allocation5 + $0x1e8] sm:$0xff] %vm2535, %v3287
      %3320 = vst.msk [vmem:[#allocation5 + $0x200] sm:$0xff] %vm2535, %v3288
      %3321 = vst.msk [vmem:[#allocation5 + $0x218] sm:$0xff] %vm2535, %v3289
      %3322 = vst.msk [vmem:[#allocation5 + $0x230] sm:$0xff] %vm2535, %v3290
      %3323 = vst.msk [vmem:[#allocation5 + $0x248] sm:$0xff] %vm2535, %v3291
      %3324 = vst.msk [vmem:[#allocation5 + $0x260] sm:$0xff] %vm2535, %v3292
      %3325 = vst.msk [vmem:[#allocation5 + $0x278] sm:$0xff] %vm2535, %v3293
      %3326 = vst.msk [vmem:[#allocation5 + $0x290] sm:$0xff] %vm2535, %v3294
      %3327 = vst.msk [vmem:[#allocation5 + $0x2a8] sm:$0xff] %vm2535, %v3295
      %3328 = vst.msk [vmem:[#allocation5 + $0x2c0] sm:$0xff] %vm2535, %v3296
      %3329 = vst.msk [vmem:[#allocation5 + $0x2d8] sm:$0xff] %vm2535, %v3297
      %3330 = vst.msk [vmem:[#allocation5 + $0x2f0] sm:$0xff] %vm2535, %v3298
      %v3331 = vld [vmem:[%s2591 + $0x2] sm:$0xff]
      %v3332 = vld [vmem:[%s2591 + $0xa] sm:$0xff]
      %v3333 = vld [vmem:[%s2591 + $0x1a] sm:$0xff]
      %v3334 = vld [vmem:[%s2591 + $0x22] sm:$0xff]
      %v3335 = vld [vmem:[%s2591 + $0x32] sm:$0xff]
      %v3336 = vld [vmem:[%s2591 + $0x3a] sm:$0xff]
      %v3337 = vld [vmem:[%s2591 + $0x4a] sm:$0xff]
      %v3338 = vld [vmem:[%s2591 + $0x52] sm:$0xff]
      %v3339 = vld [vmem:[%s2591 + $0x62] sm:$0xff]
      %v3340 = vld [vmem:[%s2591 + $0x6a] sm:$0xff]
      %v3341 = vld [vmem:[%s2591 + $0x7a] sm:$0xff]
      %v3342 = vld [vmem:[%s2591 + $0x82] sm:$0xff]
      %v3343 = vld [vmem:[%s2591 + $0x92] sm:$0xff]
      %v3344 = vld [vmem:[%s2591 + $0x9a] sm:$0xff]
      %v3345 = vld [vmem:[%s2591 + $0xaa] sm:$0xff]
      %v3346 = vld [vmem:[%s2591 + $0xb2] sm:$0xff]
      %v3347 = vld [vmem:[%s2591 + $0xc2] sm:$0xff]
      %v3348 = vld [vmem:[%s2591 + $0xca] sm:$0xff]
      %v3349 = vld [vmem:[%s2591 + $0xda] sm:$0xff]
      %v3350 = vld [vmem:[%s2591 + $0xe2] sm:$0xff]
      %v3351 = vld [vmem:[%s2591 + $0xf2] sm:$0xff]
      %v3352 = vld [vmem:[%s2591 + $0xfa] sm:$0xff]
      %v3353 = vld [vmem:[%s2591 + $0x10a] sm:$0xff]
      %v3354 = vld [vmem:[%s2591 + $0x112] sm:$0xff]
      %v3355 = vld [vmem:[%s2591 + $0x122] sm:$0xff]
      %v3356 = vld [vmem:[%s2591 + $0x12a] sm:$0xff]
      %v3357 = vld [vmem:[%s2591 + $0x13a] sm:$0xff]
      %v3358 = vld [vmem:[%s2591 + $0x142] sm:$0xff]
      %v3359 = vld [vmem:[%s2591 + $0x152] sm:$0xff]
      %v3360 = vld [vmem:[%s2591 + $0x15a] sm:$0xff]
      %v3361 = vld [vmem:[%s2591 + $0x16a] sm:$0xff]
      %v3362 = vld [vmem:[%s2591 + $0x172] sm:$0xff]
      %3395 = vrot.lane.b32.xlu0 %v3331, 32
      %v3396 = vpop.permute.xlu0 %3395
      %3397 = vrot.lane.b32.xlu0 %v3332, 32
      %v3398 = vpop.permute.xlu0 %3397
      %3399 = vrot.lane.b32.xlu0 %v3333, 32
      %v3400 = vpop.permute.xlu0 %3399
      %3401 = vrot.lane.b32.xlu0 %v3334, 32
      %v3402 = vpop.permute.xlu0 %3401
      %3403 = vrot.lane.b32.xlu0 %v3335, 32
      %v3404 = vpop.permute.xlu0 %3403
      %3405 = vrot.lane.b32.xlu0 %v3336, 32
      %v3406 = vpop.permute.xlu0 %3405
      %3407 = vrot.lane.b32.xlu0 %v3337, 32
      %v3408 = vpop.permute.xlu0 %3407
      %3409 = vrot.lane.b32.xlu0 %v3338, 32
      %v3410 = vpop.permute.xlu0 %3409
      %3411 = vrot.lane.b32.xlu0 %v3339, 32
      %v3412 = vpop.permute.xlu0 %3411
      %3413 = vrot.lane.b32.xlu0 %v3340, 32
      %v3414 = vpop.permute.xlu0 %3413
      %3415 = vrot.lane.b32.xlu0 %v3341, 32
      %v3416 = vpop.permute.xlu0 %3415
      %3417 = vrot.lane.b32.xlu0 %v3342, 32
      %v3418 = vpop.permute.xlu0 %3417
      %3419 = vrot.lane.b32.xlu0 %v3343, 32
      %v3420 = vpop.permute.xlu0 %3419
      %3421 = vrot.lane.b32.xlu0 %v3344, 32
      %v3422 = vpop.permute.xlu0 %3421
      %3423 = vrot.lane.b32.xlu0 %v3345, 32
      %v3424 = vpop.permute.xlu0 %3423
      %3425 = vrot.lane.b32.xlu0 %v3346, 32
      %v3426 = vpop.permute.xlu0 %3425
      %3427 = vrot.lane.b32.xlu0 %v3347, 32
      %v3428 = vpop.permute.xlu0 %3427
      %3429 = vrot.lane.b32.xlu0 %v3348, 32
      %v3430 = vpop.permute.xlu0 %3429
      %3431 = vrot.lane.b32.xlu0 %v3349, 32
      %v3432 = vpop.permute.xlu0 %3431
      %3433 = vrot.lane.b32.xlu0 %v3350, 32
      %v3434 = vpop.permute.xlu0 %3433
      %3435 = vrot.lane.b32.xlu0 %v3351, 32
      %v3436 = vpop.permute.xlu0 %3435
      %3437 = vrot.lane.b32.xlu0 %v3352, 32
      %v3438 = vpop.permute.xlu0 %3437
      %3439 = vrot.lane.b32.xlu0 %v3353, 32
      %v3440 = vpop.permute.xlu0 %3439
      %3441 = vrot.lane.b32.xlu0 %v3354, 32
      %v3442 = vpop.permute.xlu0 %3441
      %3443 = vrot.lane.b32.xlu0 %v3355, 32
      %v3444 = vpop.permute.xlu0 %3443
      %3445 = vrot.lane.b32.xlu0 %v3356, 32
      %v3446 = vpop.permute.xlu0 %3445
      %3447 = vrot.lane.b32.xlu0 %v3357, 32
      %v3448 = vpop.permute.xlu0 %3447
      %3449 = vrot.lane.b32.xlu0 %v3358, 32
      %v3450 = vpop.permute.xlu0 %3449
      %3451 = vrot.lane.b32.xlu0 %v3359, 32
      %v3452 = vpop.permute.xlu0 %3451
      %3453 = vrot.lane.b32.xlu0 %v3360, 32
      %v3454 = vpop.permute.xlu0 %3453
      %3455 = vrot.lane.b32.xlu0 %v3361, 32
      %v3456 = vpop.permute.xlu0 %3455
      %3457 = vrot.lane.b32.xlu0 %v3362, 32
      %v3458 = vpop.permute.xlu0 %3457
      %3491 = vst.msk [vmem:[#allocation5 + $0x8] sm:$0xff] %vm2848, %v3396
      %3492 = vst.msk [vmem:[#allocation5 + $0x20] sm:$0xff] %vm2848, %v3398
      %3493 = vst.msk [vmem:[#allocation5 + $0x38] sm:$0xff] %vm2848, %v3400
      %3494 = vst.msk [vmem:[#allocation5 + $0x50] sm:$0xff] %vm2848, %v3402
      %3495 = vst.msk [vmem:[#allocation5 + $0x68] sm:$0xff] %vm2848, %v3404
      %3496 = vst.msk [vmem:[#allocation5 + $0x80] sm:$0xff] %vm2848, %v3406
      %3497 = vst.msk [vmem:[#allocation5 + $0x98] sm:$0xff] %vm2848, %v3408
      %3498 = vst.msk [vmem:[#allocation5 + $0xb0] sm:$0xff] %vm2848, %v3410
      %3499 = vst.msk [vmem:[#allocation5 + $0xc8] sm:$0xff] %vm2848, %v3412
      %3500 = vst.msk [vmem:[#allocation5 + $0xe0] sm:$0xff] %vm2848, %v3414
      %3501 = vst.msk [vmem:[#allocation5 + $0xf8] sm:$0xff] %vm2848, %v3416
      %3502 = vst.msk [vmem:[#allocation5 + $0x110] sm:$0xff] %vm2848, %v3418
      %3503 = vst.msk [vmem:[#allocation5 + $0x128] sm:$0xff] %vm2848, %v3420
      %3504 = vst.msk [vmem:[#allocation5 + $0x140] sm:$0xff] %vm2848, %v3422
      %3505 = vst.msk [vmem:[#allocation5 + $0x158] sm:$0xff] %vm2848, %v3424
      %3506 = vst.msk [vmem:[#allocation5 + $0x170] sm:$0xff] %vm2848, %v3426
      %3507 = vst.msk [vmem:[#allocation5 + $0x188] sm:$0xff] %vm2848, %v3428
      %3508 = vst.msk [vmem:[#allocation5 + $0x1a0] sm:$0xff] %vm2848, %v3430
      %3509 = vst.msk [vmem:[#allocation5 + $0x1b8] sm:$0xff] %vm2848, %v3432
      %3510 = vst.msk [vmem:[#allocation5 + $0x1d0] sm:$0xff] %vm2848, %v3434
      %3511 = vst.msk [vmem:[#allocation5 + $0x1e8] sm:$0xff] %vm2848, %v3436
      %3512 = vst.msk [vmem:[#allocation5 + $0x200] sm:$0xff] %vm2848, %v3438
      %3513 = vst.msk [vmem:[#allocation5 + $0x218] sm:$0xff] %vm2848, %v3440
      %3514 = vst.msk [vmem:[#allocation5 + $0x230] sm:$0xff] %vm2848, %v3442
      %3515 = vst.msk [vmem:[#allocation5 + $0x248] sm:$0xff] %vm2848, %v3444
      %3516 = vst.msk [vmem:[#allocation5 + $0x260] sm:$0xff] %vm2848, %v3446
      %3517 = vst.msk [vmem:[#allocation5 + $0x278] sm:$0xff] %vm2848, %v3448
      %3518 = vst.msk [vmem:[#allocation5 + $0x290] sm:$0xff] %vm2848, %v3450
      %3519 = vst.msk [vmem:[#allocation5 + $0x2a8] sm:$0xff] %vm2848, %v3452
      %3520 = vst.msk [vmem:[#allocation5 + $0x2c0] sm:$0xff] %vm2848, %v3454
      %3521 = vst.msk [vmem:[#allocation5 + $0x2d8] sm:$0xff] %vm2848, %v3456
      %3522 = vst.msk [vmem:[#allocation5 + $0x2f0] sm:$0xff] %vm2848, %v3458
      %s3523 = scalar_lea.vmem [#allocation3], 48
      %v3524 = vld [vmem:[%s3523] sm:$0xff]
      %v3525 = vld [vmem:[%s3523 + $0x8] sm:$0xff]
      %v3526 = vld [vmem:[%s3523 + $0x18] sm:$0xff]
      %v3527 = vld [vmem:[%s3523 + $0x20] sm:$0xff]
      %v3528 = vld [vmem:[%s3523 + $0x30] sm:$0xff]
      %v3529 = vld [vmem:[%s3523 + $0x38] sm:$0xff]
      %v3530 = vld [vmem:[%s3523 + $0x48] sm:$0xff]
      %v3531 = vld [vmem:[%s3523 + $0x50] sm:$0xff]
      %v3532 = vld [vmem:[%s3523 + $0x60] sm:$0xff]
      %v3533 = vld [vmem:[%s3523 + $0x68] sm:$0xff]
      %v3534 = vld [vmem:[%s3523 + $0x78] sm:$0xff]
      %v3535 = vld [vmem:[%s3523 + $0x80] sm:$0xff]
      %v3536 = vld [vmem:[%s3523 + $0x90] sm:$0xff]
      %v3537 = vld [vmem:[%s3523 + $0x98] sm:$0xff]
      %v3538 = vld [vmem:[%s3523 + $0xa8] sm:$0xff]
      %v3539 = vld [vmem:[%s3523 + $0xb0] sm:$0xff]
      %v3540 = vld [vmem:[%s3523 + $0xc0] sm:$0xff]
      %v3541 = vld [vmem:[%s3523 + $0xc8] sm:$0xff]
      %v3542 = vld [vmem:[%s3523 + $0xd8] sm:$0xff]
      %v3543 = vld [vmem:[%s3523 + $0xe0] sm:$0xff]
      %v3544 = vld [vmem:[%s3523 + $0xf0] sm:$0xff]
      %v3545 = vld [vmem:[%s3523 + $0xf8] sm:$0xff]
      %v3546 = vld [vmem:[%s3523 + $0x108] sm:$0xff]
      %v3547 = vld [vmem:[%s3523 + $0x110] sm:$0xff]
      %v3548 = vld [vmem:[%s3523 + $0x120] sm:$0xff]
      %v3549 = vld [vmem:[%s3523 + $0x128] sm:$0xff]
      %v3550 = vld [vmem:[%s3523 + $0x138] sm:$0xff]
      %v3551 = vld [vmem:[%s3523 + $0x140] sm:$0xff]
      %v3552 = vld [vmem:[%s3523 + $0x150] sm:$0xff]
      %v3553 = vld [vmem:[%s3523 + $0x158] sm:$0xff]
      %v3554 = vld [vmem:[%s3523 + $0x168] sm:$0xff]
      %v3555 = vld [vmem:[%s3523 + $0x170] sm:$0xff]
      %3588 = vrot.lane.b32.xlu0 %v3524, 64
      %v3589 = vpop.permute.xlu0 %3588
      %3590 = vrot.lane.b32.xlu0 %v3525, 64
      %v3591 = vpop.permute.xlu0 %3590
      %3592 = vrot.lane.b32.xlu0 %v3526, 64
      %v3593 = vpop.permute.xlu0 %3592
      %3594 = vrot.lane.b32.xlu0 %v3527, 64
      %v3595 = vpop.permute.xlu0 %3594
      %3596 = vrot.lane.b32.xlu0 %v3528, 64
      %v3597 = vpop.permute.xlu0 %3596
      %3598 = vrot.lane.b32.xlu0 %v3529, 64
      %v3599 = vpop.permute.xlu0 %3598
      %3600 = vrot.lane.b32.xlu0 %v3530, 64
      %v3601 = vpop.permute.xlu0 %3600
      %3602 = vrot.lane.b32.xlu0 %v3531, 64
      %v3603 = vpop.permute.xlu0 %3602
      %3604 = vrot.lane.b32.xlu0 %v3532, 64
      %v3605 = vpop.permute.xlu0 %3604
      %3606 = vrot.lane.b32.xlu0 %v3533, 64
      %v3607 = vpop.permute.xlu0 %3606
      %3608 = vrot.lane.b32.xlu0 %v3534, 64
      %v3609 = vpop.permute.xlu0 %3608
      %3610 = vrot.lane.b32.xlu0 %v3535, 64
      %v3611 = vpop.permute.xlu0 %3610
      %3612 = vrot.lane.b32.xlu0 %v3536, 64
      %v3613 = vpop.permute.xlu0 %3612
      %3614 = vrot.lane.b32.xlu0 %v3537, 64
      %v3615 = vpop.permute.xlu0 %3614
      %3616 = vrot.lane.b32.xlu0 %v3538, 64
      %v3617 = vpop.permute.xlu0 %3616
      %3618 = vrot.lane.b32.xlu0 %v3539, 64
      %v3619 = vpop.permute.xlu0 %3618
      %3620 = vrot.lane.b32.xlu0 %v3540, 64
      %v3621 = vpop.permute.xlu0 %3620
      %3622 = vrot.lane.b32.xlu0 %v3541, 64
      %v3623 = vpop.permute.xlu0 %3622
      %3624 = vrot.lane.b32.xlu0 %v3542, 64
      %v3625 = vpop.permute.xlu0 %3624
      %3626 = vrot.lane.b32.xlu0 %v3543, 64
      %v3627 = vpop.permute.xlu0 %3626
      %3628 = vrot.lane.b32.xlu0 %v3544, 64
      %v3629 = vpop.permute.xlu0 %3628
      %3630 = vrot.lane.b32.xlu0 %v3545, 64
      %v3631 = vpop.permute.xlu0 %3630
      %3632 = vrot.lane.b32.xlu0 %v3546, 64
      %v3633 = vpop.permute.xlu0 %3632
      %3634 = vrot.lane.b32.xlu0 %v3547, 64
      %v3635 = vpop.permute.xlu0 %3634
      %3636 = vrot.lane.b32.xlu0 %v3548, 64
      %v3637 = vpop.permute.xlu0 %3636
      %3638 = vrot.lane.b32.xlu0 %v3549, 64
      %v3639 = vpop.permute.xlu0 %3638
      %3640 = vrot.lane.b32.xlu0 %v3550, 64
      %v3641 = vpop.permute.xlu0 %3640
      %3642 = vrot.lane.b32.xlu0 %v3551, 64
      %v3643 = vpop.permute.xlu0 %3642
      %3644 = vrot.lane.b32.xlu0 %v3552, 64
      %v3645 = vpop.permute.xlu0 %3644
      %3646 = vrot.lane.b32.xlu0 %v3553, 64
      %v3647 = vpop.permute.xlu0 %3646
      %3648 = vrot.lane.b32.xlu0 %v3554, 64
      %v3649 = vpop.permute.xlu0 %3648
      %3650 = vrot.lane.b32.xlu0 %v3555, 64
      %v3651 = vpop.permute.xlu0 %3650
      %3684 = vst.msk [vmem:[#allocation5 + $0x8] sm:$0xff] %vm3041, %v3589
      %3685 = vst.msk [vmem:[#allocation5 + $0x20] sm:$0xff] %vm3041, %v3591
      %3686 = vst.msk [vmem:[#allocation5 + $0x38] sm:$0xff] %vm3041, %v3593
      %3687 = vst.msk [vmem:[#allocation5 + $0x50] sm:$0xff] %vm3041, %v3595
      %3688 = vst.msk [vmem:[#allocation5 + $0x68] sm:$0xff] %vm3041, %v3597
      %3689 = vst.msk [vmem:[#allocation5 + $0x80] sm:$0xff] %vm3041, %v3599
      %3690 = vst.msk [vmem:[#allocation5 + $0x98] sm:$0xff] %vm3041, %v3601
      %3691 = vst.msk [vmem:[#allocation5 + $0xb0] sm:$0xff] %vm3041, %v3603
      %3692 = vst.msk [vmem:[#allocation5 + $0xc8] sm:$0xff] %vm3041, %v3605
      %3693 = vst.msk [vmem:[#allocation5 + $0xe0] sm:$0xff] %vm3041, %v3607
      %3694 = vst.msk [vmem:[#allocation5 + $0xf8] sm:$0xff] %vm3041, %v3609
      %3695 = vst.msk [vmem:[#allocation5 + $0x110] sm:$0xff] %vm3041, %v3611
      %3696 = vst.msk [vmem:[#allocation5 + $0x128] sm:$0xff] %vm3041, %v3613
      %3697 = vst.msk [vmem:[#allocation5 + $0x140] sm:$0xff] %vm3041, %v3615
      %3698 = vst.msk [vmem:[#allocation5 + $0x158] sm:$0xff] %vm3041, %v3617
      %3699 = vst.msk [vmem:[#allocation5 + $0x170] sm:$0xff] %vm3041, %v3619
      %3700 = vst.msk [vmem:[#allocation5 + $0x188] sm:$0xff] %vm3041, %v3621
      %3701 = vst.msk [vmem:[#allocation5 + $0x1a0] sm:$0xff] %vm3041, %v3623
      %3702 = vst.msk [vmem:[#allocation5 + $0x1b8] sm:$0xff] %vm3041, %v3625
      %3703 = vst.msk [vmem:[#allocation5 + $0x1d0] sm:$0xff] %vm3041, %v3627
      %3704 = vst.msk [vmem:[#allocation5 + $0x1e8] sm:$0xff] %vm3041, %v3629
      %3705 = vst.msk [vmem:[#allocation5 + $0x200] sm:$0xff] %vm3041, %v3631
      %3706 = vst.msk [vmem:[#allocation5 + $0x218] sm:$0xff] %vm3041, %v3633
      %3707 = vst.msk [vmem:[#allocation5 + $0x230] sm:$0xff] %vm3041, %v3635
      %3708 = vst.msk [vmem:[#allocation5 + $0x248] sm:$0xff] %vm3041, %v3637
      %3709 = vst.msk [vmem:[#allocation5 + $0x260] sm:$0xff] %vm3041, %v3639
      %3710 = vst.msk [vmem:[#allocation5 + $0x278] sm:$0xff] %vm3041, %v3641
      %3711 = vst.msk [vmem:[#allocation5 + $0x290] sm:$0xff] %vm3041, %v3643
      %3712 = vst.msk [vmem:[#allocation5 + $0x2a8] sm:$0xff] %vm3041, %v3645
      %3713 = vst.msk [vmem:[#allocation5 + $0x2c0] sm:$0xff] %vm3041, %v3647
      %3714 = vst.msk [vmem:[#allocation5 + $0x2d8] sm:$0xff] %vm3041, %v3649
      %3715 = vst.msk [vmem:[#allocation5 + $0x2f0] sm:$0xff] %vm3041, %v3651
      %v3716 = vld [vmem:[%s3523 + $0x1] sm:$0xff]
      %v3717 = vld [vmem:[%s3523 + $0x9] sm:$0xff]
      %v3718 = vld [vmem:[%s3523 + $0x19] sm:$0xff]
      %v3719 = vld [vmem:[%s3523 + $0x21] sm:$0xff]
      %v3720 = vld [vmem:[%s3523 + $0x31] sm:$0xff]
      %v3721 = vld [vmem:[%s3523 + $0x39] sm:$0xff]
      %v3722 = vld [vmem:[%s3523 + $0x49] sm:$0xff]
      %v3723 = vld [vmem:[%s3523 + $0x51] sm:$0xff]
      %v3724 = vld [vmem:[%s3523 + $0x61] sm:$0xff]
      %v3725 = vld [vmem:[%s3523 + $0x69] sm:$0xff]
      %v3726 = vld [vmem:[%s3523 + $0x79] sm:$0xff]
      %v3727 = vld [vmem:[%s3523 + $0x81] sm:$0xff]
      %v3728 = vld [vmem:[%s3523 + $0x91] sm:$0xff]
      %v3729 = vld [vmem:[%s3523 + $0x99] sm:$0xff]
      %v3730 = vld [vmem:[%s3523 + $0xa9] sm:$0xff]
      %v3731 = vld [vmem:[%s3523 + $0xb1] sm:$0xff]
      %v3732 = vld [vmem:[%s3523 + $0xc1] sm:$0xff]
      %v3733 = vld [vmem:[%s3523 + $0xc9] sm:$0xff]
      %v3734 = vld [vmem:[%s3523 + $0xd9] sm:$0xff]
      %v3735 = vld [vmem:[%s3523 + $0xe1] sm:$0xff]
      %v3736 = vld [vmem:[%s3523 + $0xf1] sm:$0xff]
      %v3737 = vld [vmem:[%s3523 + $0xf9] sm:$0xff]
      %v3738 = vld [vmem:[%s3523 + $0x109] sm:$0xff]
      %v3739 = vld [vmem:[%s3523 + $0x111] sm:$0xff]
      %v3740 = vld [vmem:[%s3523 + $0x121] sm:$0xff]
      %v3741 = vld [vmem:[%s3523 + $0x129] sm:$0xff]
      %v3742 = vld [vmem:[%s3523 + $0x139] sm:$0xff]
      %v3743 = vld [vmem:[%s3523 + $0x141] sm:$0xff]
      %v3744 = vld [vmem:[%s3523 + $0x151] sm:$0xff]
      %v3745 = vld [vmem:[%s3523 + $0x159] sm:$0xff]
      %v3746 = vld [vmem:[%s3523 + $0x169] sm:$0xff]
      %v3747 = vld [vmem:[%s3523 + $0x171] sm:$0xff]
      %3780 = vrot.lane.b32.xlu0 %v3716, 96
      %v3781 = vpop.permute.xlu0 %3780
      %3782 = vrot.lane.b32.xlu0 %v3717, 96
      %v3783 = vpop.permute.xlu0 %3782
      %3784 = vrot.lane.b32.xlu0 %v3718, 96
      %v3785 = vpop.permute.xlu0 %3784
      %3786 = vrot.lane.b32.xlu0 %v3719, 96
      %v3787 = vpop.permute.xlu0 %3786
      %3788 = vrot.lane.b32.xlu0 %v3720, 96
      %v3789 = vpop.permute.xlu0 %3788
      %3790 = vrot.lane.b32.xlu0 %v3721, 96
      %v3791 = vpop.permute.xlu0 %3790
      %3792 = vrot.lane.b32.xlu0 %v3722, 96
      %v3793 = vpop.permute.xlu0 %3792
      %3794 = vrot.lane.b32.xlu0 %v3723, 96
      %v3795 = vpop.permute.xlu0 %3794
      %3796 = vrot.lane.b32.xlu0 %v3724, 96
      %v3797 = vpop.permute.xlu0 %3796
      %3798 = vrot.lane.b32.xlu0 %v3725, 96
      %v3799 = vpop.permute.xlu0 %3798
      %3800 = vrot.lane.b32.xlu0 %v3726, 96
      %v3801 = vpop.permute.xlu0 %3800
      %3802 = vrot.lane.b32.xlu0 %v3727, 96
      %v3803 = vpop.permute.xlu0 %3802
      %3804 = vrot.lane.b32.xlu0 %v3728, 96
      %v3805 = vpop.permute.xlu0 %3804
      %3806 = vrot.lane.b32.xlu0 %v3729, 96
      %v3807 = vpop.permute.xlu0 %3806
      %3808 = vrot.lane.b32.xlu0 %v3730, 96
      %v3809 = vpop.permute.xlu0 %3808
      %3810 = vrot.lane.b32.xlu0 %v3731, 96
      %v3811 = vpop.permute.xlu0 %3810
      %3812 = vrot.lane.b32.xlu0 %v3732, 96
      %v3813 = vpop.permute.xlu0 %3812
      %3814 = vrot.lane.b32.xlu0 %v3733, 96
      %v3815 = vpop.permute.xlu0 %3814
      %3816 = vrot.lane.b32.xlu0 %v3734, 96
      %v3817 = vpop.permute.xlu0 %3816
      %3818 = vrot.lane.b32.xlu0 %v3735, 96
      %v3819 = vpop.permute.xlu0 %3818
      %3820 = vrot.lane.b32.xlu0 %v3736, 96
      %v3821 = vpop.permute.xlu0 %3820
      %3822 = vrot.lane.b32.xlu0 %v3737, 96
      %v3823 = vpop.permute.xlu0 %3822
      %3824 = vrot.lane.b32.xlu0 %v3738, 96
      %v3825 = vpop.permute.xlu0 %3824
      %3826 = vrot.lane.b32.xlu0 %v3739, 96
      %v3827 = vpop.permute.xlu0 %3826
      %3828 = vrot.lane.b32.xlu0 %v3740, 96
      %v3829 = vpop.permute.xlu0 %3828
      %3830 = vrot.lane.b32.xlu0 %v3741, 96
      %v3831 = vpop.permute.xlu0 %3830
      %3832 = vrot.lane.b32.xlu0 %v3742, 96
      %v3833 = vpop.permute.xlu0 %3832
      %3834 = vrot.lane.b32.xlu0 %v3743, 96
      %v3835 = vpop.permute.xlu0 %3834
      %3836 = vrot.lane.b32.xlu0 %v3744, 96
      %v3837 = vpop.permute.xlu0 %3836
      %3838 = vrot.lane.b32.xlu0 %v3745, 96
      %v3839 = vpop.permute.xlu0 %3838
      %3840 = vrot.lane.b32.xlu0 %v3746, 96
      %v3841 = vpop.permute.xlu0 %3840
      %3842 = vrot.lane.b32.xlu0 %v3747, 96
      %v3843 = vpop.permute.xlu0 %3842
      %3876 = vst.msk [vmem:[#allocation5 + $0x8] sm:$0xff] %vm3234, %v3781
      %3877 = vst.msk [vmem:[#allocation5 + $0x20] sm:$0xff] %vm3234, %v3783
      %3878 = vst.msk [vmem:[#allocation5 + $0x38] sm:$0xff] %vm3234, %v3785
      %3879 = vst.msk [vmem:[#allocation5 + $0x50] sm:$0xff] %vm3234, %v3787
      %3880 = vst.msk [vmem:[#allocation5 + $0x68] sm:$0xff] %vm3234, %v3789
      %3881 = vst.msk [vmem:[#allocation5 + $0x80] sm:$0xff] %vm3234, %v3791
      %3882 = vst.msk [vmem:[#allocation5 + $0x98] sm:$0xff] %vm3234, %v3793
      %3883 = vst.msk [vmem:[#allocation5 + $0xb0] sm:$0xff] %vm3234, %v3795
      %3884 = vst.msk [vmem:[#allocation5 + $0xc8] sm:$0xff] %vm3234, %v3797
      %3885 = vst.msk [vmem:[#allocation5 + $0xe0] sm:$0xff] %vm3234, %v3799
      %3886 = vst.msk [vmem:[#allocation5 + $0xf8] sm:$0xff] %vm3234, %v3801
      %3887 = vst.msk [vmem:[#allocation5 + $0x110] sm:$0xff] %vm3234, %v3803
      %3888 = vst.msk [vmem:[#allocation5 + $0x128] sm:$0xff] %vm3234, %v3805
      %3889 = vst.msk [vmem:[#allocation5 + $0x140] sm:$0xff] %vm3234, %v3807
      %3890 = vst.msk [vmem:[#allocation5 + $0x158] sm:$0xff] %vm3234, %v3809
      %3891 = vst.msk [vmem:[#allocation5 + $0x170] sm:$0xff] %vm3234, %v3811
      %3892 = vst.msk [vmem:[#allocation5 + $0x188] sm:$0xff] %vm3234, %v3813
      %3893 = vst.msk [vmem:[#allocation5 + $0x1a0] sm:$0xff] %vm3234, %v3815
      %3894 = vst.msk [vmem:[#allocation5 + $0x1b8] sm:$0xff] %vm3234, %v3817
      %3895 = vst.msk [vmem:[#allocation5 + $0x1d0] sm:$0xff] %vm3234, %v3819
      %3896 = vst.msk [vmem:[#allocation5 + $0x1e8] sm:$0xff] %vm3234, %v3821
      %3897 = vst.msk [vmem:[#allocation5 + $0x200] sm:$0xff] %vm3234, %v3823
      %3898 = vst.msk [vmem:[#allocation5 + $0x218] sm:$0xff] %vm3234, %v3825
      %3899 = vst.msk [vmem:[#allocation5 + $0x230] sm:$0xff] %vm3234, %v3827
      %3900 = vst.msk [vmem:[#allocation5 + $0x248] sm:$0xff] %vm3234, %v3829
      %3901 = vst.msk [vmem:[#allocation5 + $0x260] sm:$0xff] %vm3234, %v3831
      %3902 = vst.msk [vmem:[#allocation5 + $0x278] sm:$0xff] %vm3234, %v3833
      %3903 = vst.msk [vmem:[#allocation5 + $0x290] sm:$0xff] %vm3234, %v3835
      %3904 = vst.msk [vmem:[#allocation5 + $0x2a8] sm:$0xff] %vm3234, %v3837
      %3905 = vst.msk [vmem:[#allocation5 + $0x2c0] sm:$0xff] %vm3234, %v3839
      %3906 = vst.msk [vmem:[#allocation5 + $0x2d8] sm:$0xff] %vm3234, %v3841
      %3907 = vst.msk [vmem:[#allocation5 + $0x2f0] sm:$0xff] %vm3234, %v3843
      %v3908 = vld [vmem:[%s3523 + $0x2] sm:$0xff]
      %v3909 = vld [vmem:[%s3523 + $0xa] sm:$0xff]
      %v3910 = vld [vmem:[%s3523 + $0x1a] sm:$0xff]
      %v3911 = vld [vmem:[%s3523 + $0x22] sm:$0xff]
      %v3912 = vld [vmem:[%s3523 + $0x32] sm:$0xff]
      %v3913 = vld [vmem:[%s3523 + $0x3a] sm:$0xff]
      %v3914 = vld [vmem:[%s3523 + $0x4a] sm:$0xff]
      %v3915 = vld [vmem:[%s3523 + $0x52] sm:$0xff]
      %v3916 = vld [vmem:[%s3523 + $0x62] sm:$0xff]
      %v3917 = vld [vmem:[%s3523 + $0x6a] sm:$0xff]
      %v3918 = vld [vmem:[%s3523 + $0x7a] sm:$0xff]
      %v3919 = vld [vmem:[%s3523 + $0x82] sm:$0xff]
      %v3920 = vld [vmem:[%s3523 + $0x92] sm:$0xff]
      %v3921 = vld [vmem:[%s3523 + $0x9a] sm:$0xff]
      %v3922 = vld [vmem:[%s3523 + $0xaa] sm:$0xff]
      %v3923 = vld [vmem:[%s3523 + $0xb2] sm:$0xff]
      %v3924 = vld [vmem:[%s3523 + $0xc2] sm:$0xff]
      %v3925 = vld [vmem:[%s3523 + $0xca] sm:$0xff]
      %v3926 = vld [vmem:[%s3523 + $0xda] sm:$0xff]
      %v3927 = vld [vmem:[%s3523 + $0xe2] sm:$0xff]
      %v3928 = vld [vmem:[%s3523 + $0xf2] sm:$0xff]
      %v3929 = vld [vmem:[%s3523 + $0xfa] sm:$0xff]
      %v3930 = vld [vmem:[%s3523 + $0x10a] sm:$0xff]
      %v3931 = vld [vmem:[%s3523 + $0x112] sm:$0xff]
      %v3932 = vld [vmem:[%s3523 + $0x122] sm:$0xff]
      %v3933 = vld [vmem:[%s3523 + $0x12a] sm:$0xff]
      %v3934 = vld [vmem:[%s3523 + $0x13a] sm:$0xff]
      %v3935 = vld [vmem:[%s3523 + $0x142] sm:$0xff]
      %v3936 = vld [vmem:[%s3523 + $0x152] sm:$0xff]
      %v3937 = vld [vmem:[%s3523 + $0x15a] sm:$0xff]
      %v3938 = vld [vmem:[%s3523 + $0x16a] sm:$0xff]
      %v3939 = vld [vmem:[%s3523 + $0x172] sm:$0xff]
      %3940 = vst.msk [vmem:[#allocation5 + $0x10] sm:$0xff] %vm2535, %v3908
      %3941 = vst.msk [vmem:[#allocation5 + $0x28] sm:$0xff] %vm2535, %v3909
      %3942 = vst.msk [vmem:[#allocation5 + $0x40] sm:$0xff] %vm2535, %v3910
      %3943 = vst.msk [vmem:[#allocation5 + $0x58] sm:$0xff] %vm2535, %v3911
      %3944 = vst.msk [vmem:[#allocation5 + $0x70] sm:$0xff] %vm2535, %v3912
      %3945 = vst.msk [vmem:[#allocation5 + $0x88] sm:$0xff] %vm2535, %v3913
      %3946 = vst.msk [vmem:[#allocation5 + $0xa0] sm:$0xff] %vm2535, %v3914
      %3947 = vst.msk [vmem:[#allocation5 + $0xb8] sm:$0xff] %vm2535, %v3915
      %3948 = vst.msk [vmem:[#allocation5 + $0xd0] sm:$0xff] %vm2535, %v3916
      %3949 = vst.msk [vmem:[#allocation5 + $0xe8] sm:$0xff] %vm2535, %v3917
      %3950 = vst.msk [vmem:[#allocation5 + $0x100] sm:$0xff] %vm2535, %v3918
      %3951 = vst.msk [vmem:[#allocation5 + $0x118] sm:$0xff] %vm2535, %v3919
      %3952 = vst.msk [vmem:[#allocation5 + $0x130] sm:$0xff] %vm2535, %v3920
      %3953 = vst.msk [vmem:[#allocation5 + $0x148] sm:$0xff] %vm2535, %v3921
      %3954 = vst.msk [vmem:[#allocation5 + $0x160] sm:$0xff] %vm2535, %v3922
      %3955 = vst.msk [vmem:[#allocation5 + $0x178] sm:$0xff] %vm2535, %v3923
      %3956 = vst.msk [vmem:[#allocation5 + $0x190] sm:$0xff] %vm2535, %v3924
      %3957 = vst.msk [vmem:[#allocation5 + $0x1a8] sm:$0xff] %vm2535, %v3925
      %3958 = vst.msk [vmem:[#allocation5 + $0x1c0] sm:$0xff] %vm2535, %v3926
      %3959 = vst.msk [vmem:[#allocation5 + $0x1d8] sm:$0xff] %vm2535, %v3927
      %3960 = vst.msk [vmem:[#allocation5 + $0x1f0] sm:$0xff] %vm2535, %v3928
      %3961 = vst.msk [vmem:[#allocation5 + $0x208] sm:$0xff] %vm2535, %v3929
      %3962 = vst.msk [vmem:[#allocation5 + $0x220] sm:$0xff] %vm2535, %v3930
      %3963 = vst.msk [vmem:[#allocation5 + $0x238] sm:$0xff] %vm2535, %v3931
      %3964 = vst.msk [vmem:[#allocation5 + $0x250] sm:$0xff] %vm2535, %v3932
      %3965 = vst.msk [vmem:[#allocation5 + $0x268] sm:$0xff] %vm2535, %v3933
      %3966 = vst.msk [vmem:[#allocation5 + $0x280] sm:$0xff] %vm2535, %v3934
      %3967 = vst.msk [vmem:[#allocation5 + $0x298] sm:$0xff] %vm2535, %v3935
      %3968 = vst.msk [vmem:[#allocation5 + $0x2b0] sm:$0xff] %vm2535, %v3936
      %3969 = vst.msk [vmem:[#allocation5 + $0x2c8] sm:$0xff] %vm2535, %v3937
      %3970 = vst.msk [vmem:[#allocation5 + $0x2e0] sm:$0xff] %vm2535, %v3938
      %3971 = vst.msk [vmem:[#allocation5 + $0x2f8] sm:$0xff] %vm2535, %v3939
      %v3972 = vld [vmem:[#allocation5] sm:$0xff]
      %v3973 = vld [vmem:[#allocation5 + $0x8] sm:$0xff]
      %v3974 = vld [vmem:[#allocation5 + $0x10] sm:$0xff]
      %v3975 = vld [vmem:[#allocation5 + $0x18] sm:$0xff]
      %v3976 = vld [vmem:[#allocation5 + $0x20] sm:$0xff]
      %v3977 = vld [vmem:[#allocation5 + $0x28] sm:$0xff]
      %v3978 = vld [vmem:[#allocation5 + $0x30] sm:$0xff]
      %v3979 = vld [vmem:[#allocation5 + $0x38] sm:$0xff]
      %v3980 = vld [vmem:[#allocation5 + $0x40] sm:$0xff]
      %v3981 = vld [vmem:[#allocation5 + $0x48] sm:$0xff]
      %v3982 = vld [vmem:[#allocation5 + $0x50] sm:$0xff]
      %v3983 = vld [vmem:[#allocation5 + $0x58] sm:$0xff]
      %v3984 = vld [vmem:[#allocation5 + $0x60] sm:$0xff]
      %v3985 = vld [vmem:[#allocation5 + $0x68] sm:$0xff]
      %v3986 = vld [vmem:[#allocation5 + $0x70] sm:$0xff]
      %v3987 = vld [vmem:[#allocation5 + $0x78] sm:$0xff]
      %v3988 = vld [vmem:[#allocation5 + $0x80] sm:$0xff]
      %v3989 = vld [vmem:[#allocation5 + $0x88] sm:$0xff]
      %v3990 = vld [vmem:[#allocation5 + $0x90] sm:$0xff]
      %v3991 = vld [vmem:[#allocation5 + $0x98] sm:$0xff]
      %v3992 = vld [vmem:[#allocation5 + $0xa0] sm:$0xff]
      %v3993 = vld [vmem:[#allocation5 + $0xa8] sm:$0xff]
      %v3994 = vld [vmem:[#allocation5 + $0xb0] sm:$0xff]
      %v3995 = vld [vmem:[#allocation5 + $0xb8] sm:$0xff]
      %v3996 = vld [vmem:[#allocation5 + $0xc0] sm:$0xff]
      %v3997 = vld [vmem:[#allocation5 + $0xc8] sm:$0xff]
      %v3998 = vld [vmem:[#allocation5 + $0xd0] sm:$0xff]
      %v3999 = vld [vmem:[#allocation5 + $0xd8] sm:$0xff]
      %v4000 = vld [vmem:[#allocation5 + $0xe0] sm:$0xff]
      %v4001 = vld [vmem:[#allocation5 + $0xe8] sm:$0xff]
      %v4002 = vld [vmem:[#allocation5 + $0xf0] sm:$0xff]
      %v4003 = vld [vmem:[#allocation5 + $0xf8] sm:$0xff]
      %v4004 = vld [vmem:[#allocation5 + $0x100] sm:$0xff]
      %v4005 = vld [vmem:[#allocation5 + $0x108] sm:$0xff]
      %v4006 = vld [vmem:[#allocation5 + $0x110] sm:$0xff]
      %v4007 = vld [vmem:[#allocation5 + $0x118] sm:$0xff]
      %v4008 = vld [vmem:[#allocation5 + $0x120] sm:$0xff]
      %v4009 = vld [vmem:[#allocation5 + $0x128] sm:$0xff]
      %v4010 = vld [vmem:[#allocation5 + $0x130] sm:$0xff]
      %v4011 = vld [vmem:[#allocation5 + $0x138] sm:$0xff]
      %v4012 = vld [vmem:[#allocation5 + $0x140] sm:$0xff]
      %v4013 = vld [vmem:[#allocation5 + $0x148] sm:$0xff]
      %v4014 = vld [vmem:[#allocation5 + $0x150] sm:$0xff]
      %v4015 = vld [vmem:[#allocation5 + $0x158] sm:$0xff]
      %v4016 = vld [vmem:[#allocation5 + $0x160] sm:$0xff]
      %v4017 = vld [vmem:[#allocation5 + $0x168] sm:$0xff]
      %v4018 = vld [vmem:[#allocation5 + $0x170] sm:$0xff]
      %v4019 = vld [vmem:[#allocation5 + $0x178] sm:$0xff]
      %v4020 = vld [vmem:[#allocation5 + $0x180] sm:$0xff]
      %v4021 = vld [vmem:[#allocation5 + $0x188] sm:$0xff]
      %v4022 = vld [vmem:[#allocation5 + $0x190] sm:$0xff]
      %v4023 = vld [vmem:[#allocation5 + $0x198] sm:$0xff]
      %v4024 = vld [vmem:[#allocation5 + $0x1a0] sm:$0xff]
      %v4025 = vld [vmem:[#allocation5 + $0x1a8] sm:$0xff]
      %v4026 = vld [vmem:[#allocation5 + $0x1b0] sm:$0xff]
      %v4027 = vld [vmem:[#allocation5 + $0x1b8] sm:$0xff]
      %v4028 = vld [vmem:[#allocation5 + $0x1c0] sm:$0xff]
      %v4029 = vld [vmem:[#allocation5 + $0x1c8] sm:$0xff]
      %v4030 = vld [vmem:[#allocation5 + $0x1d0] sm:$0xff]
      %v4031 = vld [vmem:[#allocation5 + $0x1d8] sm:$0xff]
      %v4032 = vld [vmem:[#allocation5 + $0x1e0] sm:$0xff]
      %v4033 = vld [vmem:[#allocation5 + $0x1e8] sm:$0xff]
      %v4034 = vld [vmem:[#allocation5 + $0x1f0] sm:$0xff]
      %v4035 = vld [vmem:[#allocation5 + $0x1f8] sm:$0xff]
      %v4036 = vld [vmem:[#allocation5 + $0x200] sm:$0xff]
      %v4037 = vld [vmem:[#allocation5 + $0x208] sm:$0xff]
      %v4038 = vld [vmem:[#allocation5 + $0x210] sm:$0xff]
      %v4039 = vld [vmem:[#allocation5 + $0x218] sm:$0xff]
      %v4040 = vld [vmem:[#allocation5 + $0x220] sm:$0xff]
      %v4041 = vld [vmem:[#allocation5 + $0x228] sm:$0xff]
      %v4042 = vld [vmem:[#allocation5 + $0x230] sm:$0xff]
      %v4043 = vld [vmem:[#allocation5 + $0x238] sm:$0xff]
      %v4044 = vld [vmem:[#allocation5 + $0x240] sm:$0xff]
      %v4045 = vld [vmem:[#allocation5 + $0x248] sm:$0xff]
      %v4046 = vld [vmem:[#allocation5 + $0x250] sm:$0xff]
      %v4047 = vld [vmem:[#allocation5 + $0x258] sm:$0xff]
      %v4048 = vld [vmem:[#allocation5 + $0x260] sm:$0xff]
      %v4049 = vld [vmem:[#allocation5 + $0x268] sm:$0xff]
      %v4050 = vld [vmem:[#allocation5 + $0x270] sm:$0xff]
      %v4051 = vld [vmem:[#allocation5 + $0x278] sm:$0xff]
      %v4052 = vld [vmem:[#allocation5 + $0x280] sm:$0xff]
      %v4053 = vld [vmem:[#allocation5 + $0x288] sm:$0xff]
      %v4054 = vld [vmem:[#allocation5 + $0x290] sm:$0xff]
      %v4055 = vld [vmem:[#allocation5 + $0x298] sm:$0xff]
      %v4056 = vld [vmem:[#allocation5 + $0x2a0] sm:$0xff]
      %v4057 = vld [vmem:[#allocation5 + $0x2a8] sm:$0xff]
      %v4058 = vld [vmem:[#allocation5 + $0x2b0] sm:$0xff]
      %v4059 = vld [vmem:[#allocation5 + $0x2b8] sm:$0xff]
      %v4060 = vld [vmem:[#allocation5 + $0x2c0] sm:$0xff]
      %v4061 = vld [vmem:[#allocation5 + $0x2c8] sm:$0xff]
      %v4062 = vld [vmem:[#allocation5 + $0x2d0] sm:$0xff]
      %v4063 = vld [vmem:[#allocation5 + $0x2d8] sm:$0xff]
      %v4064 = vld [vmem:[#allocation5 + $0x2e0] sm:$0xff]
      %v4065 = vld [vmem:[#allocation5 + $0x2e8] sm:$0xff]
      %v4066 = vld [vmem:[#allocation5 + $0x2f0] sm:$0xff]
      %v4067 = vld [vmem:[#allocation5 + $0x2f8] sm:$0xff]
      %v4068 = vld [vmem:[%s6] sm:$0xff]
      %v4069 = vld [vmem:[%s6 + $0x8] sm:$0xff]
      %v4070 = vld [vmem:[%s6 + $0x10] sm:$0xff]
      %v4071 = vld [vmem:[%s6 + $0x18] sm:$0xff]
      %v4072 = vld [vmem:[%s6 + $0x20] sm:$0xff]
      %v4073 = vld [vmem:[%s6 + $0x28] sm:$0xff]
      %v4074 = vld [vmem:[%s6 + $0x30] sm:$0xff]
      %v4075 = vld [vmem:[%s6 + $0x38] sm:$0xff]
      %v4076 = vld [vmem:[%s6 + $0x40] sm:$0xff]
      %v4077 = vld [vmem:[%s6 + $0x48] sm:$0xff]
      %v4078 = vld [vmem:[%s6 + $0x50] sm:$0xff]
      %v4079 = vld [vmem:[%s6 + $0x58] sm:$0xff]
      %v4080 = vld [vmem:[%s6 + $0x60] sm:$0xff]
      %v4081 = vld [vmem:[%s6 + $0x68] sm:$0xff]
      %v4082 = vld [vmem:[%s6 + $0x70] sm:$0xff]
      %v4083 = vld [vmem:[%s6 + $0x78] sm:$0xff]
      %v4084 = vld [vmem:[%s6 + $0x80] sm:$0xff]
      %v4085 = vld [vmem:[%s6 + $0x88] sm:$0xff]
      %v4086 = vld [vmem:[%s6 + $0x90] sm:$0xff]
      %v4087 = vld [vmem:[%s6 + $0x98] sm:$0xff]
      %v4088 = vld [vmem:[%s6 + $0xa0] sm:$0xff]
      %v4089 = vld [vmem:[%s6 + $0xa8] sm:$0xff]
      %v4090 = vld [vmem:[%s6 + $0xb0] sm:$0xff]
      %v4091 = vld [vmem:[%s6 + $0xb8] sm:$0xff]
      %v4092 = vld [vmem:[%s6 + $0xc0] sm:$0xff]
      %v4093 = vld [vmem:[%s6 + $0xc8] sm:$0xff]
      %v4094 = vld [vmem:[%s6 + $0xd0] sm:$0xff]
      %v4095 = vld [vmem:[%s6 + $0xd8] sm:$0xff]
      %v4096 = vld [vmem:[%s6 + $0xe0] sm:$0xff]
      %v4097 = vld [vmem:[%s6 + $0xe8] sm:$0xff]
      %v4098 = vld [vmem:[%s6 + $0xf0] sm:$0xff]
      %v4099 = vld [vmem:[%s6 + $0xf8] sm:$0xff]
      %v4100 = vld [vmem:[%s6 + $0x100] sm:$0xff]
      %v4101 = vld [vmem:[%s6 + $0x108] sm:$0xff]
      %v4102 = vld [vmem:[%s6 + $0x110] sm:$0xff]
      %v4103 = vld [vmem:[%s6 + $0x118] sm:$0xff]
      %v4104 = vld [vmem:[%s7] sm:$0x1]
      %v4106 = vperm.slane %v4104, 0
      %v4109 = vsel %vm2535, %v3974, 0
      %v4112 = vsel %vm2535, %v3977, 0
      %v4115 = vsel %vm2535, %v3980, 0
      %v4118 = vsel %vm2535, %v3983, 0
      %v4121 = vsel %vm2535, %v3986, 0
      %v4124 = vsel %vm2535, %v3989, 0
      %v4127 = vsel %vm2535, %v3992, 0
      %v4130 = vsel %vm2535, %v3995, 0
      %v4133 = vsel %vm2535, %v3998, 0
      %v4136 = vsel %vm2535, %v4001, 0
      %v4139 = vsel %vm2535, %v4004, 0
      %v4142 = vsel %vm2535, %v4007, 0
      %v4145 = vsel %vm2535, %v4010, 0
      %v4148 = vsel %vm2535, %v4013, 0
      %v4151 = vsel %vm2535, %v4016, 0
      %v4154 = vsel %vm2535, %v4019, 0
      %v4157 = vsel %vm2535, %v4022, 0
      %v4160 = vsel %vm2535, %v4025, 0
      %v4163 = vsel %vm2535, %v4028, 0
      %v4166 = vsel %vm2535, %v4031, 0
      %v4169 = vsel %vm2535, %v4034, 0
      %v4172 = vsel %vm2535, %v4037, 0
      %v4175 = vsel %vm2535, %v4040, 0
      %v4178 = vsel %vm2535, %v4043, 0
      %v4181 = vsel %vm2535, %v4046, 0
      %v4184 = vsel %vm2535, %v4049, 0
      %v4187 = vsel %vm2535, %v4052, 0
      %v4190 = vsel %vm2535, %v4055, 0
      %v4193 = vsel %vm2535, %v4058, 0
      %v4196 = vsel %vm2535, %v4061, 0
      %v4199 = vsel %vm2535, %v4064, 0
      %v4202 = vsel %vm2535, %v4067, 0
      %4204 = vmatpush.msra.mxu0 %v4083
      %4205 = vmatpush.msra.mxu0 %v4082
      %4206 = vmatpush.msra.mxu0 %v4081
      %4207 = vmatpush.msra.mxu0 %v4080
      %4208 = vmatpush.msra.mxu0 %v4079
      %4209 = vmatpush.msra.mxu0 %v4078
      %4210 = vmatpush.msra.mxu0 %v4077
      %4211 = vmatpush.msra.mxu0 %v4076
      %4212 = vmatpush.msra.mxu0 %v4075
      %4213 = vmatpush.msra.mxu0 %v4074
      %4214 = vmatpush.msra.mxu0 %v4073
      %4215 = vmatpush.msra.mxu0 %v4072
      %4216 = vmatpush.msra.mxu0 %v4071
      %4217 = vmatpush.msra.mxu0 %v4070
      %4218 = vmatpush.msra.mxu0 %v4069
      %4219 = vmatpush.msra.mxu0 %v4068
      %4220 = vmatmul.f32.gmra.mxu0 %v3972
      %v4221 = vpop.f32.mrf.mxu0
      %v4222 = vadd.f32 %v4106, %v4221
      %4223 = vmatmul.f32.gmra.mxu0 %v3975
      %v4224 = vpop.f32.mrf.mxu0
      %v4225 = vadd.f32 %v4106, %v4224
      %4226 = vmatmul.f32.gmra.mxu0 %v3978
      %v4227 = vpop.f32.mrf.mxu0
      %v4228 = vadd.f32 %v4106, %v4227
      %4229 = vmatmul.f32.gmra.mxu0 %v3981
      %v4230 = vpop.f32.mrf.mxu0
      %v4231 = vadd.f32 %v4106, %v4230
      %4232 = vmatmul.f32.gmra.mxu0 %v3984
      %v4233 = vpop.f32.mrf.mxu0
      %v4234 = vadd.f32 %v4106, %v4233
      %4235 = vmatmul.f32.gmra.mxu0 %v3987
      %v4236 = vpop.f32.mrf.mxu0
      %v4237 = vadd.f32 %v4106, %v4236
      %4238 = vmatmul.f32.gmra.mxu0 %v3990
      %v4239 = vpop.f32.mrf.mxu0
      %v4240 = vadd.f32 %v4106, %v4239
      %4241 = vmatmul.f32.gmra.mxu0 %v3993
      %v4242 = vpop.f32.mrf.mxu0
      %v4243 = vadd.f32 %v4106, %v4242
      %4244 = vmatmul.f32.gmra.mxu0 %v3996
      %v4245 = vpop.f32.mrf.mxu0
      %v4246 = vadd.f32 %v4106, %v4245
      %4247 = vmatmul.f32.gmra.mxu0 %v3999
      %v4248 = vpop.f32.mrf.mxu0
      %v4249 = vadd.f32 %v4106, %v4248
      %4250 = vmatmul.f32.gmra.mxu0 %v4002
      %v4251 = vpop.f32.mrf.mxu0
      %v4252 = vadd.f32 %v4106, %v4251
      %4253 = vmatmul.f32.gmra.mxu0 %v4005
      %v4254 = vpop.f32.mrf.mxu0
      %v4255 = vadd.f32 %v4106, %v4254
      %4256 = vmatmul.f32.gmra.mxu0 %v4008
      %v4257 = vpop.f32.mrf.mxu0
      %v4258 = vadd.f32 %v4106, %v4257
      %4259 = vmatmul.f32.gmra.mxu0 %v4011
      %v4260 = vpop.f32.mrf.mxu0
      %v4261 = vadd.f32 %v4106, %v4260
      %4262 = vmatmul.f32.gmra.mxu0 %v4014
      %v4263 = vpop.f32.mrf.mxu0
      %v4264 = vadd.f32 %v4106, %v4263
      %4265 = vmatmul.f32.gmra.mxu0 %v4017
      %v4266 = vpop.f32.mrf.mxu0
      %v4267 = vadd.f32 %v4106, %v4266
      %4268 = vmatmul.f32.gmra.mxu0 %v4020
      %v4269 = vpop.f32.mrf.mxu0
      %v4270 = vadd.f32 %v4106, %v4269
      %4271 = vmatmul.f32.gmra.mxu0 %v4023
      %v4272 = vpop.f32.mrf.mxu0
      %v4273 = vadd.f32 %v4106, %v4272
      %4274 = vmatmul.f32.gmra.mxu0 %v4026
      %v4275 = vpop.f32.mrf.mxu0
      %v4276 = vadd.f32 %v4106, %v4275
      %4277 = vmatmul.f32.gmra.mxu0 %v4029
      %v4278 = vpop.f32.mrf.mxu0
      %v4279 = vadd.f32 %v4106, %v4278
      %4280 = vmatmul.f32.gmra.mxu0 %v4032
      %v4281 = vpop.f32.mrf.mxu0
      %v4282 = vadd.f32 %v4106, %v4281
      %4283 = vmatmul.f32.gmra.mxu0 %v4035
      %v4284 = vpop.f32.mrf.mxu0
      %v4285 = vadd.f32 %v4106, %v4284
      %4286 = vmatmul.f32.gmra.mxu0 %v4038
      %v4287 = vpop.f32.mrf.mxu0
      %v4288 = vadd.f32 %v4106, %v4287
      %4289 = vmatmul.f32.gmra.mxu0 %v4041
      %v4290 = vpop.f32.mrf.mxu0
      %v4291 = vadd.f32 %v4106, %v4290
      %4292 = vmatmul.f32.gmra.mxu0 %v4044
      %v4293 = vpop.f32.mrf.mxu0
      %v4294 = vadd.f32 %v4106, %v4293
      %4295 = vmatmul.f32.gmra.mxu0 %v4047
      %v4296 = vpop.f32.mrf.mxu0
      %v4297 = vadd.f32 %v4106, %v4296
      %4298 = vmatmul.f32.gmra.mxu0 %v4050
      %v4299 = vpop.f32.mrf.mxu0
      %v4300 = vadd.f32 %v4106, %v4299
      %4301 = vmatmul.f32.gmra.mxu0 %v4053
      %v4302 = vpop.f32.mrf.mxu0
      %v4303 = vadd.f32 %v4106, %v4302
      %4304 = vmatmul.f32.gmra.mxu0 %v4056
      %v4305 = vpop.f32.mrf.mxu0
      %v4306 = vadd.f32 %v4106, %v4305
      %4307 = vmatmul.f32.gmra.mxu0 %v4059
      %v4308 = vpop.f32.mrf.mxu0
      %v4309 = vadd.f32 %v4106, %v4308
      %4310 = vmatmul.f32.gmra.mxu0 %v4062
      %v4311 = vpop.f32.mrf.mxu0
      %v4312 = vadd.f32 %v4106, %v4311
      %4313 = vmatmul.f32.gmra.mxu0 %v4065
      %v4314 = vpop.f32.mrf.mxu0
      %v4315 = vadd.f32 %v4106, %v4314
      %4316 = vdwg.mxu0
      %4317 = vmatpush.msra.mxu0 %v4099
      %4318 = vmatpush.msra.mxu0 %v4098
      %4319 = vmatpush.msra.mxu0 %v4097
      %4320 = vmatpush.msra.mxu0 %v4096
      %4321 = vmatpush.msra.mxu0 %v4095
      %4322 = vmatpush.msra.mxu0 %v4094
      %4323 = vmatpush.msra.mxu0 %v4093
      %4324 = vmatpush.msra.mxu0 %v4092
      %4325 = vmatpush.msra.mxu0 %v4091
      %4326 = vmatpush.msra.mxu0 %v4090
      %4327 = vmatpush.msra.mxu0 %v4089
      %4328 = vmatpush.msra.mxu0 %v4088
      %4329 = vmatpush.msra.mxu0 %v4087
      %4330 = vmatpush.msra.mxu0 %v4086
      %4331 = vmatpush.msra.mxu0 %v4085
      %4332 = vmatpush.msra.mxu0 %v4084
      %4333 = vmatmul.f32.gmra.mxu0 %v3973
      %v4334 = vpop.f32.mrf.mxu0
      %v4335 = vadd.f32 %v4222, %v4334
      %4336 = vmatmul.f32.gmra.mxu0 %v3976
      %v4337 = vpop.f32.mrf.mxu0
      %v4338 = vadd.f32 %v4225, %v4337
      %4339 = vmatmul.f32.gmra.mxu0 %v3979
      %v4340 = vpop.f32.mrf.mxu0
      %v4341 = vadd.f32 %v4228, %v4340
      %4342 = vmatmul.f32.gmra.mxu0 %v3982
      %v4343 = vpop.f32.mrf.mxu0
      %v4344 = vadd.f32 %v4231, %v4343
      %4345 = vmatmul.f32.gmra.mxu0 %v3985
      %v4346 = vpop.f32.mrf.mxu0
      %v4347 = vadd.f32 %v4234, %v4346
      %4348 = vmatmul.f32.gmra.mxu0 %v3988
      %v4349 = vpop.f32.mrf.mxu0
      %v4350 = vadd.f32 %v4237, %v4349
      %4351 = vmatmul.f32.gmra.mxu0 %v3991
      %v4352 = vpop.f32.mrf.mxu0
      %v4353 = vadd.f32 %v4240, %v4352
      %4354 = vmatmul.f32.gmra.mxu0 %v3994
      %v4355 = vpop.f32.mrf.mxu0
      %v4356 = vadd.f32 %v4243, %v4355
      %4357 = vmatmul.f32.gmra.mxu0 %v3997
      %v4358 = vpop.f32.mrf.mxu0
      %v4359 = vadd.f32 %v4246, %v4358
      %4360 = vmatmul.f32.gmra.mxu0 %v4000
      %v4361 = vpop.f32.mrf.mxu0
      %v4362 = vadd.f32 %v4249, %v4361
      %4363 = vmatmul.f32.gmra.mxu0 %v4003
      %v4364 = vpop.f32.mrf.mxu0
      %v4365 = vadd.f32 %v4252, %v4364
      %4366 = vmatmul.f32.gmra.mxu0 %v4006
      %v4367 = vpop.f32.mrf.mxu0
      %v4368 = vadd.f32 %v4255, %v4367
      %4369 = vmatmul.f32.gmra.mxu0 %v4009
      %v4370 = vpop.f32.mrf.mxu0
      %v4371 = vadd.f32 %v4258, %v4370
      %4372 = vmatmul.f32.gmra.mxu0 %v4012
      %v4373 = vpop.f32.mrf.mxu0
      %v4374 = vadd.f32 %v4261, %v4373
      %4375 = vmatmul.f32.gmra.mxu0 %v4015
      %v4376 = vpop.f32.mrf.mxu0
      %v4377 = vadd.f32 %v4264, %v4376
      %4378 = vmatmul.f32.gmra.mxu0 %v4018
      %v4379 = vpop.f32.mrf.mxu0
      %v4380 = vadd.f32 %v4267, %v4379
      %4381 = vmatmul.f32.gmra.mxu0 %v4021
      %v4382 = vpop.f32.mrf.mxu0
      %v4383 = vadd.f32 %v4270, %v4382
      %4384 = vmatmul.f32.gmra.mxu0 %v4024
      %v4385 = vpop.f32.mrf.mxu0
      %v4386 = vadd.f32 %v4273, %v4385
      %4387 = vmatmul.f32.gmra.mxu0 %v4027
      %v4388 = vpop.f32.mrf.mxu0
      %v4389 = vadd.f32 %v4276, %v4388
      %4390 = vmatmul.f32.gmra.mxu0 %v4030
      %v4391 = vpop.f32.mrf.mxu0
      %v4392 = vadd.f32 %v4279, %v4391
      %4393 = vmatmul.f32.gmra.mxu0 %v4033
      %v4394 = vpop.f32.mrf.mxu0
      %v4395 = vadd.f32 %v4282, %v4394
      %4396 = vmatmul.f32.gmra.mxu0 %v4036
      %v4397 = vpop.f32.mrf.mxu0
      %v4398 = vadd.f32 %v4285, %v4397
      %4399 = vmatmul.f32.gmra.mxu0 %v4039
      %v4400 = vpop.f32.mrf.mxu0
      %v4401 = vadd.f32 %v4288, %v4400
      %4402 = vmatmul.f32.gmra.mxu0 %v4042
      %v4403 = vpop.f32.mrf.mxu0
      %v4404 = vadd.f32 %v4291, %v4403
      %4405 = vmatmul.f32.gmra.mxu0 %v4045
      %v4406 = vpop.f32.mrf.mxu0
      %v4407 = vadd.f32 %v4294, %v4406
      %4408 = vmatmul.f32.gmra.mxu0 %v4048
      %v4409 = vpop.f32.mrf.mxu0
      %v4410 = vadd.f32 %v4297, %v4409
      %4411 = vmatmul.f32.gmra.mxu0 %v4051
      %v4412 = vpop.f32.mrf.mxu0
      %v4413 = vadd.f32 %v4300, %v4412
      %4414 = vmatmul.f32.gmra.mxu0 %v4054
      %v4415 = vpop.f32.mrf.mxu0
      %v4416 = vadd.f32 %v4303, %v4415
      %4417 = vmatmul.f32.gmra.mxu0 %v4057
      %v4418 = vpop.f32.mrf.mxu0
      %v4419 = vadd.f32 %v4306, %v4418
      %4420 = vmatmul.f32.gmra.mxu0 %v4060
      %v4421 = vpop.f32.mrf.mxu0
      %v4422 = vadd.f32 %v4309, %v4421
      %4423 = vmatmul.f32.gmra.mxu0 %v4063
      %v4424 = vpop.f32.mrf.mxu0
      %v4425 = vadd.f32 %v4312, %v4424
      %4426 = vmatmul.f32.gmra.mxu0 %v4066
      %v4427 = vpop.f32.mrf.mxu0
      %v4428 = vadd.f32 %v4315, %v4427
      %4429 = vdwg.mxu0
      %4430 = vmatpush.msra.mxu0 0.0
      %4431 = vmatpush.msra.mxu0 0.0
      %4432 = vmatpush.msra.mxu0 0.0
      %4433 = vmatpush.msra.mxu0 0.0
      %4434 = vmatpush.msra.mxu0 0.0
      %4435 = vmatpush.msra.mxu0 0.0
      %4436 = vmatpush.msra.mxu0 0.0
      %4437 = vmatpush.msra.mxu0 0.0
      %4438 = vmatpush.msra.mxu0 0.0
      %4439 = vmatpush.msra.mxu0 0.0
      %4440 = vmatpush.msra.mxu0 0.0
      %4441 = vmatpush.msra.mxu0 0.0
      %4442 = vmatpush.msra.mxu0 %v4103
      %4443 = vmatpush.msra.mxu0 %v4102
      %4444 = vmatpush.msra.mxu0 %v4101
      %4445 = vmatpush.msra.mxu0 %v4100
      %4446 = vmatmul.f32.gmra.mxu0 %v4109
      %v4447 = vpop.f32.mrf.mxu0
      %v4448 = vadd.f32 %v4335, %v4447
      %4449 = vmatmul.f32.gmra.mxu0 %v4112
      %v4450 = vpop.f32.mrf.mxu0
      %v4451 = vadd.f32 %v4338, %v4450
      %4452 = vmatmul.f32.gmra.mxu0 %v4115
      %v4453 = vpop.f32.mrf.mxu0
      %v4454 = vadd.f32 %v4341, %v4453
      %4455 = vmatmul.f32.gmra.mxu0 %v4118
      %v4456 = vpop.f32.mrf.mxu0
      %v4457 = vadd.f32 %v4344, %v4456
      %4458 = vmatmul.f32.gmra.mxu0 %v4121
      %v4459 = vpop.f32.mrf.mxu0
      %v4460 = vadd.f32 %v4347, %v4459
      %4461 = vmatmul.f32.gmra.mxu0 %v4124
      %v4462 = vpop.f32.mrf.mxu0
      %v4463 = vadd.f32 %v4350, %v4462
      %4464 = vmatmul.f32.gmra.mxu0 %v4127
      %v4465 = vpop.f32.mrf.mxu0
      %v4466 = vadd.f32 %v4353, %v4465
      %4467 = vmatmul.f32.gmra.mxu0 %v4130
      %v4468 = vpop.f32.mrf.mxu0
      %v4469 = vadd.f32 %v4356, %v4468
      %4470 = vmatmul.f32.gmra.mxu0 %v4133
      %v4471 = vpop.f32.mrf.mxu0
      %v4472 = vadd.f32 %v4359, %v4471
      %4473 = vmatmul.f32.gmra.mxu0 %v4136
      %v4474 = vpop.f32.mrf.mxu0
      %v4475 = vadd.f32 %v4362, %v4474
      %4476 = vmatmul.f32.gmra.mxu0 %v4139
      %v4477 = vpop.f32.mrf.mxu0
      %v4478 = vadd.f32 %v4365, %v4477
      %4479 = vmatmul.f32.gmra.mxu0 %v4142
      %v4480 = vpop.f32.mrf.mxu0
      %v4481 = vadd.f32 %v4368, %v4480
      %4482 = vmatmul.f32.gmra.mxu0 %v4145
      %v4483 = vpop.f32.mrf.mxu0
      %v4484 = vadd.f32 %v4371, %v4483
      %4485 = vmatmul.f32.gmra.mxu0 %v4148
      %v4486 = vpop.f32.mrf.mxu0
      %v4487 = vadd.f32 %v4374, %v4486
      %4488 = vmatmul.f32.gmra.mxu0 %v4151
      %v4489 = vpop.f32.mrf.mxu0
      %v4490 = vadd.f32 %v4377, %v4489
      %4491 = vmatmul.f32.gmra.mxu0 %v4154
      %v4492 = vpop.f32.mrf.mxu0
      %v4493 = vadd.f32 %v4380, %v4492
      %4494 = vmatmul.f32.gmra.mxu0 %v4157
      %v4495 = vpop.f32.mrf.mxu0
      %v4496 = vadd.f32 %v4383, %v4495
      %4497 = vmatmul.f32.gmra.mxu0 %v4160
      %v4498 = vpop.f32.mrf.mxu0
      %v4499 = vadd.f32 %v4386, %v4498
      %4500 = vmatmul.f32.gmra.mxu0 %v4163
      %v4501 = vpop.f32.mrf.mxu0
      %v4502 = vadd.f32 %v4389, %v4501
      %4503 = vmatmul.f32.gmra.mxu0 %v4166
      %v4504 = vpop.f32.mrf.mxu0
      %v4505 = vadd.f32 %v4392, %v4504
      %4506 = vmatmul.f32.gmra.mxu0 %v4169
      %v4507 = vpop.f32.mrf.mxu0
      %v4508 = vadd.f32 %v4395, %v4507
      %4509 = vmatmul.f32.gmra.mxu0 %v4172
      %v4510 = vpop.f32.mrf.mxu0
      %v4511 = vadd.f32 %v4398, %v4510
      %4512 = vmatmul.f32.gmra.mxu0 %v4175
      %v4513 = vpop.f32.mrf.mxu0
      %v4514 = vadd.f32 %v4401, %v4513
      %4515 = vmatmul.f32.gmra.mxu0 %v4178
      %v4516 = vpop.f32.mrf.mxu0
      %v4517 = vadd.f32 %v4404, %v4516
      %4518 = vmatmul.f32.gmra.mxu0 %v4181
      %v4519 = vpop.f32.mrf.mxu0
      %v4520 = vadd.f32 %v4407, %v4519
      %4521 = vmatmul.f32.gmra.mxu0 %v4184
      %v4522 = vpop.f32.mrf.mxu0
      %v4523 = vadd.f32 %v4410, %v4522
      %4524 = vmatmul.f32.gmra.mxu0 %v4187
      %v4525 = vpop.f32.mrf.mxu0
      %v4526 = vadd.f32 %v4413, %v4525
      %4527 = vmatmul.f32.gmra.mxu0 %v4190
      %v4528 = vpop.f32.mrf.mxu0
      %v4529 = vadd.f32 %v4416, %v4528
      %4530 = vmatmul.f32.gmra.mxu0 %v4193
      %v4531 = vpop.f32.mrf.mxu0
      %v4532 = vadd.f32 %v4419, %v4531
      %4533 = vmatmul.f32.gmra.mxu0 %v4196
      %v4534 = vpop.f32.mrf.mxu0
      %v4535 = vadd.f32 %v4422, %v4534
      %4536 = vmatmul.f32.gmra.mxu0 %v4199
      %v4537 = vpop.f32.mrf.mxu0
      %v4538 = vadd.f32 %v4425, %v4537
      %4539 = vmatmul.f32.gmra.mxu0 %v4202
      %v4540 = vpop.f32.mrf.mxu0
      %v4541 = vadd.f32 %v4428, %v4540
      %4542 = vdwg.mxu0
      %v4543 = vld [vmem:[%s8] sm:$0xf]
      %v4544 = vld [vmem:[%s9] sm:$0x1]
      %v4546 = vperm.slane %v4544, 0
      %v4549 = vsel %vm550, %v414, 0
      %v4552 = vsel %vm550, %v415, 0
      %v4555 = vsel %vm550, %v416, 0
      %v4558 = vsel %vm550, %v417, 0
      %v4561 = vsel %vm550, %v418, 0
      %v4564 = vsel %vm550, %v419, 0
      %v4567 = vsel %vm550, %v420, 0
      %v4570 = vsel %vm550, %v421, 0
      %v4573 = vsel %vm550, %v422, 0
      %v4576 = vsel %vm550, %v423, 0
      %v4579 = vsel %vm550, %v424, 0
      %v4582 = vsel %vm550, %v425, 0
      %v4585 = vsel %vm550, %v426, 0
      %v4588 = vsel %vm550, %v427, 0
      %v4591 = vsel %vm550, %v428, 0
      %v4594 = vsel %vm550, %v429, 0
      %v4597 = vsel %vm550, %v430, 0
      %v4600 = vsel %vm550, %v431, 0
      %v4603 = vsel %vm550, %v432, 0
      %v4606 = vsel %vm550, %v433, 0
      %v4609 = vsel %vm550, %v434, 0
      %v4612 = vsel %vm550, %v435, 0
      %v4615 = vsel %vm550, %v436, 0
      %v4618 = vsel %vm550, %v437, 0
      %v4621 = vsel %vm550, %v438, 0
      %v4624 = vsel %vm550, %v439, 0
      %v4627 = vsel %vm550, %v440, 0
      %v4630 = vsel %vm550, %v441, 0
      %v4633 = vsel %vm550, %v442, 0
      %v4636 = vsel %vm550, %v443, 0
      %v4639 = vsel %vm550, %v444, 0
      %v4642 = vsel %vm550, %v445, 0
      %v4645 = vsel %vm2386, %v4543, 0
      %4647 = vmatpush.msra.mxu0 0.0
      %4648 = vmatpush.msra.mxu0 0.0
      %4649 = vmatpush.msra.mxu0 0.0
      %4650 = vmatpush.msra.mxu0 0.0
      %4651 = vmatpush.msra.mxu0 0.0
      %4652 = vmatpush.msra.mxu0 0.0
      %4653 = vmatpush.msra.mxu0 0.0
      %4654 = vmatpush.msra.mxu0 0.0
      %4655 = vmatpush.msra.mxu0 0.0
      %4656 = vmatpush.msra.mxu0 0.0
      %4657 = vmatpush.msra.mxu0 0.0
      %4658 = vmatpush.msra.mxu0 0.0
      %4659 = vmatpush.msra.mxu0 0.0
      %4660 = vmatpush.msra.mxu0 0.0
      %4661 = vmatpush.msra.mxu0 0.0
      %4662 = vmatpush.msra.mxu0 %v4645
      %4663 = vmatmul.f32.gmra.mxu0 %v4549
      %v4664 = vpop.f32.mrf.mxu0
      %v4665 = vadd.f32 %v4546, %v4664
      %4666 = vmatmul.f32.gmra.mxu0 %v4552
      %v4667 = vpop.f32.mrf.mxu0
      %v4668 = vadd.f32 %v4546, %v4667
      %4669 = vmatmul.f32.gmra.mxu0 %v4555
      %v4670 = vpop.f32.mrf.mxu0
      %v4671 = vadd.f32 %v4546, %v4670
      %4672 = vmatmul.f32.gmra.mxu0 %v4558
      %v4673 = vpop.f32.mrf.mxu0
      %v4674 = vadd.f32 %v4546, %v4673
      %4675 = vmatmul.f32.gmra.mxu0 %v4561
      %v4676 = vpop.f32.mrf.mxu0
      %v4677 = vadd.f32 %v4546, %v4676
      %4678 = vmatmul.f32.gmra.mxu0 %v4564
      %v4679 = vpop.f32.mrf.mxu0
      %v4680 = vadd.f32 %v4546, %v4679
      %4681 = vmatmul.f32.gmra.mxu0 %v4567
      %v4682 = vpop.f32.mrf.mxu0
      %v4683 = vadd.f32 %v4546, %v4682
      %4684 = vmatmul.f32.gmra.mxu0 %v4570
      %v4685 = vpop.f32.mrf.mxu0
      %v4686 = vadd.f32 %v4546, %v4685
      %4687 = vmatmul.f32.gmra.mxu0 %v4573
      %v4688 = vpop.f32.mrf.mxu0
      %v4689 = vadd.f32 %v4546, %v4688
      %4690 = vmatmul.f32.gmra.mxu0 %v4576
      %v4691 = vpop.f32.mrf.mxu0
      %v4692 = vadd.f32 %v4546, %v4691
      %4693 = vmatmul.f32.gmra.mxu0 %v4579
      %v4694 = vpop.f32.mrf.mxu0
      %v4695 = vadd.f32 %v4546, %v4694
      %4696 = vmatmul.f32.gmra.mxu0 %v4582
      %v4697 = vpop.f32.mrf.mxu0
      %v4698 = vadd.f32 %v4546, %v4697
      %4699 = vmatmul.f32.gmra.mxu0 %v4585
      %v4700 = vpop.f32.mrf.mxu0
      %v4701 = vadd.f32 %v4546, %v4700
      %4702 = vmatmul.f32.gmra.mxu0 %v4588
      %v4703 = vpop.f32.mrf.mxu0
      %v4704 = vadd.f32 %v4546, %v4703
      %4705 = vmatmul.f32.gmra.mxu0 %v4591
      %v4706 = vpop.f32.mrf.mxu0
      %v4707 = vadd.f32 %v4546, %v4706
      %4708 = vmatmul.f32.gmra.mxu0 %v4594
      %v4709 = vpop.f32.mrf.mxu0
      %v4710 = vadd.f32 %v4546, %v4709
      %4711 = vmatmul.f32.gmra.mxu0 %v4597
      %v4712 = vpop.f32.mrf.mxu0
      %v4713 = vadd.f32 %v4546, %v4712
      %4714 = vmatmul.f32.gmra.mxu0 %v4600
      %v4715 = vpop.f32.mrf.mxu0
      %v4716 = vadd.f32 %v4546, %v4715
      %4717 = vmatmul.f32.gmra.mxu0 %v4603
      %v4718 = vpop.f32.mrf.mxu0
      %v4719 = vadd.f32 %v4546, %v4718
      %4720 = vmatmul.f32.gmra.mxu0 %v4606
      %v4721 = vpop.f32.mrf.mxu0
      %v4722 = vadd.f32 %v4546, %v4721
      %4723 = vmatmul.f32.gmra.mxu0 %v4609
      %v4724 = vpop.f32.mrf.mxu0
      %v4725 = vadd.f32 %v4546, %v4724
      %4726 = vmatmul.f32.gmra.mxu0 %v4612
      %v4727 = vpop.f32.mrf.mxu0
      %v4728 = vadd.f32 %v4546, %v4727
      %4729 = vmatmul.f32.gmra.mxu0 %v4615
      %v4730 = vpop.f32.mrf.mxu0
      %v4731 = vadd.f32 %v4546, %v4730
      %4732 = vmatmul.f32.gmra.mxu0 %v4618
      %v4733 = vpop.f32.mrf.mxu0
      %v4734 = vadd.f32 %v4546, %v4733
      %4735 = vmatmul.f32.gmra.mxu0 %v4621
      %v4736 = vpop.f32.mrf.mxu0
      %v4737 = vadd.f32 %v4546, %v4736
      %4738 = vmatmul.f32.gmra.mxu0 %v4624
      %v4739 = vpop.f32.mrf.mxu0
      %v4740 = vadd.f32 %v4546, %v4739
      %4741 = vmatmul.f32.gmra.mxu0 %v4627
      %v4742 = vpop.f32.mrf.mxu0
      %v4743 = vadd.f32 %v4546, %v4742
      %4744 = vmatmul.f32.gmra.mxu0 %v4630
      %v4745 = vpop.f32.mrf.mxu0
      %v4746 = vadd.f32 %v4546, %v4745
      %4747 = vmatmul.f32.gmra.mxu0 %v4633
      %v4748 = vpop.f32.mrf.mxu0
      %v4749 = vadd.f32 %v4546, %v4748
      %4750 = vmatmul.f32.gmra.mxu0 %v4636
      %v4751 = vpop.f32.mrf.mxu0
      %v4752 = vadd.f32 %v4546, %v4751
      %4753 = vmatmul.f32.gmra.mxu0 %v4639
      %v4754 = vpop.f32.mrf.mxu0
      %v4755 = vadd.f32 %v4546, %v4754
      %4756 = vmatmul.f32.gmra.mxu0 %v4642
      %v4757 = vpop.f32.mrf.mxu0
      %v4758 = vadd.f32 %v4546, %v4757
      %4759 = vdwg.mxu0
      %v4760 = vadd.f32 %v4448, %v4665
      %v4761 = vadd.f32 %v4451, %v4668
      %v4762 = vadd.f32 %v4454, %v4671
      %v4763 = vadd.f32 %v4457, %v4674
      %v4764 = vadd.f32 %v4460, %v4677
      %v4765 = vadd.f32 %v4463, %v4680
      %v4766 = vadd.f32 %v4466, %v4683
      %v4767 = vadd.f32 %v4469, %v4686
      %v4768 = vadd.f32 %v4472, %v4689
      %v4769 = vadd.f32 %v4475, %v4692
      %v4770 = vadd.f32 %v4478, %v4695
      %v4771 = vadd.f32 %v4481, %v4698
      %v4772 = vadd.f32 %v4484, %v4701
      %v4773 = vadd.f32 %v4487, %v4704
      %v4774 = vadd.f32 %v4490, %v4707
      %v4775 = vadd.f32 %v4493, %v4710
      %v4776 = vadd.f32 %v4496, %v4713
      %v4777 = vadd.f32 %v4499, %v4716
      %v4778 = vadd.f32 %v4502, %v4719
      %v4779 = vadd.f32 %v4505, %v4722
      %v4780 = vadd.f32 %v4508, %v4725
      %v4781 = vadd.f32 %v4511, %v4728
      %v4782 = vadd.f32 %v4514, %v4731
      %v4783 = vadd.f32 %v4517, %v4734
      %v4784 = vadd.f32 %v4520, %v4737
      %v4785 = vadd.f32 %v4523, %v4740
      %v4786 = vadd.f32 %v4526, %v4743
      %v4787 = vadd.f32 %v4529, %v4746
      %v4788 = vadd.f32 %v4532, %v4749
      %v4789 = vadd.f32 %v4535, %v4752
      %v4790 = vadd.f32 %v4538, %v4755
      %v4791 = vadd.f32 %v4541, %v4758
      %v4792 = vsel %vm2535, %v4760, 0.0
      %v4793 = vsel %vm2535, %v4761, 0.0
      %v4794 = vadd.f32 %v4792, %v4793
      %v4795 = vsel %vm2535, %v4762, 0.0
      %v4796 = vadd.f32 %v4794, %v4795
      %v4797 = vsel %vm2535, %v4763, 0.0
      %v4798 = vadd.f32 %v4796, %v4797
      %v4799 = vsel %vm2535, %v4764, 0.0
      %v4800 = vadd.f32 %v4798, %v4799
      %v4801 = vsel %vm2535, %v4765, 0.0
      %v4802 = vadd.f32 %v4800, %v4801
      %v4803 = vsel %vm2535, %v4766, 0.0
      %v4804 = vadd.f32 %v4802, %v4803
      %v4805 = vsel %vm2535, %v4767, 0.0
      %v4806 = vadd.f32 %v4804, %v4805
      %v4807 = vsel %vm2535, %v4768, 0.0
      %v4808 = vadd.f32 %v4806, %v4807
      %v4809 = vsel %vm2535, %v4769, 0.0
      %v4810 = vadd.f32 %v4808, %v4809
      %v4811 = vsel %vm2535, %v4770, 0.0
      %v4812 = vadd.f32 %v4810, %v4811
      %v4813 = vsel %vm2535, %v4771, 0.0
      %v4814 = vadd.f32 %v4812, %v4813
      %v4815 = vsel %vm2535, %v4772, 0.0
      %v4816 = vadd.f32 %v4814, %v4815
      %v4817 = vsel %vm2535, %v4773, 0.0
      %v4818 = vadd.f32 %v4816, %v4817
      %v4819 = vsel %vm2535, %v4774, 0.0
      %v4820 = vadd.f32 %v4818, %v4819
      %v4821 = vsel %vm2535, %v4775, 0.0
      %v4822 = vadd.f32 %v4820, %v4821
      %v4823 = vsel %vm2535, %v4776, 0.0
      %v4824 = vadd.f32 %v4822, %v4823
      %v4825 = vsel %vm2535, %v4777, 0.0
      %v4826 = vadd.f32 %v4824, %v4825
      %v4827 = vsel %vm2535, %v4778, 0.0
      %v4828 = vadd.f32 %v4826, %v4827
      %v4829 = vsel %vm2535, %v4779, 0.0
      %v4830 = vadd.f32 %v4828, %v4829
      %v4831 = vsel %vm2535, %v4780, 0.0
      %v4832 = vadd.f32 %v4830, %v4831
      %v4833 = vsel %vm2535, %v4781, 0.0
      %v4834 = vadd.f32 %v4832, %v4833
      %v4835 = vsel %vm2535, %v4782, 0.0
      %v4836 = vadd.f32 %v4834, %v4835
      %v4837 = vsel %vm2535, %v4783, 0.0
      %v4838 = vadd.f32 %v4836, %v4837
      %v4839 = vsel %vm2535, %v4784, 0.0
      %v4840 = vadd.f32 %v4838, %v4839
      %v4841 = vsel %vm2535, %v4785, 0.0
      %v4842 = vadd.f32 %v4840, %v4841
      %v4843 = vsel %vm2535, %v4786, 0.0
      %v4844 = vadd.f32 %v4842, %v4843
      %v4845 = vsel %vm2535, %v4787, 0.0
      %v4846 = vadd.f32 %v4844, %v4845
      %v4847 = vsel %vm2535, %v4788, 0.0
      %v4848 = vadd.f32 %v4846, %v4847
      %v4849 = vsel %vm2535, %v4789, 0.0
      %v4850 = vadd.f32 %v4848, %v4849
      %v4851 = vsel %vm2535, %v4790, 0.0
      %v4852 = vadd.f32 %v4850, %v4851
      %v4853 = vsel %vm2535, %v4791, 0.0
      %v4854 = vadd.f32 %v4852, %v4853
      %v4855 = vrot.slane %v4854, 4
      %v4856 = vadd.f32 %v4854, %v4855
      %v4857 = vrot.slane %v4856, 2
      %v4858 = vadd.f32 %v4856, %v4857
      %v4859 = vrot.slane %v4858, 1
      %v4860 = vadd.f32 %v4858, %v4859
      %v4861 = vrcp.pop 256.0
      %v4862 = vmul.f32 256.0, %v4861
      %v4863 = vsub.f32 1.0, %v4862
      %v4864 = vmul.f32 %v4861, %v4863
      %v4865 = vadd.f32 %v4861, %v4864
      %vm4866 = vweird.f32 %v4861
      %v4867 = vsel %vm4866, %v4861, %v4865
      %v4868 = vmul.f32 %v4860, %v4867
      %v4869 = vld [vmem:[%s10] sm:$0xff]
      %v4870 = vld [vmem:[%s10 + $0x8] sm:$0xff]
      %v4871 = vld [vmem:[%s10 + $0x10] sm:$0xff]
      %v4872 = vld [vmem:[%s10 + $0x18] sm:$0xff]
      %v4874 = vsel %vm2535, %v4868, 0
      %4876 = vmatpush.msra.mxu0 0.0
      %4877 = vmatpush.msra.mxu0 0.0
      %4878 = vmatpush.msra.mxu0 0.0
      %4879 = vmatpush.msra.mxu0 0.0
      %4880 = vmatpush.msra.mxu0 0.0
      %4881 = vmatpush.msra.mxu0 0.0
      %4882 = vmatpush.msra.mxu0 0.0
      %4883 = vmatpush.msra.mxu0 0.0
      %4884 = vmatpush.msra.mxu0 0.0
      %4885 = vmatpush.msra.mxu0 0.0
      %4886 = vmatpush.msra.mxu0 0.0
      %4887 = vmatpush.msra.mxu0 0.0
      %4888 = vmatpush.msra.mxu0 %v4872
      %4889 = vmatpush.msra.mxu0 %v4871
      %4890 = vmatpush.msra.mxu0 %v4870
      %4891 = vmatpush.msra.mxu0 %v4869
      %4892 = vmatmul.f32.gmra.mxu0 %v4874
      %v4893 = vpop.f32.mrf.mxu0
      %v4894 = vadd.f32 0.0, %v4893
      %4895 = vdwg.mxu0
      %v4896 = vmax.f32 %v4894, 0.0
      %v4897 = vld [vmem:[%s11] sm:$0xf]
      %v4899 = vsel %vm550, %v4896, 0
      %v4902 = vsel %vm2386, %v4897, 0
      %4904 = vmatpush.msra.mxu0 0.0
      %4905 = vmatpush.msra.mxu0 0.0
      %4906 = vmatpush.msra.mxu0 0.0
      %4907 = vmatpush.msra.mxu0 0.0
      %4908 = vmatpush.msra.mxu0 0.0
      %4909 = vmatpush.msra.mxu0 0.0
      %4910 = vmatpush.msra.mxu0 0.0
      %4911 = vmatpush.msra.mxu0 0.0
      %4912 = vmatpush.msra.mxu0 0.0
      %4913 = vmatpush.msra.mxu0 0.0
      %4914 = vmatpush.msra.mxu0 0.0
      %4915 = vmatpush.msra.mxu0 0.0
      %4916 = vmatpush.msra.mxu0 0.0
      %4917 = vmatpush.msra.mxu0 0.0
      %4918 = vmatpush.msra.mxu0 0.0
      %4919 = vmatpush.msra.mxu0 %v4902
      %4920 = vmatmul.f32.gmra.mxu0 %v4899
      %v4921 = vpop.f32.mrf.mxu0
      %v4922 = vadd.f32 0.0, %v4921
      %4923 = vdwg.mxu0
      %v4924 = vsub.f32 0.0, %v4922
      %v4925 = vmul.f32 %v4924, 1.442695
      %v4926 = vpow.pop %v4925
      %v4927 = vadd.f32 %v4926, 1.0
      %v4928 = vrcp.pop %v4927
      %v4929 = vmul.f32 %v4927, %v4928
      %v4930 = vsub.f32 1.0, %v4929
      %v4931 = vmul.f32 %v4928, %v4930
      %v4932 = vadd.f32 %v4928, %v4931
      %vm4933 = vweird.f32 %v4927
      %vm4934 = vweird.f32 %v4928
      %vm4935 = vmor %vm4933, %vm4934
      %v4936 = vsel %vm4935, %v4928, %v4932
      %v4937 = vand.u32 2147483647, %v4927
      %vm4938 = vcmp.eq.f32.partialorder %v4937, 8.507059e+37
      %v4939 = vand.u32 %v4927, 2147483648
      %v4940 = vor.u32 1.1754944e-38, %v4939
      %v4941 = vsel %vm4938, %v4940, %v4936
      %v4942 = vmul.f32 1.0, %v4941
      %v4943 = vlaneseq
      %v4944 = vshrl.u32 %v4943, 7
      %v4945 = vadd.s32 %v4944, 8
      %v4946 = vadd.s32 %v4944, 16
      %v4947 = vadd.s32 %v4944, 24
      %v4948 = vlaneseq
      %v4949 = vand.u32 %v4948, 127
      %vm4950 = vcmp.eq.s32.totalorder %v4944, %v4949
      %vm4951 = vcmp.eq.s32.totalorder %v4945, %v4949
      %vm4952 = vcmp.eq.s32.totalorder %v4946, %v4949
      %vm4953 = vcmp.eq.s32.totalorder %v4947, %v4949
      %v4954 = vsel %vm4950, 1, 0
      %v4955 = vsel %vm4951, 1, 0
      %v4956 = vsel %vm4952, 1, 0
      %v4957 = vsel %vm4953, 1, 0
      %v4958 = vcvt.s32.f32 %v4954
      %v4959 = vcvt.s32.f32 %v4955
      %v4960 = vcvt.s32.f32 %v4956
      %v4961 = vcvt.s32.f32 %v4957
      %v4962 = vperm.slane %v4942, 0
      %v4963 = vmul.f32 %v4958, %v4962
      %v4964 = vmul.f32 %v4959, %v4962
      %v4965 = vmul.f32 %v4960, %v4962
      %v4966 = vmul.f32 %v4961, %v4962
      %v4968 = vsel %vm2535, %v4963, 0
      %v4971 = vsel %vm2535, %v4964, 0
      %v4974 = vsel %vm2535, %v4965, 0
      %v4977 = vsel %vm2535, %v4966, 0
      %v4980 = vsel %vm2535, %v4760, 0
      %v4983 = vsel %vm2535, %v4761, 0
      %v4986 = vsel %vm2535, %v4762, 0
      %v4989 = vsel %vm2535, %v4763, 0
      %v4992 = vsel %vm2535, %v4764, 0
      %v4995 = vsel %vm2535, %v4765, 0
      %v4998 = vsel %vm2535, %v4766, 0
      %v5001 = vsel %vm2535, %v4767, 0
      %v5004 = vsel %vm2535, %v4768, 0
      %v5007 = vsel %vm2535, %v4769, 0
      %v5010 = vsel %vm2535, %v4770, 0
      %v5013 = vsel %vm2535, %v4771, 0
      %v5016 = vsel %vm2535, %v4772, 0
      %v5019 = vsel %vm2535, %v4773, 0
      %v5022 = vsel %vm2535, %v4774, 0
      %v5025 = vsel %vm2535, %v4775, 0
      %v5028 = vsel %vm2535, %v4776, 0
      %v5031 = vsel %vm2535, %v4777, 0
      %v5034 = vsel %vm2535, %v4778, 0
      %v5037 = vsel %vm2535, %v4779, 0
      %v5040 = vsel %vm2535, %v4780, 0
      %v5043 = vsel %vm2535, %v4781, 0
      %v5046 = vsel %vm2535, %v4782, 0
      %v5049 = vsel %vm2535, %v4783, 0
      %v5052 = vsel %vm2535, %v4784, 0
      %v5055 = vsel %vm2535, %v4785, 0
      %v5058 = vsel %vm2535, %v4786, 0
      %v5061 = vsel %vm2535, %v4787, 0
      %v5064 = vsel %vm2535, %v4788, 0
      %v5067 = vsel %vm2535, %v4789, 0
      %v5070 = vsel %vm2535, %v4790, 0
      %v5073 = vsel %vm2535, %v4791, 0
      %5075 = vmatpush.xpose.msra.mxu0 %v5025
      %5076 = vmatpush.xpose.msra.mxu0 %v5022
      %5077 = vmatpush.xpose.msra.mxu0 %v5019
      %5078 = vmatpush.xpose.msra.mxu0 %v5016
      %5079 = vmatpush.xpose.msra.mxu0 %v5013
      %5080 = vmatpush.xpose.msra.mxu0 %v5010
      %5081 = vmatpush.xpose.msra.mxu0 %v5007
      %5082 = vmatpush.xpose.msra.mxu0 %v5004
      %5083 = vmatpush.xpose.msra.mxu0 %v5001
      %5084 = vmatpush.xpose.msra.mxu0 %v4998
      %5085 = vmatpush.xpose.msra.mxu0 %v4995
      %5086 = vmatpush.xpose.msra.mxu0 %v4992
      %5087 = vmatpush.xpose.msra.mxu0 %v4989
      %5088 = vmatpush.xpose.msra.mxu0 %v4986
      %5089 = vmatpush.xpose.msra.mxu0 %v4983
      %5090 = vmatpush.xpose.msra.mxu0 %v4980
      %5091 = vmatmul.f32.gmra.mxu0 %v4968
      %v5092 = vpop.f32.mrf.mxu0
      %v5093 = vadd.f32 0.0, %v5092
      %5094 = vmatmul.f32.gmra.mxu0 %v4971
      %v5095 = vpop.f32.mrf.mxu0
      %v5096 = vadd.f32 0.0, %v5095
      %5097 = vmatmul.f32.gmra.mxu0 %v4974
      %v5098 = vpop.f32.mrf.mxu0
      %v5099 = vadd.f32 0.0, %v5098
      %5100 = vmatmul.f32.gmra.mxu0 %v4977
      %v5101 = vpop.f32.mrf.mxu0
      %v5102 = vadd.f32 0.0, %v5101
      %5103 = vdwg.mxu0
      %5104 = vmatpush.xpose.msra.mxu0 %v5073
      %5105 = vmatpush.xpose.msra.mxu0 %v5070
      %5106 = vmatpush.xpose.msra.mxu0 %v5067
      %5107 = vmatpush.xpose.msra.mxu0 %v5064
      %5108 = vmatpush.xpose.msra.mxu0 %v5061
      %5109 = vmatpush.xpose.msra.mxu0 %v5058
      %5110 = vmatpush.xpose.msra.mxu0 %v5055
      %5111 = vmatpush.xpose.msra.mxu0 %v5052
      %5112 = vmatpush.xpose.msra.mxu0 %v5049
      %5113 = vmatpush.xpose.msra.mxu0 %v5046
      %5114 = vmatpush.xpose.msra.mxu0 %v5043
      %5115 = vmatpush.xpose.msra.mxu0 %v5040
      %5116 = vmatpush.xpose.msra.mxu0 %v5037
      %5117 = vmatpush.xpose.msra.mxu0 %v5034
      %5118 = vmatpush.xpose.msra.mxu0 %v5031
      %5119 = vmatpush.xpose.msra.mxu0 %v5028
      %5120 = vmatmul.f32.gmra.mxu0 %v4968
      %v5121 = vpop.f32.mrf.mxu0
      %v5122 = vadd.f32 0.0, %v5121
      %5123 = vmatmul.f32.gmra.mxu0 %v4971
      %v5124 = vpop.f32.mrf.mxu0
      %v5125 = vadd.f32 0.0, %v5124
      %5126 = vmatmul.f32.gmra.mxu0 %v4974
      %v5127 = vpop.f32.mrf.mxu0
      %v5128 = vadd.f32 0.0, %v5127
      %5129 = vmatmul.f32.gmra.mxu0 %v4977
      %v5130 = vpop.f32.mrf.mxu0
      %v5131 = vadd.f32 0.0, %v5130
      %5132 = vdwg.mxu0
      %5133 = vst [vmem:[%s413] sm:$0xff] %v5093
      %5134 = vst [vmem:[%s413 + $0x8] sm:$0xff] %v5122
      %5135 = vst [vmem:[%s413 + $0x10] sm:$0xff] %v5096
      %5136 = vst [vmem:[%s413 + $0x18] sm:$0xff] %v5125
      %5137 = vst [vmem:[%s413 + $0x20] sm:$0xff] %v5099
      %5138 = vst [vmem:[%s413 + $0x28] sm:$0xff] %v5128
      %5139 = vst [vmem:[%s413 + $0x30] sm:$0xff] %v5102
      %5140 = vst [vmem:[%s413 + $0x38] sm:$0xff] %v5131
      %p5141 = scmp.lt.s32.totalorder %s23, 1
      %s5142 = scalar_select %p5141, %s23, 1
      %s5143 = smul.addr %s5142, 8
      %s5144 = smul.addr %s5143, 8
      %s5145 = scalar_lea.vmem %s12, %s5144
      // Predicated region
      $region69: #{resnet_block.1} parent=67 // pred_check
        %p5146 = pneg %p298
      $region70: #{resnet_block.1} parent=67 // pred_check_branch
        %5148 = sbr.rel (%p5146) target = $region72
      $region71: #{resnet_block.1} parent=67 // pred_region
        _
      $region72: #{resnet_block.1} parent=67 // pred_fallthru
        _
    $region68: #{resnet_block.1} parent=5 // pred_fallthru
      _
    %p5149 = scmp.le.s32.totalorder 2, %s18
    // Predicated region
    $region73: #{resnet_block.1} parent=5 // pred_check
      %p5150 = pneg %p5149
    $region74: #{resnet_block.1} parent=5 // pred_check_branch
      %5152 = sbr.rel (%p5150) target = $region76
    $region75: #{resnet_block.1} parent=5 // pred_region
      %s5153 = ssub.s32 %s18, 2
      // Predicated region
      $region77: #{resnet_block.1} parent=75 // pred_check
        %p5154 = pneg %p304
      $region78: #{resnet_block.1} parent=75 // pred_check_branch
        %5156 = sbr.rel (%p5154) target = $region80
      $region79: #{resnet_block.1} parent=75 // pred_region
        %p5157 = scmp.lt.s32.totalorder %s24, 1
        %s5158 = scalar_select %p5157, %s24, 1
        %s5159 = smul.addr %s5158, 8
        %s5160 = smul.addr %s5159, 8
        %s5161 = scalar_lea.vmem %s12, %s5160
      $region80: #{resnet_block.1} parent=75 // pred_fallthru
        _
    $region76: #{resnet_block.1} parent=5 // pred_fallthru
      _
  $region6: #{resnet_block.1} parent=0 // loop_footer
    %s22 = sadd.s32 1, %s18
  $region7: #{resnet_block.1} parent=0 // loop_footer_branch
    %17 = sbr.rel target = $region3
  $region8: #{resnet_block.1} parent=0 // loop_exit
    _

</llo_original>
